<compile_context>
chip_gen: v5e
topology: v5e:2x2
jax: 0.10.0
libtpu: 0.0.40
codegen_flags: <defaults>
</compile_context>

<pallas_src>
import jax
import jax.numpy as jnp
from jax.experimental import pallas as pl
from jax.experimental.pallas import tpu as pltpu

# ----------------------------- config ------------------------------------
HIDDEN_DIM = 128          # module default is 300; 128 keeps the lane dim aligned
                          # (if raised toward 300 on v5e, pad to 384 = 3x128)
RANDOM_VEC_DIM = 16
DEPTH = 3
BATCH = 4                 # graphs per forward (leading "parallel" grid axis)
N_NODES = 16              # padded nodes per graph
N_EDGES = 32              # padded edges per graph
BN_EPS = 1e-5
MATMUL_DTYPE = jnp.bfloat16   # MXU operand dtype (accumulation stays f32)
# Fuse first-layer chunk matmuls along K (concat activations -> K=256/384).
# Wins on v6e/v7x (256-deep MXU); set False on v5e whose 128x128 MXU is already
# exactly filled by 128-wide chunks.
FUSE_FIRST_LAYER_K = True

ATOM_FEATURE_DIMS = [119, 5, 12, 12, 10, 6, 6, 2, 2]   # OGB AtomEncoder vocabs
BOND_FEATURE_DIMS = [5, 6, 2]                          # OGB BondEncoder vocabs


# ------------------------- fused Pallas kernel -----------------------------
def _make_kernel(depth, chunk_counts):
    """Whole per-graph GeomolGNN forward in one grid step.

    Ref layout (inputs, in order):
      per-graph : x_enc, e_enc, pre_x, pre_e, oh_row, oh_col, scat01, inv_deg
      node_init : w1_x, w2, b2            (rand chunk + b1 folded into pre_x)
      edge_init : w1_e, w2, b2            (rand chunk + b1 folded into pre_e)
      edge_model: w1 x n_edge, b1, w2, b2 (BN(eval) folded into w1/b1)
      node_mlp1 : w1 x n_msg,  b1, w2, b2
      node_mlp2 : w1 x n_node, b1, w2, b2
    outputs: x_out [N,H], e_out [E,H]
    """
    n_edge, n_msg, n_node = chunk_counts
    n_loop = (n_edge + 3) + (n_msg + 3) + (n_node + 3)
    BF = MATMUL_DTYPE

    def kernel(*refs):
        (x_enc_r, e_enc_r, pre_x_r, pre_e_r,
         oh_row_r, oh_col_r, scat_r, invdeg_r,
         ni_w1_r, ni_w2_r, ni_b2_r,
         ei_w1_r, ei_w2_r, ei_b2_r) = refs[:14]
        loop_refs = refs[14:14 + n_loop]
        x_out_r, e_out_r = refs[14 + n_loop], refs[15 + n_loop]

        i = 0
        edge_w1 = loop_refs[i:i + n_edge]; i += n_edge
        edge_b1_r, edge_w2_r, edge_b2_r = loop_refs[i:i + 3]; i += 3
        msg_w1 = loop_refs[i:i + n_msg]; i += n_msg
        msg_b1_r, msg_w2_r, msg_b2_r = loop_refs[i:i + 3]; i += 3
        node_w1 = loop_refs[i:i + n_node]; i += n_node
        node_b1_r, node_w2_r, node_b2_r = loop_refs[i:i + 3]; i += 3

        def dotf(a, b):
            # operands are already MATMUL_DTYPE; MXU accumulates in f32
            return jnp.dot(a, b, preferred_element_type=jnp.float32)

        def first_layer(chunks_bf, w1_refs, b1):
            # relu(cat(chunks) @ W1 + b1); BN(eval) already folded into W1/b1.
            if len(w1_refs) == 1:       # K-fused single matmul (v6e/v7x)
                h = dotf(jnp.concatenate(chunks_bf, axis=-1), w1_refs[0][...])
            else:                       # per-chunk K=128 matmuls (v5e)
                h = dotf(chunks_bf[0], w1_refs[0][...])
                for c, w in zip(chunks_bf[1:], w1_refs[1:]):
                    h = h + dotf(c, w[...])
            return jnp.maximum(h + b1, 0.0)

        # ---- init MLPs (rand-chunk matmul + folded b1 live in pre_x / pre_e) --
        h = jnp.maximum(dotf(x_enc_r[...], ni_w1_r[...]) + pre_x_r[...], 0.0)
        x = dotf(h.astype(BF), ni_w2_r[...]) + ni_b2_r[...]        # [N,H] f32
        h = jnp.maximum(dotf(e_enc_r[...], ei_w1_r[...]) + pre_e_r[...], 0.0)
        e = dotf(h.astype(BF), ei_w2_r[...]) + ei_b2_r[...]        # [E,H] f32

        # ---- loop-invariant reads hoisted above the unrolled depth loop ------
        oh_row = oh_row_r[...]          # [E,N] bf16 0/1 gather operator (x[row])
        oh_col = oh_col_r[...]          # [E,N] bf16 0/1 gather operator (x[col])
        scat = scat_r[...]              # [N,E] bf16 0/1 scatter-add operator
        inv_deg = invdeg_r[...]         # [N,1] f32 reciprocal degrees
        e_b1 = edge_b1_r[...]; e_b2 = edge_b2_r[...]
        m_b1 = msg_b1_r[...];  m_b2 = msg_b2_r[...]
        n_b1 = node_b1_r[...]; n_b2 = node_b2_r[...]

        # ---- depth x GeomolMetaLayer, fully unrolled, x/e stay on-chip --------
        for _ in range(depth):
            xb = x.astype(BF)                       # cast once per value
            eb = e.astype(BF)
            # gather-first: x[row] / x[col] computed once, reused twice.
            # one-hot entries are exactly 0/1 in bf16 -> gathers are exact.
            xr = dotf(oh_row, xb).astype(BF)        # [E,H]
            xc = dotf(oh_col, xb).astype(BF)        # [E,H]

            # EdgeModel: e = MLP(cat(x[row], x[col], e))
            he = first_layer([xr, xc, eb], edge_w1, e_b1)
            e = dotf(he.astype(BF), edge_w2_r[...]) + e_b2         # [E,H] f32

            # NodeModel (1): msg = MLP(cat(x[row], e_new))
            hm = first_layer([xr, e.astype(BF)], msg_w1, m_b1)
            msg = dotf(hm.astype(BF), msg_w2_r[...]) + m_b2        # [E,H] f32

            # scatter_mean(msg, col, N): exact 0/1 scatter-add matmul
            # followed by an f32 reciprocal-degree rescale (VPU slot has slack).
            agg = dotf(scat, msg.astype(BF)) * inv_deg             # [N,H] f32

            # NodeModel (2): x = MLP(cat(x, agg))
            hx = first_layer([xb, agg.astype(BF)], node_w1, n_b1)
            x = dotf(hx.astype(BF), node_w2_r[...]) + n_b2         # [N,H] f32

        x_out_r[...] = x
        e_out_r[...] = e

    return kernel


# ----------------------- host-side parameter prep --------------------------
def _fold_bn(p):
    """Fold BN(eval) into the first linear layer (all f32 here):
         s   = gamma / sqrt(var + eps)
         W1' = W1 * s
         b1' = b1 * s + beta - mean * s"""
    s = p["gamma"] / jnp.sqrt(p["run_var"] + BN_EPS)                # (1, H)
    w1s = [w * s for w in p["w1s"]]
    b1 = p["b1"] * s + p["beta"] - p["run_mean"] * s
    return w1s, b1, p["w2"], p["b2"]


def encode(feat_int, tables):
    # glue: OGB AtomEncoder / BondEncoder = sum of per-feature embedding gathers
    out = jnp.take(tables[0], feat_int[..., 0], axis=0)
    for i, t in enumerate(tables[1:], start=1):
        out = out + jnp.take(t, feat_int[..., i], axis=0)
    return out


# ------------------------------ forward ------------------------------------
def geomol_forward(params, x_int, edge_index, e_int, rand_x, rand_edge, depth=DEPTH):
    """Batched forward. x_int [B,N,9], edge_index [B,2,E], e_int [B,E,3],
       rand_x [B,N,R], rand_edge [B,E,R]. Returns (x [B,N,H], e [B,E,H])."""
    BF = MATMUL_DTYPE
    x_enc = encode(x_int, params["atom_emb"])                       # [B,N,H] glue
    e_enc = encode(e_int, params["bond_emb"])                       # [B,E,H] glue
    # TODO(synk): pretrain_mode unsqueeze/repeat over n_model_confs not exercised
    #             (pretrain_mode defaults to False); [rows, feat] path only.
    B, N, H = x_enc.shape
    E = e_enc.shape[1]
    row, col = edge_index[:, 0, :], edge_index[:, 1, :]             # [B,E]

    # Loop-invariant gather / scatter operators (edge_index fixed per forward).
    # TODO(synk): for realistic graph sizes (N,E in the thousands) replace these
    #             dense O(E*N) one-hots with scalar-prefetched row/col indices
    #             (PrefetchScalarGridSpec) + in-kernel gather / segment-sum, or
    #             tile over the E axis — first hard wall is v7x's 64 MiB VMEM.
    oh_row = jax.nn.one_hot(row, N, dtype=jnp.float32)              # [B,E,N]
    oh_col = jax.nn.one_hot(col, N, dtype=jnp.float32)              # [B,E,N]
    deg = jnp.maximum(jnp.sum(oh_col, axis=1), 1.0)                 # [B,N]
    inv_deg = (1.0 / deg)[:, :, None]                               # [B,N,1] f32
    scat01 = jnp.swapaxes(oh_col, 1, 2)                             # [B,N,E] 0/1

    # init MLPs: BN folded; rand-chunk matmul + folded b1 precomputed in f32
    # (fuses with the encode() XLA glue; removes two K=16 MXU passes per graph)
    ni_w1s, ni_b1, ni_w2, ni_b2 = _fold_bn(params["node_init"])
    ei_w1s, ei_b1, ei_w2, ei_b2 = _fold_bn(params["edge_init"])
    pre_x = jnp.einsum("bnr,rh->bnh", rand_x, ni_w1s[1]) + ni_b1    # [B,N,H] f32
    pre_e = jnp.einsum("ber,rh->beh", rand_edge, ei_w1s[1]) + ei_b1  # [B,E,H] f32

    ins = [x_enc.astype(BF), e_enc.astype(BF), pre_x, pre_e,
           oh_row.astype(BF), oh_col.astype(BF), scat01.astype(BF), inv_deg,
           ni_w1s[0].astype(BF), ni_w2.astype(BF), ni_b2,
           ei_w1s[0].astype(BF), ei_w2.astype(BF), ei_b2]
    n_graph_ins = 8

    chunk_counts = []
    for name in ("edge_model", "node_mlp1", "node_mlp2"):
        w1s, b1, w2, b2 = _fold_bn(params[name])
        if FUSE_FIRST_LAYER_K:
            w1_list = [jnp.concatenate(w1s, axis=0).astype(BF)]     # K-fused
        else:
            w1_list = [w.astype(BF) for w in w1s]                   # K=128 chunks
        chunk_counts.append(len(w1_list))
        ins += w1_list + [b1, w2.astype(BF), b2]

    def graph_spec(a):
        # per-graph block: squeeze the batch dim, full N/E/H extents
        nd = a.ndim
        return pl.BlockSpec((None,) + a.shape[1:],
                            lambda b, _nd=nd: (b,) + (0,) * (_nd - 1))

    def resident_spec(a):
        # constant block index -> DMA'd once, VMEM-resident across grid steps
        nd = a.ndim
        return pl.BlockSpec(a.shape, lambda b, _nd=nd: (0,) * _nd)

    in_specs = ([graph_spec(a) for a in ins[:n_graph_ins]]
                + [resident_spec(a) for a in ins[n_graph_ins:]])

    x_out, e_out = pl.pallas_call(
        _make_kernel(depth, tuple(chunk_counts)),
        out_shape=(jax.ShapeDtypeStruct((B, N, H), jnp.float32),
                   jax.ShapeDtypeStruct((B, E, H), jnp.float32)),
        grid=(B,),
        in_specs=in_specs,
        out_specs=(pl.BlockSpec((None, N, H), lambda b: (b, 0, 0)),
                   pl.BlockSpec((None, E, H), lambda b: (b, 0, 0))),
        compiler_params=pltpu.CompilerParams(
            dimension_semantics=("parallel",),       # shards graphs across TCs
            vmem_limit_bytes=32 * 1024 * 1024),      # explicit budget (v7x-safe)
    )(*ins)
    return x_out, e_out


# ------------------------ parameters (deterministic) ------------------------
def init_mlp_params(key, in_splits, hidden, out_dim, dtype=jnp.float32):
    """GeomolMLP(num_layers=2): Linear(in,h) -> BN(eval) -> ReLU -> Linear(h,out).
       Non-trivial BN running stats / affine so the host-side fold is exercised."""
    n = len(in_splits)
    ks = jax.random.split(key, n + 7)
    fan_in = float(sum(in_splits))
    w1s = [jax.random.normal(ks[i], (d, hidden), dtype) * fan_in ** -0.5
           for i, d in enumerate(in_splits)]
    b1 = 0.01 * jax.random.normal(ks[n], (1, hidden), dtype)
    gamma = 1.0 + 0.1 * jax.random.normal(ks[n + 1], (1, hidden), dtype)
    beta = 0.1 * jax.random.normal(ks[n + 2], (1, hidden), dtype)
    run_mean = 0.1 * jax.random.normal(ks[n + 3], (1, hidden), dtype)
    run_var = jax.random.uniform(ks[n + 4], (1, hidden), dtype, 0.5, 1.5)
    w2 = jax.random.normal(ks[n + 5], (hidden, out_dim), dtype) * hidden ** -0.5
    b2 = 0.01 * jax.random.normal(ks[n + 6], (1, out_dim), dtype)
    return dict(w1s=w1s, b1=b1, gamma=gamma, beta=beta,
                run_mean=run_mean, run_var=run_var, w2=w2, b2=b2)


def init_embeddings(key, vocab_dims, hidden):
    ks = jax.random.split(key, len(vocab_dims))
    return [0.1 * jax.random.normal(k, (v, hidden), jnp.float32)
            for k, v in zip(ks, vocab_dims)]


def init_model_params(key, hidden, rand_dim):
    ks = jax.random.split(key, 7)
    return dict(
        atom_emb=init_embeddings(ks[0], ATOM_FEATURE_DIMS, hidden),
        bond_emb=init_embeddings(ks[1], BOND_FEATURE_DIMS, hidden),
        node_init=init_mlp_params(ks[2], [hidden, rand_dim], hidden, hidden),
        edge_init=init_mlp_params(ks[3], [hidden, rand_dim], hidden, hidden),
        edge_model=init_mlp_params(ks[4], [hidden, hidden, hidden], hidden, hidden),
        node_mlp1=init_mlp_params(ks[5], [hidden, hidden], hidden, hidden),
        node_mlp2=init_mlp_params(ks[6], [hidden, hidden], hidden, hidden),
    )


# --------------------------- pure-JAX f32 reference -------------------------
def _mlp2_ref(xs, p):
    xcat = jnp.concatenate(xs, axis=-1)
    w1 = jnp.concatenate(p["w1s"], axis=0)
    h = xcat @ w1 + p["b1"]
    h = (h - p["run_mean"]) / jnp.sqrt(p["run_var"] + BN_EPS) * p["gamma"] + p["beta"]
    h = jnp.maximum(h, 0.0)
    return h @ p["w2"] + p["b2"]


def _scatter_mean_ref(msg, col, n):
    summ = jnp.zeros((n, msg.shape[1]), msg.dtype).at[col].add(msg)
    cnt = jnp.zeros((n, 1), msg.dtype).at[col].add(1.0)
    return summ / jnp.maximum(cnt, 1.0)


def geomol_forward_ref(params, x_int, edge_index, e_int, rand_x, rand_edge, depth=DEPTH):
    """Single-graph (unbatched) reference."""
    x = encode(x_int, params["atom_emb"])
    e = encode(e_int, params["bond_emb"])
    x = _mlp2_ref([x, rand_x], params["node_init"])
    e = _mlp2_ref([e, rand_edge], params["edge_init"])
    row, col = edge_index[0], edge_index[1]
    n = x.shape[0]
    for _ in range(depth):
        e = _mlp2_ref([x[row], x[col], e], params["edge_model"])
        msg = _mlp2_ref([x[row], e], params["node_mlp1"])
        agg = _scatter_mean_ref(msg, col, n)
        x = _mlp2_ref([x, agg], params["node_mlp2"])
    return x, e


# -------------------------------- main --------------------------------------
if __name__ == "__main__":
    key = jax.random.PRNGKey(0)
    k_par, k_x, k_e, k_ei, k_rx, k_re = jax.random.split(key, 6)

    params = init_model_params(k_par, HIDDEN_DIM, RANDOM_VEC_DIM)

    # integer atom / bond features within their OGB vocab ranges, per graph
    x_int = jnp.stack(
        [jax.random.randint(jax.random.fold_in(k_x, i), (BATCH, N_NODES), 0, v)
         for i, v in enumerate(ATOM_FEATURE_DIMS)], axis=-1).astype(jnp.int32)
    e_int = jnp.stack(
        [jax.random.randint(jax.random.fold_in(k_e, i), (BATCH, N_EDGES), 0, v)
         for i, v in enumerate(BOND_FEATURE_DIMS)], axis=-1).astype(jnp.int32)
    edge_index = jax.random.randint(
        k_ei, (BATCH, 2, N_EDGES), 0, N_NODES).astype(jnp.int32)
    rand_x = jax.random.normal(k_rx, (BATCH, N_NODES, RANDOM_VEC_DIM), jnp.float32)
    rand_edge = jax.random.normal(k_re, (BATCH, N_EDGES, RANDOM_VEC_DIM), jnp.float32)

    fwd = jax.jit(geomol_forward, static_argnames=("depth",))
    x_out, e_out = fwd(params, x_int, edge_index, e_int, rand_x, rand_edge)
    jax.block_until_ready((x_out, e_out))

    assert x_out.shape == (BATCH, N_NODES, HIDDEN_DIM)
    assert e_out.shape == (BATCH, N_EDGES, HIDDEN_DIM)

    # correctness vs. pure-JAX f32 reference (graph by graph); tolerance reflects
    # the intentional bf16 MXU-operand precision (f32 accumulation) in the kernel.
    tol = 5e-2 if MATMUL_DTYPE == jnp.bfloat16 else 1e-3
    for b in range(BATCH):
        x_ref, e_ref = geomol_forward_ref(params, x_int[b], edge_index[b],
                                          e_int[b], rand_x[b], rand_edge[b])
        x_err = jnp.max(jnp.abs(x_out[b] - x_ref)) / (jnp.max(jnp.abs(x_ref)) + 1e-6)
        e_err = jnp.max(jnp.abs(e_out[b] - e_ref)) / (jnp.max(jnp.abs(e_ref)) + 1e-6)
        assert float(x_err) < tol, (b, float(x_err))
        assert float(e_err) < tol, (b, float(e_err))

    print("KERNEL_OK")
</pallas_src>

<mosaic_0001>
module attributes {stable_mosaic.version = 11 : i64} {
  func.func @kernel(%arg0: i32, %arg1: memref<1x16x128xbf16, #tpu.memory_space<vmem>>, %arg2: memref<1x32x128xbf16, #tpu.memory_space<vmem>>, %arg3: memref<1x16x128xf32, #tpu.memory_space<vmem>>, %arg4: memref<1x32x128xf32, #tpu.memory_space<vmem>>, %arg5: memref<1x32x16xbf16, #tpu.memory_space<vmem>>, %arg6: memref<1x32x16xbf16, #tpu.memory_space<vmem>>, %arg7: memref<1x16x32xbf16, #tpu.memory_space<vmem>>, %arg8: memref<1x16x1xf32, #tpu.memory_space<vmem>>, %arg9: memref<128x128xbf16, #tpu.memory_space<vmem>>, %arg10: memref<128x128xbf16, #tpu.memory_space<vmem>>, %arg11: memref<1x128xf32, #tpu.memory_space<vmem>>, %arg12: memref<128x128xbf16, #tpu.memory_space<vmem>>, %arg13: memref<128x128xbf16, #tpu.memory_space<vmem>>, %arg14: memref<1x128xf32, #tpu.memory_space<vmem>>, %arg15: memref<384x128xbf16, #tpu.memory_space<vmem>>, %arg16: memref<1x128xf32, #tpu.memory_space<vmem>>, %arg17: memref<128x128xbf16, #tpu.memory_space<vmem>>, %arg18: memref<1x128xf32, #tpu.memory_space<vmem>>, %arg19: memref<256x128xbf16, #tpu.memory_space<vmem>>, %arg20: memref<1x128xf32, #tpu.memory_space<vmem>>, %arg21: memref<128x128xbf16, #tpu.memory_space<vmem>>, %arg22: memref<1x128xf32, #tpu.memory_space<vmem>>, %arg23: memref<256x128xbf16, #tpu.memory_space<vmem>>, %arg24: memref<1x128xf32, #tpu.memory_space<vmem>>, %arg25: memref<128x128xbf16, #tpu.memory_space<vmem>>, %arg26: memref<1x128xf32, #tpu.memory_space<vmem>>, %arg27: memref<1x16x128xf32, #tpu.memory_space<vmem>>, %arg28: memref<1x32x128xf32, #tpu.memory_space<vmem>>) attributes {dimension_semantics = [#tpu.dimension_semantics<parallel>], iteration_bounds = array<i64: 4>, scalar_prefetch = 0 : i64, scratch_operands = 0 : i64, tpu.core_type = #tpu.core_type<tc>, window_params = [{transform_indices = @transform_0, window_bounds = array<i64: 1, 16, 128>}, {transform_indices = @transform_1, window_bounds = array<i64: 1, 32, 128>}, {transform_indices = @transform_2, window_bounds = array<i64: 1, 16, 128>}, {transform_indices = @transform_3, window_bounds = array<i64: 1, 32, 128>}, {transform_indices = @transform_4, window_bounds = array<i64: 1, 32, 16>}, {transform_indices = @transform_5, window_bounds = array<i64: 1, 32, 16>}, {transform_indices = @transform_6, window_bounds = array<i64: 1, 16, 32>}, {transform_indices = @transform_7, window_bounds = array<i64: 1, 16, 1>}, {pipeline_mode = #tpu.pipeline_mode<synchronous>, transform_indices = @transform_8, window_bounds = array<i64: 128, 128>}, {pipeline_mode = #tpu.pipeline_mode<synchronous>, transform_indices = @transform_9, window_bounds = array<i64: 128, 128>}, {pipeline_mode = #tpu.pipeline_mode<synchronous>, transform_indices = @transform_10, window_bounds = array<i64: 1, 128>}, {pipeline_mode = #tpu.pipeline_mode<synchronous>, transform_indices = @transform_11, window_bounds = array<i64: 128, 128>}, {pipeline_mode = #tpu.pipeline_mode<synchronous>, transform_indices = @transform_12, window_bounds = array<i64: 128, 128>}, {pipeline_mode = #tpu.pipeline_mode<synchronous>, transform_indices = @transform_13, window_bounds = array<i64: 1, 128>}, {pipeline_mode = #tpu.pipeline_mode<synchronous>, transform_indices = @transform_14, window_bounds = array<i64: 384, 128>}, {pipeline_mode = #tpu.pipeline_mode<synchronous>, transform_indices = @transform_15, window_bounds = array<i64: 1, 128>}, {pipeline_mode = #tpu.pipeline_mode<synchronous>, transform_indices = @transform_16, window_bounds = array<i64: 128, 128>}, {pipeline_mode = #tpu.pipeline_mode<synchronous>, transform_indices = @transform_17, window_bounds = array<i64: 1, 128>}, {pipeline_mode = #tpu.pipeline_mode<synchronous>, transform_indices = @transform_18, window_bounds = array<i64: 256, 128>}, {pipeline_mode = #tpu.pipeline_mode<synchronous>, transform_indices = @transform_19, window_bounds = array<i64: 1, 128>}, {pipeline_mode = #tpu.pipeline_mode<synchronous>, transform_indices = @transform_20, window_bounds = array<i64: 128, 128>}, {pipeline_mode = #tpu.pipeline_mode<synchronous>, transform_indices = @transform_21, window_bounds = array<i64: 1, 128>}, {pipeline_mode = #tpu.pipeline_mode<synchronous>, transform_indices = @transform_22, window_bounds = array<i64: 256, 128>}, {pipeline_mode = #tpu.pipeline_mode<synchronous>, transform_indices = @transform_23, window_bounds = array<i64: 1, 128>}, {pipeline_mode = #tpu.pipeline_mode<synchronous>, transform_indices = @transform_24, window_bounds = array<i64: 128, 128>}, {pipeline_mode = #tpu.pipeline_mode<synchronous>, transform_indices = @transform_25, window_bounds = array<i64: 1, 128>}, {transform_indices = @transform_26, window_bounds = array<i64: 1, 16, 128>}, {transform_indices = @transform_27, window_bounds = array<i64: 1, 32, 128>}]} {
    %c0 = arith.constant 0 : index
    %c0_0 = arith.constant 0 : index
    %c0_1 = arith.constant 0 : index
    %0 = vector.load %arg1[%c0, %c0_0, %c0_1] : memref<1x16x128xbf16, #tpu.memory_space<vmem>>, vector<1x16x128xbf16>
    %1 = vector.shape_cast %0 : vector<1x16x128xbf16> to vector<16x128xbf16>
    %c0_2 = arith.constant 0 : index
    %c0_3 = arith.constant 0 : index
    %2 = vector.load %arg9[%c0_2, %c0_3] : memref<128x128xbf16, #tpu.memory_space<vmem>>, vector<128x128xbf16>
    %cst = arith.constant dense<0.000000e+00> : vector<16x128xf32>
    %3 = tpu.matmul %1, %2, %cst {dimension_numbers = #tpu.dot_dimension_numbers<[1], [0], [0], [1], [0, 0, 1, 1], [], []>} : vector<16x128xbf16>, vector<128x128xbf16>, vector<16x128xf32> -> vector<16x128xf32>
    %c0_4 = arith.constant 0 : index
    %c0_5 = arith.constant 0 : index
    %c0_6 = arith.constant 0 : index
    %4 = vector.load %arg3[%c0_4, %c0_5, %c0_6] : memref<1x16x128xf32, #tpu.memory_space<vmem>>, vector<1x16x128xf32>
    %5 = vector.shape_cast %4 : vector<1x16x128xf32> to vector<16x128xf32>
    %6 = arith.addf %3, %5 : vector<16x128xf32>
    %cst_7 = arith.constant 0.000000e+00 : f32
    %7 = vector.broadcast %cst_7 : f32 to vector<16x128xf32>
    %8 = arith.maximumf %6, %7 : vector<16x128xf32>
    %9 = arith.truncf %8 : vector<16x128xf32> to vector<16x128xbf16>
    %c0_8 = arith.constant 0 : index
    %c0_9 = arith.constant 0 : index
    %10 = vector.load %arg10[%c0_8, %c0_9] : memref<128x128xbf16, #tpu.memory_space<vmem>>, vector<128x128xbf16>
    %cst_10 = arith.constant dense<0.000000e+00> : vector<16x128xf32>
    %11 = tpu.matmul %9, %10, %cst_10 {dimension_numbers = #tpu.dot_dimension_numbers<[1], [0], [0], [1], [0, 0, 1, 1], [], []>} : vector<16x128xbf16>, vector<128x128xbf16>, vector<16x128xf32> -> vector<16x128xf32>
    %c0_11 = arith.constant 0 : index
    %c0_12 = arith.constant 0 : index
    %12 = vector.load %arg11[%c0_11, %c0_12] : memref<1x128xf32, #tpu.memory_space<vmem>>, vector<1x128xf32>
    %13 = vector.broadcast %12 : vector<1x128xf32> to vector<16x128xf32>
    %14 = arith.addf %11, %13 : vector<16x128xf32>
    %c0_13 = arith.constant 0 : index
    %c0_14 = arith.constant 0 : index
    %c0_15 = arith.constant 0 : index
    %15 = vector.load %arg2[%c0_13, %c0_14, %c0_15] : memref<1x32x128xbf16, #tpu.memory_space<vmem>>, vector<1x32x128xbf16>
    %16 = vector.shape_cast %15 : vector<1x32x128xbf16> to vector<32x128xbf16>
    %c0_16 = arith.constant 0 : index
    %c0_17 = arith.constant 0 : index
    %17 = vector.load %arg12[%c0_16, %c0_17] : memref<128x128xbf16, #tpu.memory_space<vmem>>, vector<128x128xbf16>
    %cst_18 = arith.constant dense<0.000000e+00> : vector<32x128xf32>
    %18 = tpu.matmul %16, %17, %cst_18 {dimension_numbers = #tpu.dot_dimension_numbers<[1], [0], [0], [1], [0, 0, 1, 1], [], []>} : vector<32x128xbf16>, vector<128x128xbf16>, vector<32x128xf32> -> vector<32x128xf32>
    %c0_19 = arith.constant 0 : index
    %c0_20 = arith.constant 0 : index
    %c0_21 = arith.constant 0 : index
    %19 = vector.load %arg4[%c0_19, %c0_20, %c0_21] : memref<1x32x128xf32, #tpu.memory_space<vmem>>, vector<1x32x128xf32>
    %20 = vector.shape_cast %19 : vector<1x32x128xf32> to vector<32x128xf32>
    %21 = arith.addf %18, %20 : vector<32x128xf32>
    %cst_22 = arith.constant 0.000000e+00 : f32
    %22 = vector.broadcast %cst_22 : f32 to vector<32x128xf32>
    %23 = arith.maximumf %21, %22 : vector<32x128xf32>
    %24 = arith.truncf %23 : vector<32x128xf32> to vector<32x128xbf16>
    %c0_23 = arith.constant 0 : index
    %c0_24 = arith.constant 0 : index
    %25 = vector.load %arg13[%c0_23, %c0_24] : memref<128x128xbf16, #tpu.memory_space<vmem>>, vector<128x128xbf16>
    %cst_25 = arith.constant dense<0.000000e+00> : vector<32x128xf32>
    %26 = tpu.matmul %24, %25, %cst_25 {dimension_numbers = #tpu.dot_dimension_numbers<[1], [0], [0], [1], [0, 0, 1, 1], [], []>} : vector<32x128xbf16>, vector<128x128xbf16>, vector<32x128xf32> -> vector<32x128xf32>
    %c0_26 = arith.constant 0 : index
    %c0_27 = arith.constant 0 : index
    %27 = vector.load %arg14[%c0_26, %c0_27] : memref<1x128xf32, #tpu.memory_space<vmem>>, vector<1x128xf32>
    %28 = vector.broadcast %27 : vector<1x128xf32> to vector<32x128xf32>
    %29 = arith.addf %26, %28 : vector<32x128xf32>
    %c0_28 = arith.constant 0 : index
    %c0_29 = arith.constant 0 : index
    %c0_30 = arith.constant 0 : index
    %30 = vector.load %arg5[%c0_28, %c0_29, %c0_30] : memref<1x32x16xbf16, #tpu.memory_space<vmem>>, vector<1x32x16xbf16>
    %31 = vector.shape_cast %30 : vector<1x32x16xbf16> to vector<32x16xbf16>
    %c0_31 = arith.constant 0 : index
    %c0_32 = arith.constant 0 : index
    %c0_33 = arith.constant 0 : index
    %32 = vector.load %arg6[%c0_31, %c0_32, %c0_33] : memref<1x32x16xbf16, #tpu.memory_space<vmem>>, vector<1x32x16xbf16>
    %33 = vector.shape_cast %32 : vector<1x32x16xbf16> to vector<32x16xbf16>
    %c0_34 = arith.constant 0 : index
    %c0_35 = arith.constant 0 : index
    %c0_36 = arith.constant 0 : index
    %34 = vector.load %arg7[%c0_34, %c0_35, %c0_36] : memref<1x16x32xbf16, #tpu.memory_space<vmem>>, vector<1x16x32xbf16>
    %35 = vector.shape_cast %34 : vector<1x16x32xbf16> to vector<16x32xbf16>
    %c0_37 = arith.constant 0 : index
    %c0_38 = arith.constant 0 : index
    %c0_39 = arith.constant 0 : index
    %36 = vector.load %arg8[%c0_37, %c0_38, %c0_39] : memref<1x16x1xf32, #tpu.memory_space<vmem>>, vector<1x16x1xf32>
    %37 = vector.shape_cast %36 : vector<1x16x1xf32> to vector<16x1xf32>
    %c0_40 = arith.constant 0 : index
    %c0_41 = arith.constant 0 : index
    %38 = vector.load %arg16[%c0_40, %c0_41] : memref<1x128xf32, #tpu.memory_space<vmem>>, vector<1x128xf32>
    %c0_42 = arith.constant 0 : index
    %c0_43 = arith.constant 0 : index
    %39 = vector.load %arg18[%c0_42, %c0_43] : memref<1x128xf32, #tpu.memory_space<vmem>>, vector<1x128xf32>
    %c0_44 = arith.constant 0 : index
    %c0_45 = arith.constant 0 : index
    %40 = vector.load %arg20[%c0_44, %c0_45] : memref<1x128xf32, #tpu.memory_space<vmem>>, vector<1x128xf32>
    %c0_46 = arith.constant 0 : index
    %c0_47 = arith.constant 0 : index
    %41 = vector.load %arg22[%c0_46, %c0_47] : memref<1x128xf32, #tpu.memory_space<vmem>>, vector<1x128xf32>
    %c0_48 = arith.constant 0 : index
    %c0_49 = arith.constant 0 : index
    %42 = vector.load %arg24[%c0_48, %c0_49] : memref<1x128xf32, #tpu.memory_space<vmem>>, vector<1x128xf32>
    %c0_50 = arith.constant 0 : index
    %c0_51 = arith.constant 0 : index
    %43 = vector.load %arg26[%c0_50, %c0_51] : memref<1x128xf32, #tpu.memory_space<vmem>>, vector<1x128xf32>
    %44 = arith.truncf %14 : vector<16x128xf32> to vector<16x128xbf16>
    %45 = arith.truncf %29 : vector<32x128xf32> to vector<32x128xbf16>
    %cst_52 = arith.constant dense<0.000000e+00> : vector<32x128xf32>
    %46 = tpu.matmul %31, %44, %cst_52 {dimension_numbers = #tpu.dot_dimension_numbers<[1], [0], [0], [1], [0, 0, 1, 1], [], []>} : vector<32x16xbf16>, vector<16x128xbf16>, vector<32x128xf32> -> vector<32x128xf32>
    %47 = arith.truncf %46 : vector<32x128xf32> to vector<32x128xbf16>
    %cst_53 = arith.constant dense<0.000000e+00> : vector<32x128xf32>
    %48 = tpu.matmul %33, %44, %cst_53 {dimension_numbers = #tpu.dot_dimension_numbers<[1], [0], [0], [1], [0, 0, 1, 1], [], []>} : vector<32x16xbf16>, vector<16x128xbf16>, vector<32x128xf32> -> vector<32x128xf32>
    %49 = arith.truncf %48 : vector<32x128xf32> to vector<32x128xbf16>
    %50 = tpu.concatenate %47, %49, %45 in 1 : vector<32x128xbf16>, vector<32x128xbf16>, vector<32x128xbf16> -> vector<32x384xbf16>
    %c0_54 = arith.constant 0 : index
    %c0_55 = arith.constant 0 : index
    %51 = vector.load %arg15[%c0_54, %c0_55] : memref<384x128xbf16, #tpu.memory_space<vmem>>, vector<384x128xbf16>
    %cst_56 = arith.constant dense<0.000000e+00> : vector<32x128xf32>
    %52 = tpu.matmul %50, %51, %cst_56 {dimension_numbers = #tpu.dot_dimension_numbers<[1], [0], [0], [1], [0, 0, 1, 1], [], []>} : vector<32x384xbf16>, vector<384x128xbf16>, vector<32x128xf32> -> vector<32x128xf32>
    %53 = vector.broadcast %38 : vector<1x128xf32> to vector<32x128xf32>
    %54 = arith.addf %52, %53 : vector<32x128xf32>
    %cst_57 = arith.constant 0.000000e+00 : f32
    %55 = vector.broadcast %cst_57 : f32 to vector<32x128xf32>
    %56 = arith.maximumf %54, %55 : vector<32x128xf32>
    %57 = arith.truncf %56 : vector<32x128xf32> to vector<32x128xbf16>
    %c0_58 = arith.constant 0 : index
    %c0_59 = arith.constant 0 : index
    %58 = vector.load %arg17[%c0_58, %c0_59] : memref<128x128xbf16, #tpu.memory_space<vmem>>, vector<128x128xbf16>
    %cst_60 = arith.constant dense<0.000000e+00> : vector<32x128xf32>
    %59 = tpu.matmul %57, %58, %cst_60 {dimension_numbers = #tpu.dot_dimension_numbers<[1], [0], [0], [1], [0, 0, 1, 1], [], []>} : vector<32x128xbf16>, vector<128x128xbf16>, vector<32x128xf32> -> vector<32x128xf32>
    %60 = vector.broadcast %39 : vector<1x128xf32> to vector<32x128xf32>
    %61 = arith.addf %59, %60 : vector<32x128xf32>
    %62 = arith.truncf %61 : vector<32x128xf32> to vector<32x128xbf16>
    %63 = tpu.concatenate %47, %62 in 1 : vector<32x128xbf16>, vector<32x128xbf16> -> vector<32x256xbf16>
    %c0_61 = arith.constant 0 : index
    %c0_62 = arith.constant 0 : index
    %64 = vector.load %arg19[%c0_61, %c0_62] : memref<256x128xbf16, #tpu.memory_space<vmem>>, vector<256x128xbf16>
    %cst_63 = arith.constant dense<0.000000e+00> : vector<32x128xf32>
    %65 = tpu.matmul %63, %64, %cst_63 {dimension_numbers = #tpu.dot_dimension_numbers<[1], [0], [0], [1], [0, 0, 1, 1], [], []>} : vector<32x256xbf16>, vector<256x128xbf16>, vector<32x128xf32> -> vector<32x128xf32>
    %66 = vector.broadcast %40 : vector<1x128xf32> to vector<32x128xf32>
    %67 = arith.addf %65, %66 : vector<32x128xf32>
    %cst_64 = arith.constant 0.000000e+00 : f32
    %68 = vector.broadcast %cst_64 : f32 to vector<32x128xf32>
    %69 = arith.maximumf %67, %68 : vector<32x128xf32>
    %70 = arith.truncf %69 : vector<32x128xf32> to vector<32x128xbf16>
    %c0_65 = arith.constant 0 : index
    %c0_66 = arith.constant 0 : index
    %71 = vector.load %arg21[%c0_65, %c0_66] : memref<128x128xbf16, #tpu.memory_space<vmem>>, vector<128x128xbf16>
    %cst_67 = arith.constant dense<0.000000e+00> : vector<32x128xf32>
    %72 = tpu.matmul %70, %71, %cst_67 {dimension_numbers = #tpu.dot_dimension_numbers<[1], [0], [0], [1], [0, 0, 1, 1], [], []>} : vector<32x128xbf16>, vector<128x128xbf16>, vector<32x128xf32> -> vector<32x128xf32>
    %73 = vector.broadcast %41 : vector<1x128xf32> to vector<32x128xf32>
    %74 = arith.addf %72, %73 : vector<32x128xf32>
    %75 = arith.truncf %74 : vector<32x128xf32> to vector<32x128xbf16>
    %cst_68 = arith.constant dense<0.000000e+00> : vector<16x128xf32>
    %76 = tpu.matmul %35, %75, %cst_68 {dimension_numbers = #tpu.dot_dimension_numbers<[1], [0], [0], [1], [0, 0, 1, 1], [], []>} : vector<16x32xbf16>, vector<32x128xbf16>, vector<16x128xf32> -> vector<16x128xf32>
    %77 = vector.broadcast %37 : vector<16x1xf32> to vector<16x128xf32>
    %78 = arith.mulf %76, %77 : vector<16x128xf32>
    %79 = arith.truncf %78 : vector<16x128xf32> to vector<16x128xbf16>
    %80 = tpu.concatenate %44, %79 in 1 : vector<16x128xbf16>, vector<16x128xbf16> -> vector<16x256xbf16>
    %c0_69 = arith.constant 0 : index
    %c0_70 = arith.constant 0 : index
    %81 = vector.load %arg23[%c0_69, %c0_70] : memref<256x128xbf16, #tpu.memory_space<vmem>>, vector<256x128xbf16>
    %cst_71 = arith.constant dense<0.000000e+00> : vector<16x128xf32>
    %82 = tpu.matmul %80, %81, %cst_71 {dimension_numbers = #tpu.dot_dimension_numbers<[1], [0], [0], [1], [0, 0, 1, 1], [], []>} : vector<16x256xbf16>, vector<256x128xbf16>, vector<16x128xf32> -> vector<16x128xf32>
    %83 = vector.broadcast %42 : vector<1x128xf32> to vector<16x128xf32>
    %84 = arith.addf %82, %83 : vector<16x128xf32>
    %cst_72 = arith.constant 0.000000e+00 : f32
    %85 = vector.broadcast %cst_72 : f32 to vector<16x128xf32>
    %86 = arith.maximumf %84, %85 : vector<16x128xf32>
    %87 = arith.truncf %86 : vector<16x128xf32> to vector<16x128xbf16>
    %c0_73 = arith.constant 0 : index
    %c0_74 = arith.constant 0 : index
    %88 = vector.load %arg25[%c0_73, %c0_74] : memref<128x128xbf16, #tpu.memory_space<vmem>>, vector<128x128xbf16>
    %cst_75 = arith.constant dense<0.000000e+00> : vector<16x128xf32>
    %89 = tpu.matmul %87, %88, %cst_75 {dimension_numbers = #tpu.dot_dimension_numbers<[1], [0], [0], [1], [0, 0, 1, 1], [], []>} : vector<16x128xbf16>, vector<128x128xbf16>, vector<16x128xf32> -> vector<16x128xf32>
    %90 = vector.broadcast %43 : vector<1x128xf32> to vector<16x128xf32>
    %91 = arith.addf %89, %90 : vector<16x128xf32>
    %92 = arith.truncf %91 : vector<16x128xf32> to vector<16x128xbf16>
    %93 = arith.truncf %61 : vector<32x128xf32> to vector<32x128xbf16>
    %cst_76 = arith.constant dense<0.000000e+00> : vector<32x128xf32>
    %94 = tpu.matmul %31, %92, %cst_76 {dimension_numbers = #tpu.dot_dimension_numbers<[1], [0], [0], [1], [0, 0, 1, 1], [], []>} : vector<32x16xbf16>, vector<16x128xbf16>, vector<32x128xf32> -> vector<32x128xf32>
    %95 = arith.truncf %94 : vector<32x128xf32> to vector<32x128xbf16>
    %cst_77 = arith.constant dense<0.000000e+00> : vector<32x128xf32>
    %96 = tpu.matmul %33, %92, %cst_77 {dimension_numbers = #tpu.dot_dimension_numbers<[1], [0], [0], [1], [0, 0, 1, 1], [], []>} : vector<32x16xbf16>, vector<16x128xbf16>, vector<32x128xf32> -> vector<32x128xf32>
    %97 = arith.truncf %96 : vector<32x128xf32> to vector<32x128xbf16>
    %98 = tpu.concatenate %95, %97, %93 in 1 : vector<32x128xbf16>, vector<32x128xbf16>, vector<32x128xbf16> -> vector<32x384xbf16>
    %c0_78 = arith.constant 0 : index
    %c0_79 = arith.constant 0 : index
    %99 = vector.load %arg15[%c0_78, %c0_79] : memref<384x128xbf16, #tpu.memory_space<vmem>>, vector<384x128xbf16>
    %cst_80 = arith.constant dense<0.000000e+00> : vector<32x128xf32>
    %100 = tpu.matmul %98, %99, %cst_80 {dimension_numbers = #tpu.dot_dimension_numbers<[1], [0], [0], [1], [0, 0, 1, 1], [], []>} : vector<32x384xbf16>, vector<384x128xbf16>, vector<32x128xf32> -> vector<32x128xf32>
    %101 = vector.broadcast %38 : vector<1x128xf32> to vector<32x128xf32>
    %102 = arith.addf %100, %101 : vector<32x128xf32>
    %cst_81 = arith.constant 0.000000e+00 : f32
    %103 = vector.broadcast %cst_81 : f32 to vector<32x128xf32>
    %104 = arith.maximumf %102, %103 : vector<32x128xf32>
    %105 = arith.truncf %104 : vector<32x128xf32> to vector<32x128xbf16>
    %c0_82 = arith.constant 0 : index
    %c0_83 = arith.constant 0 : index
    %106 = vector.load %arg17[%c0_82, %c0_83] : memref<128x128xbf16, #tpu.memory_space<vmem>>, vector<128x128xbf16>
    %cst_84 = arith.constant dense<0.000000e+00> : vector<32x128xf32>
    %107 = tpu.matmul %105, %106, %cst_84 {dimension_numbers = #tpu.dot_dimension_numbers<[1], [0], [0], [1], [0, 0, 1, 1], [], []>} : vector<32x128xbf16>, vector<128x128xbf16>, vector<32x128xf32> -> vector<32x128xf32>
    %108 = vector.broadcast %39 : vector<1x128xf32> to vector<32x128xf32>
    %109 = arith.addf %107, %108 : vector<32x128xf32>
    %110 = arith.truncf %109 : vector<32x128xf32> to vector<32x128xbf16>
    %111 = tpu.concatenate %95, %110 in 1 : vector<32x128xbf16>, vector<32x128xbf16> -> vector<32x256xbf16>
    %c0_85 = arith.constant 0 : index
    %c0_86 = arith.constant 0 : index
    %112 = vector.load %arg19[%c0_85, %c0_86] : memref<256x128xbf16, #tpu.memory_space<vmem>>, vector<256x128xbf16>
    %cst_87 = arith.constant dense<0.000000e+00> : vector<32x128xf32>
    %113 = tpu.matmul %111, %112, %cst_87 {dimension_numbers = #tpu.dot_dimension_numbers<[1], [0], [0], [1], [0, 0, 1, 1], [], []>} : vector<32x256xbf16>, vector<256x128xbf16>, vector<32x128xf32> -> vector<32x128xf32>
    %114 = vector.broadcast %40 : vector<1x128xf32> to vector<32x128xf32>
    %115 = arith.addf %113, %114 : vector<32x128xf32>
    %cst_88 = arith.constant 0.000000e+00 : f32
    %116 = vector.broadcast %cst_88 : f32 to vector<32x128xf32>
    %117 = arith.maximumf %115, %116 : vector<32x128xf32>
    %118 = arith.truncf %117 : vector<32x128xf32> to vector<32x128xbf16>
    %c0_89 = arith.constant 0 : index
    %c0_90 = arith.constant 0 : index
    %119 = vector.load %arg21[%c0_89, %c0_90] : memref<128x128xbf16, #tpu.memory_space<vmem>>, vector<128x128xbf16>
    %cst_91 = arith.constant dense<0.000000e+00> : vector<32x128xf32>
    %120 = tpu.matmul %118, %119, %cst_91 {dimension_numbers = #tpu.dot_dimension_numbers<[1], [0], [0], [1], [0, 0, 1, 1], [], []>} : vector<32x128xbf16>, vector<128x128xbf16>, vector<32x128xf32> -> vector<32x128xf32>
    %121 = vector.broadcast %41 : vector<1x128xf32> to vector<32x128xf32>
    %122 = arith.addf %120, %121 : vector<32x128xf32>
    %123 = arith.truncf %122 : vector<32x128xf32> to vector<32x128xbf16>
    %cst_92 = arith.constant dense<0.000000e+00> : vector<16x128xf32>
    %124 = tpu.matmul %35, %123, %cst_92 {dimension_numbers = #tpu.dot_dimension_numbers<[1], [0], [0], [1], [0, 0, 1, 1], [], []>} : vector<16x32xbf16>, vector<32x128xbf16>, vector<16x128xf32> -> vector<16x128xf32>
    %125 = vector.broadcast %37 : vector<16x1xf32> to vector<16x128xf32>
    %126 = arith.mulf %124, %125 : vector<16x128xf32>
    %127 = arith.truncf %126 : vector<16x128xf32> to vector<16x128xbf16>
    %128 = tpu.concatenate %92, %127 in 1 : vector<16x128xbf16>, vector<16x128xbf16> -> vector<16x256xbf16>
    %c0_93 = arith.constant 0 : index
    %c0_94 = arith.constant 0 : index
    %129 = vector.load %arg23[%c0_93, %c0_94] : memref<256x128xbf16, #tpu.memory_space<vmem>>, vector<256x128xbf16>
    %cst_95 = arith.constant dense<0.000000e+00> : vector<16x128xf32>
    %130 = tpu.matmul %128, %129, %cst_95 {dimension_numbers = #tpu.dot_dimension_numbers<[1], [0], [0], [1], [0, 0, 1, 1], [], []>} : vector<16x256xbf16>, vector<256x128xbf16>, vector<16x128xf32> -> vector<16x128xf32>
    %131 = vector.broadcast %42 : vector<1x128xf32> to vector<16x128xf32>
    %132 = arith.addf %130, %131 : vector<16x128xf32>
    %cst_96 = arith.constant 0.000000e+00 : f32
    %133 = vector.broadcast %cst_96 : f32 to vector<16x128xf32>
    %134 = arith.maximumf %132, %133 : vector<16x128xf32>
    %135 = arith.truncf %134 : vector<16x128xf32> to vector<16x128xbf16>
    %c0_97 = arith.constant 0 : index
    %c0_98 = arith.constant 0 : index
    %136 = vector.load %arg25[%c0_97, %c0_98] : memref<128x128xbf16, #tpu.memory_space<vmem>>, vector<128x128xbf16>
    %cst_99 = arith.constant dense<0.000000e+00> : vector<16x128xf32>
    %137 = tpu.matmul %135, %136, %cst_99 {dimension_numbers = #tpu.dot_dimension_numbers<[1], [0], [0], [1], [0, 0, 1, 1], [], []>} : vector<16x128xbf16>, vector<128x128xbf16>, vector<16x128xf32> -> vector<16x128xf32>
    %138 = vector.broadcast %43 : vector<1x128xf32> to vector<16x128xf32>
    %139 = arith.addf %137, %138 : vector<16x128xf32>
    %140 = arith.truncf %139 : vector<16x128xf32> to vector<16x128xbf16>
    %141 = arith.truncf %109 : vector<32x128xf32> to vector<32x128xbf16>
    %cst_100 = arith.constant dense<0.000000e+00> : vector<32x128xf32>
    %142 = tpu.matmul %31, %140, %cst_100 {dimension_numbers = #tpu.dot_dimension_numbers<[1], [0], [0], [1], [0, 0, 1, 1], [], []>} : vector<32x16xbf16>, vector<16x128xbf16>, vector<32x128xf32> -> vector<32x128xf32>
    %143 = arith.truncf %142 : vector<32x128xf32> to vector<32x128xbf16>
    %cst_101 = arith.constant dense<0.000000e+00> : vector<32x128xf32>
    %144 = tpu.matmul %33, %140, %cst_101 {dimension_numbers = #tpu.dot_dimension_numbers<[1], [0], [0], [1], [0, 0, 1, 1], [], []>} : vector<32x16xbf16>, vector<16x128xbf16>, vector<32x128xf32> -> vector<32x128xf32>
    %145 = arith.truncf %144 : vector<32x128xf32> to vector<32x128xbf16>
    %146 = tpu.concatenate %143, %145, %141 in 1 : vector<32x128xbf16>, vector<32x128xbf16>, vector<32x128xbf16> -> vector<32x384xbf16>
    %c0_102 = arith.constant 0 : index
    %c0_103 = arith.constant 0 : index
    %147 = vector.load %arg15[%c0_102, %c0_103] : memref<384x128xbf16, #tpu.memory_space<vmem>>, vector<384x128xbf16>
    %cst_104 = arith.constant dense<0.000000e+00> : vector<32x128xf32>
    %148 = tpu.matmul %146, %147, %cst_104 {dimension_numbers = #tpu.dot_dimension_numbers<[1], [0], [0], [1], [0, 0, 1, 1], [], []>} : vector<32x384xbf16>, vector<384x128xbf16>, vector<32x128xf32> -> vector<32x128xf32>
    %149 = vector.broadcast %38 : vector<1x128xf32> to vector<32x128xf32>
    %150 = arith.addf %148, %149 : vector<32x128xf32>
    %cst_105 = arith.constant 0.000000e+00 : f32
    %151 = vector.broadcast %cst_105 : f32 to vector<32x128xf32>
    %152 = arith.maximumf %150, %151 : vector<32x128xf32>
    %153 = arith.truncf %152 : vector<32x128xf32> to vector<32x128xbf16>
    %c0_106 = arith.constant 0 : index
    %c0_107 = arith.constant 0 : index
    %154 = vector.load %arg17[%c0_106, %c0_107] : memref<128x128xbf16, #tpu.memory_space<vmem>>, vector<128x128xbf16>
    %cst_108 = arith.constant dense<0.000000e+00> : vector<32x128xf32>
    %155 = tpu.matmul %153, %154, %cst_108 {dimension_numbers = #tpu.dot_dimension_numbers<[1], [0], [0], [1], [0, 0, 1, 1], [], []>} : vector<32x128xbf16>, vector<128x128xbf16>, vector<32x128xf32> -> vector<32x128xf32>
    %156 = vector.broadcast %39 : vector<1x128xf32> to vector<32x128xf32>
    %157 = arith.addf %155, %156 : vector<32x128xf32>
    %158 = arith.truncf %157 : vector<32x128xf32> to vector<32x128xbf16>
    %159 = tpu.concatenate %143, %158 in 1 : vector<32x128xbf16>, vector<32x128xbf16> -> vector<32x256xbf16>
    %c0_109 = arith.constant 0 : index
    %c0_110 = arith.constant 0 : index
    %160 = vector.load %arg19[%c0_109, %c0_110] : memref<256x128xbf16, #tpu.memory_space<vmem>>, vector<256x128xbf16>
    %cst_111 = arith.constant dense<0.000000e+00> : vector<32x128xf32>
    %161 = tpu.matmul %159, %160, %cst_111 {dimension_numbers = #tpu.dot_dimension_numbers<[1], [0], [0], [1], [0, 0, 1, 1], [], []>} : vector<32x256xbf16>, vector<256x128xbf16>, vector<32x128xf32> -> vector<32x128xf32>
    %162 = vector.broadcast %40 : vector<1x128xf32> to vector<32x128xf32>
    %163 = arith.addf %161, %162 : vector<32x128xf32>
    %cst_112 = arith.constant 0.000000e+00 : f32
    %164 = vector.broadcast %cst_112 : f32 to vector<32x128xf32>
    %165 = arith.maximumf %163, %164 : vector<32x128xf32>
    %166 = arith.truncf %165 : vector<32x128xf32> to vector<32x128xbf16>
    %c0_113 = arith.constant 0 : index
    %c0_114 = arith.constant 0 : index
    %167 = vector.load %arg21[%c0_113, %c0_114] : memref<128x128xbf16, #tpu.memory_space<vmem>>, vector<128x128xbf16>
    %cst_115 = arith.constant dense<0.000000e+00> : vector<32x128xf32>
    %168 = tpu.matmul %166, %167, %cst_115 {dimension_numbers = #tpu.dot_dimension_numbers<[1], [0], [0], [1], [0, 0, 1, 1], [], []>} : vector<32x128xbf16>, vector<128x128xbf16>, vector<32x128xf32> -> vector<32x128xf32>
    %169 = vector.broadcast %41 : vector<1x128xf32> to vector<32x128xf32>
    %170 = arith.addf %168, %169 : vector<32x128xf32>
    %171 = arith.truncf %170 : vector<32x128xf32> to vector<32x128xbf16>
    %cst_116 = arith.constant dense<0.000000e+00> : vector<16x128xf32>
    %172 = tpu.matmul %35, %171, %cst_116 {dimension_numbers = #tpu.dot_dimension_numbers<[1], [0], [0], [1], [0, 0, 1, 1], [], []>} : vector<16x32xbf16>, vector<32x128xbf16>, vector<16x128xf32> -> vector<16x128xf32>
    %173 = vector.broadcast %37 : vector<16x1xf32> to vector<16x128xf32>
    %174 = arith.mulf %172, %173 : vector<16x128xf32>
    %175 = arith.truncf %174 : vector<16x128xf32> to vector<16x128xbf16>
    %176 = tpu.concatenate %140, %175 in 1 : vector<16x128xbf16>, vector<16x128xbf16> -> vector<16x256xbf16>
    %c0_117 = arith.constant 0 : index
    %c0_118 = arith.constant 0 : index
    %177 = vector.load %arg23[%c0_117, %c0_118] : memref<256x128xbf16, #tpu.memory_space<vmem>>, vector<256x128xbf16>
    %cst_119 = arith.constant dense<0.000000e+00> : vector<16x128xf32>
    %178 = tpu.matmul %176, %177, %cst_119 {dimension_numbers = #tpu.dot_dimension_numbers<[1], [0], [0], [1], [0, 0, 1, 1], [], []>} : vector<16x256xbf16>, vector<256x128xbf16>, vector<16x128xf32> -> vector<16x128xf32>
    %179 = vector.broadcast %42 : vector<1x128xf32> to vector<16x128xf32>
    %180 = arith.addf %178, %179 : vector<16x128xf32>
    %cst_120 = arith.constant 0.000000e+00 : f32
    %181 = vector.broadcast %cst_120 : f32 to vector<16x128xf32>
    %182 = arith.maximumf %180, %181 : vector<16x128xf32>
    %183 = arith.truncf %182 : vector<16x128xf32> to vector<16x128xbf16>
    %c0_121 = arith.constant 0 : index
    %c0_122 = arith.constant 0 : index
    %184 = vector.load %arg25[%c0_121, %c0_122] : memref<128x128xbf16, #tpu.memory_space<vmem>>, vector<128x128xbf16>
    %cst_123 = arith.constant dense<0.000000e+00> : vector<16x128xf32>
    %185 = tpu.matmul %183, %184, %cst_123 {dimension_numbers = #tpu.dot_dimension_numbers<[1], [0], [0], [1], [0, 0, 1, 1], [], []>} : vector<16x128xbf16>, vector<128x128xbf16>, vector<16x128xf32> -> vector<16x128xf32>
    %186 = vector.broadcast %43 : vector<1x128xf32> to vector<16x128xf32>
    %187 = arith.addf %185, %186 : vector<16x128xf32>
    %c0_124 = arith.constant 0 : index
    %c0_125 = arith.constant 0 : index
    %c0_126 = arith.constant 0 : index
    %188 = vector.load %arg27[%c0_124, %c0_125, %c0_126] : memref<1x16x128xf32, #tpu.memory_space<vmem>>, vector<1x16x128xf32>
    %189 = vector.shape_cast %188 : vector<1x16x128xf32> to vector<16x128xf32>
    %190 = vector.shape_cast %187 : vector<16x128xf32> to vector<1x16x128xf32>
    tpu.vector_store %arg27[%c0_124, %c0_125, %c0_126], %190 {strides = array<i32>} : memref<1x16x128xf32, #tpu.memory_space<vmem>>, vector<1x16x128xf32>,
    %c0_127 = arith.constant 0 : index
    %c0_128 = arith.constant 0 : index
    %c0_129 = arith.constant 0 : index
    %191 = vector.load %arg28[%c0_127, %c0_128, %c0_129] : memref<1x32x128xf32, #tpu.memory_space<vmem>>, vector<1x32x128xf32>
    %192 = vector.shape_cast %191 : vector<1x32x128xf32> to vector<32x128xf32>
    %193 = vector.shape_cast %157 : vector<32x128xf32> to vector<1x32x128xf32>
    tpu.vector_store %arg28[%c0_127, %c0_128, %c0_129], %193 {strides = array<i32>} : memref<1x32x128xf32, #tpu.memory_space<vmem>>, vector<1x32x128xf32>,
    return
  }
  func.func @transform_0(%arg0: i32) -> (i32, i32, i32) {
    %c0_i32 = arith.constant 0 : i32
    %c0_i32_0 = arith.constant 0 : i32
    %c0_i32_1 = arith.constant 0 : i32
    return %arg0, %c0_i32, %c0_i32_0 : i32, i32, i32
  }
  func.func @transform_1(%arg0: i32) -> (i32, i32, i32) {
    %c0_i32 = arith.constant 0 : i32
    %c0_i32_0 = arith.constant 0 : i32
    %c0_i32_1 = arith.constant 0 : i32
    return %arg0, %c0_i32, %c0_i32_0 : i32, i32, i32
  }
  func.func @transform_2(%arg0: i32) -> (i32, i32, i32) {
    %c0_i32 = arith.constant 0 : i32
    %c0_i32_0 = arith.constant 0 : i32
    %c0_i32_1 = arith.constant 0 : i32
    return %arg0, %c0_i32, %c0_i32_0 : i32, i32, i32
  }
  func.func @transform_3(%arg0: i32) -> (i32, i32, i32) {
    %c0_i32 = arith.constant 0 : i32
    %c0_i32_0 = arith.constant 0 : i32
    %c0_i32_1 = arith.constant 0 : i32
    return %arg0, %c0_i32, %c0_i32_0 : i32, i32, i32
  }
  func.func @transform_4(%arg0: i32) -> (i32, i32, i32) {
    %c0_i32 = arith.constant 0 : i32
    %c0_i32_0 = arith.constant 0 : i32
    %c0_i32_1 = arith.constant 0 : i32
    return %arg0, %c0_i32, %c0_i32_0 : i32, i32, i32
  }
  func.func @transform_5(%arg0: i32) -> (i32, i32, i32) {
    %c0_i32 = arith.constant 0 : i32
    %c0_i32_0 = arith.constant 0 : i32
    %c0_i32_1 = arith.constant 0 : i32
    return %arg0, %c0_i32, %c0_i32_0 : i32, i32, i32
  }
  func.func @transform_6(%arg0: i32) -> (i32, i32, i32) {
    %c0_i32 = arith.constant 0 : i32
    %c0_i32_0 = arith.constant 0 : i32
    %c0_i32_1 = arith.constant 0 : i32
    return %arg0, %c0_i32, %c0_i32_0 : i32, i32, i32
  }
  func.func @transform_7(%arg0: i32) -> (i32, i32, i32) {
    %c0_i32 = arith.constant 0 : i32
    %c0_i32_0 = arith.constant 0 : i32
    %c0_i32_1 = arith.constant 0 : i32
    return %arg0, %c0_i32, %c0_i32_0 : i32, i32, i32
  }
  func.func @transform_8(%arg0: i32) -> (i32, i32) {
    %c0_i32 = arith.constant 0 : i32
    %c0_i32_0 = arith.constant 0 : i32
    %c0_i32_1 = arith.constant 0 : i32
    return %c0_i32, %c0_i32_0 : i32, i32
  }
  func.func @transform_9(%arg0: i32) -> (i32, i32) {
    %c0_i32 = arith.constant 0 : i32
    %c0_i32_0 = arith.constant 0 : i32
    %c0_i32_1 = arith.constant 0 : i32
    return %c0_i32, %c0_i32_0 : i32, i32
  }
  func.func @transform_10(%arg0: i32) -> (i32, i32) {
    %c0_i32 = arith.constant 0 : i32
    %c0_i32_0 = arith.constant 0 : i32
    %c0_i32_1 = arith.constant 0 : i32
    return %c0_i32, %c0_i32_0 : i32, i32
  }
  func.func @transform_11(%arg0: i32) -> (i32, i32) {
    %c0_i32 = arith.constant 0 : i32
    %c0_i32_0 = arith.constant 0 : i32
    %c0_i32_1 = arith.constant 0 : i32
    return %c0_i32, %c0_i32_0 : i32, i32
  }
  func.func @transform_12(%arg0: i32) -> (i32, i32) {
    %c0_i32 = arith.constant 0 : i32
    %c0_i32_0 = arith.constant 0 : i32
    %c0_i32_1 = arith.constant 0 : i32
    return %c0_i32, %c0_i32_0 : i32, i32
  }
  func.func @transform_13(%arg0: i32) -> (i32, i32) {
    %c0_i32 = arith.constant 0 : i32
    %c0_i32_0 = arith.constant 0 : i32
    %c0_i32_1 = arith.constant 0 : i32
    return %c0_i32, %c0_i32_0 : i32, i32
  }
  func.func @transform_14(%arg0: i32) -> (i32, i32) {
    %c0_i32 = arith.constant 0 : i32
    %c0_i32_0 = arith.constant 0 : i32
    %c0_i32_1 = arith.constant 0 : i32
    return %c0_i32, %c0_i32_0 : i32, i32
  }
  func.func @transform_15(%arg0: i32) -> (i32, i32) {
    %c0_i32 = arith.constant 0 : i32
    %c0_i32_0 = arith.constant 0 : i32
    %c0_i32_1 = arith.constant 0 : i32
    return %c0_i32, %c0_i32_0 : i32, i32
  }
  func.func @transform_16(%arg0: i32) -> (i32, i32) {
    %c0_i32 = arith.constant 0 : i32
    %c0_i32_0 = arith.constant 0 : i32
    %c0_i32_1 = arith.constant 0 : i32
    return %c0_i32, %c0_i32_0 : i32, i32
  }
  func.func @transform_17(%arg0: i32) -> (i32, i32) {
    %c0_i32 = arith.constant 0 : i32
    %c0_i32_0 = arith.constant 0 : i32
    %c0_i32_1 = arith.constant 0 : i32
    return %c0_i32, %c0_i32_0 : i32, i32
  }
  func.func @transform_18(%arg0: i32) -> (i32, i32) {
    %c0_i32 = arith.constant 0 : i32
    %c0_i32_0 = arith.constant 0 : i32
    %c0_i32_1 = arith.constant 0 : i32
    return %c0_i32, %c0_i32_0 : i32, i32
  }
  func.func @transform_19(%arg0: i32) -> (i32, i32) {
    %c0_i32 = arith.constant 0 : i32
    %c0_i32_0 = arith.constant 0 : i32
    %c0_i32_1 = arith.constant 0 : i32
    return %c0_i32, %c0_i32_0 : i32, i32
  }
  func.func @transform_20(%arg0: i32) -> (i32, i32) {
    %c0_i32 = arith.constant 0 : i32
    %c0_i32_0 = arith.constant 0 : i32
    %c0_i32_1 = arith.constant 0 : i32
    return %c0_i32, %c0_i32_0 : i32, i32
  }
  func.func @transform_21(%arg0: i32) -> (i32, i32) {
    %c0_i32 = arith.constant 0 : i32
    %c0_i32_0 = arith.constant 0 : i32
    %c0_i32_1 = arith.constant 0 : i32
    return %c0_i32, %c0_i32_0 : i32, i32
  }
  func.func @transform_22(%arg0: i32) -> (i32, i32) {
    %c0_i32 = arith.constant 0 : i32
    %c0_i32_0 = arith.constant 0 : i32
    %c0_i32_1 = arith.constant 0 : i32
    return %c0_i32, %c0_i32_0 : i32, i32
  }
  func.func @transform_23(%arg0: i32) -> (i32, i32) {
    %c0_i32 = arith.constant 0 : i32
    %c0_i32_0 = arith.constant 0 : i32
    %c0_i32_1 = arith.constant 0 : i32
    return %c0_i32, %c0_i32_0 : i32, i32
  }
  func.func @transform_24(%arg0: i32) -> (i32, i32) {
    %c0_i32 = arith.constant 0 : i32
    %c0_i32_0 = arith.constant 0 : i32
    %c0_i32_1 = arith.constant 0 : i32
    return %c0_i32, %c0_i32_0 : i32, i32
  }
  func.func @transform_25(%arg0: i32) -> (i32, i32) {
    %c0_i32 = arith.constant 0 : i32
    %c0_i32_0 = arith.constant 0 : i32
    %c0_i32_1 = arith.constant 0 : i32
    return %c0_i32, %c0_i32_0 : i32, i32
  }
  func.func @transform_26(%arg0: i32) -> (i32, i32, i32) {
    %c0_i32 = arith.constant 0 : i32
    %c0_i32_0 = arith.constant 0 : i32
    %c0_i32_1 = arith.constant 0 : i32
    return %arg0, %c0_i32, %c0_i32_0 : i32, i32, i32
  }
  func.func @transform_27(%arg0: i32) -> (i32, i32, i32) {
    %c0_i32 = arith.constant 0 : i32
    %c0_i32_0 = arith.constant 0 : i32
    %c0_i32_1 = arith.constant 0 : i32
    return %arg0, %c0_i32, %c0_i32_0 : i32, i32, i32
  }
}

</mosaic_0001>

<llo_original>
// kernel: geomol_forward.1
$region0: #{geomol_forward.1}
  #allocation0 [shape = 'u32[]', space=smem, size = 0x4, offset = 0x4, fixed_abs, tag = 'smem constant byte address 0x4 - core index']
  #allocation1 [shape = 'u32[72,128]{1,0:T(1,128)}', space=vmem, size = 0x9000, scoped, tag = 'internal scratch']
  %s0 = inlined_call_operand.vmem [shape: bf16[4,16,128], index: 0, kind: input, shape index: {}]
  %s1 = inlined_call_operand.vmem [shape: bf16[4,32,128], index: 1, kind: input, shape index: {}]
  %s2 = inlined_call_operand.vmem [shape: f32[4,16,128], index: 2, kind: input, shape index: {}]
  %s3 = inlined_call_operand.vmem [shape: f32[4,32,128], index: 3, kind: input, shape index: {}]
  %s4 = inlined_call_operand.vmem [shape: bf16[4,32,16], index: 4, kind: input, shape index: {}]
  %s5 = inlined_call_operand.vmem [shape: bf16[4,32,16], index: 5, kind: input, shape index: {}]
  %s6 = inlined_call_operand.vmem [shape: bf16[4,16,32], index: 6, kind: input, shape index: {}]
  %s7 = inlined_call_operand.vmem [shape: f32[4,16,1], index: 7, kind: input, shape index: {}]
  %s8 = inlined_call_operand.vmem [shape: bf16[128,128], index: 8, kind: input, shape index: {}]
  %s9 = inlined_call_operand.vmem [shape: bf16[128,128], index: 9, kind: input, shape index: {}]
  %s10 = inlined_call_operand.vmem [shape: f32[1,128], index: 10, kind: input, shape index: {}]
  %s11 = inlined_call_operand.vmem [shape: bf16[128,128], index: 11, kind: input, shape index: {}]
  %s12 = inlined_call_operand.vmem [shape: bf16[128,128], index: 12, kind: input, shape index: {}]
  %s13 = inlined_call_operand.vmem [shape: f32[1,128], index: 13, kind: input, shape index: {}]
  %s14 = inlined_call_operand.vmem [shape: bf16[384,128], index: 14, kind: input, shape index: {}]
  %s15 = inlined_call_operand.vmem [shape: f32[1,128], index: 15, kind: input, shape index: {}]
  %s16 = inlined_call_operand.vmem [shape: bf16[128,128], index: 16, kind: input, shape index: {}]
  %s17 = inlined_call_operand.vmem [shape: f32[1,128], index: 17, kind: input, shape index: {}]
  %s18 = inlined_call_operand.vmem [shape: bf16[256,128], index: 18, kind: input, shape index: {}]
  %s19 = inlined_call_operand.vmem [shape: f32[1,128], index: 19, kind: input, shape index: {}]
  %s20 = inlined_call_operand.vmem [shape: bf16[128,128], index: 20, kind: input, shape index: {}]
  %s21 = inlined_call_operand.vmem [shape: f32[1,128], index: 21, kind: input, shape index: {}]
  %s22 = inlined_call_operand.vmem [shape: bf16[256,128], index: 22, kind: input, shape index: {}]
  %s23 = inlined_call_operand.vmem [shape: f32[1,128], index: 23, kind: input, shape index: {}]
  %s24 = inlined_call_operand.vmem [shape: bf16[128,128], index: 24, kind: input, shape index: {}]
  %s25 = inlined_call_operand.vmem [shape: f32[1,128], index: 25, kind: input, shape index: {}]
  %s26 = inlined_call_operand.hbm [shape: f32[4,16,128], index: 26, kind: output, shape index: {0}]
  %s27 = inlined_call_operand.hbm [shape: f32[4,32,128], index: 27, kind: output, shape index: {1}]
  %28 = xla_tuple %s26, %s27
  %s29 = sld [smem:[#allocation0]]
  $region145: #{geomol_forward.1} parent=0
    _
  %s31 = ssub.s32 1, %s29
  %s32 = scalar_select 0, %s31, %s29
  $region1: #{geomol_forward.1} parent=0
    #allocation2 [shape = 'u8[16384]{0}', space=vmem, size = 0x4000, scoped, tag = 'output window, operand 0']
    #allocation3 [shape = 's32[2]{0}', space=sflag, size = 0x8, scoped, tag = 'scoped memory for geomol_forward.1']
    #allocation4 [shape = 'u8[32768]{0}', space=vmem, size = 0x8000, scoped, tag = 'output window, operand 1']
    #allocation5 [shape = 's32[2]{0}', space=sflag, size = 0x8, scoped, tag = 'scoped memory for geomol_forward.1']
    %33 = vsyncpa [#allocation3], 0
    %s34 = scalar_lea.sflag [#allocation3], 1
    %35 = vsyncpa %s34, 0
    %36 = vsyncpa [#allocation5], 0
    %s37 = scalar_lea.sflag [#allocation5], 1
    %38 = vsyncpa %s37, 0
    loop: start=0, step=1, limit=6
    $region2: #{geomol_forward.1} parent=1 // loop_pre_header
      _
    $region3: #{geomol_forward.1} parent=1 // loop_header
      %s40 = sphi 0, %s44
      %p41 = scmp.ge.s32.totalorder %s40, 6
      %s50 = sphi 0, %s52
      %s53 = sphi 0, %s50
      %s54 = sphi 0, %s53
      %s70 = sphi 0, %s54
      %s76 = sphi 0, %s78
      %s79 = sphi 0, %s76
      %s80 = sphi 0, %s79
      %s96 = sphi 0, %s80
      %s102 = sphi 0, %s104
      %s105 = sphi 0, %s102
      %s106 = sphi 0, %s105
      %s122 = sphi 0, %s106
      %s128 = sphi 0, %s130
      %s131 = sphi 0, %s128
      %s132 = sphi 0, %s131
      %s148 = sphi 0, %s132
      %s154 = sphi 0, %s156
      %s157 = sphi 0, %s154
      %s158 = sphi 0, %s157
      %s174 = sphi 0, %s158
      %s180 = sphi 0, %s182
      %s183 = sphi 0, %s180
      %s184 = sphi 0, %s183
      %s200 = sphi 0, %s184
      %s206 = sphi 0, %s208
      %s209 = sphi 0, %s206
      %s210 = sphi 0, %s209
      %s226 = sphi 0, %s210
      %s232 = sphi 0, %s234
      %s235 = sphi 0, %s232
      %s236 = sphi 0, %s235
      %s252 = sphi 0, %s236
      %s256 = sphi 0, %s256
      %s258 = sphi 0, %s256
      %s259 = sphi 0, %s258
      %s273 = sphi 0, %s259
      %s277 = sphi 0, %s277
      %s279 = sphi 0, %s277
      %s280 = sphi 0, %s279
      %s294 = sphi 0, %s280
      %s298 = sphi 0, %s298
      %s300 = sphi 0, %s298
      %s301 = sphi 0, %s300
      %s315 = sphi 0, %s301
      %s319 = sphi 0, %s319
      %s321 = sphi 0, %s319
      %s322 = sphi 0, %s321
      %s336 = sphi 0, %s322
      %s340 = sphi 0, %s340
      %s342 = sphi 0, %s340
      %s343 = sphi 0, %s342
      %s357 = sphi 0, %s343
      %s361 = sphi 0, %s361
      %s363 = sphi 0, %s361
      %s364 = sphi 0, %s363
      %s378 = sphi 0, %s364
      %s382 = sphi 0, %s382
      %s384 = sphi 0, %s382
      %s385 = sphi 0, %s384
      %s399 = sphi 0, %s385
      %s403 = sphi 0, %s403
      %s405 = sphi 0, %s403
      %s406 = sphi 0, %s405
      %s420 = sphi 0, %s406
      %s424 = sphi 0, %s424
      %s426 = sphi 0, %s424
      %s427 = sphi 0, %s426
      %s441 = sphi 0, %s427
      %s445 = sphi 0, %s445
      %s447 = sphi 0, %s445
      %s448 = sphi 0, %s447
      %s462 = sphi 0, %s448
      %s466 = sphi 0, %s466
      %s468 = sphi 0, %s466
      %s469 = sphi 0, %s468
      %s483 = sphi 0, %s469
      %s487 = sphi 0, %s487
      %s489 = sphi 0, %s487
      %s490 = sphi 0, %s489
      %s504 = sphi 0, %s490
      %s508 = sphi 0, %s508
      %s510 = sphi 0, %s508
      %s511 = sphi 0, %s510
      %s525 = sphi 0, %s511
      %s529 = sphi 0, %s529
      %s531 = sphi 0, %s529
      %s532 = sphi 0, %s531
      %s546 = sphi 0, %s532
      %s550 = sphi 0, %s550
      %s552 = sphi 0, %s550
      %s553 = sphi 0, %s552
      %s567 = sphi 0, %s553
      %s571 = sphi 0, %s571
      %s573 = sphi 0, %s571
      %s574 = sphi 0, %s573
      %s588 = sphi 0, %s574
      %s592 = sphi 0, %s592
      %s594 = sphi 0, %s592
      %s595 = sphi 0, %s594
      %s609 = sphi 0, %s595
      %s613 = sphi 0, %s613
      %s615 = sphi 0, %s613
      %s616 = sphi 0, %s615
      %s630 = sphi 0, %s616
      %s636 = sphi 0, %s638
      %s639 = sphi 0, %s636
      %s640 = sphi 0, %s639
      %s656 = sphi 0, %s640
      %s662 = sphi 0, %s664
      %s665 = sphi 0, %s662
      %s666 = sphi 0, %s665
      %s682 = sphi 0, %s666
    $region4: #{geomol_forward.1} parent=1 // loop_header_branch
      %43 = sbr.rel (%p41) target = $region8
    $region5: #{geomol_forward.1} parent=1 // loop_body
      %s45 = ssub.s32 %s40, 1
      %s46 = ssub.s32 %s40, 2
      %s47 = sadd.s32 %s40, 1
      %s48 = ssub.s32 %s40, %s47
      %p49 = scmp.eq.s32.totalorder %s48, 0
      %s51 = sadd.s32 %s50, 1
      %s52 = scalar_select %p49, %s50, %s51
      %p55 = pneg %p49
      %p56 = scmp.eq.s32.totalorder %s40, 3
      %p57 = por %p55, %p56
      %p58 = scmp.ne.s32.totalorder %s50, %s53
      %p59 = scmp.eq.s32.totalorder %s40, 0
      %p60 = por %p58, %p59
      %p61 = scmp.ne.s32.totalorder %s50, %s53
      %p62 = scmp.eq.s32.totalorder %s45, 3
      %p63 = por %p61, %p62
      %p64 = scmp.ne.s32.totalorder %s53, %s54
      %p65 = scmp.eq.s32.totalorder %s45, 0
      %p66 = por %p64, %p65
      %p67 = scmp.ne.s32.totalorder %s53, %s54
      %p68 = scmp.eq.s32.totalorder %s46, 3
      %p69 = por %p67, %p68
      %p71 = scmp.ne.s32.totalorder %s54, %s70
      %p72 = scmp.eq.s32.totalorder %s46, 0
      %p73 = por %p71, %p72
      %s74 = ssub.s32 %s40, %s47
      %p75 = scmp.eq.s32.totalorder %s74, 0
      %s77 = sadd.s32 %s76, 1
      %s78 = scalar_select %p75, %s76, %s77
      %p81 = pneg %p75
      %p82 = scmp.eq.s32.totalorder %s40, 3
      %p83 = por %p81, %p82
      %p84 = scmp.ne.s32.totalorder %s76, %s79
      %p85 = scmp.eq.s32.totalorder %s40, 0
      %p86 = por %p84, %p85
      %p87 = scmp.ne.s32.totalorder %s76, %s79
      %p88 = scmp.eq.s32.totalorder %s45, 3
      %p89 = por %p87, %p88
      %p90 = scmp.ne.s32.totalorder %s79, %s80
      %p91 = scmp.eq.s32.totalorder %s45, 0
      %p92 = por %p90, %p91
      %p93 = scmp.ne.s32.totalorder %s79, %s80
      %p94 = scmp.eq.s32.totalorder %s46, 3
      %p95 = por %p93, %p94
      %p97 = scmp.ne.s32.totalorder %s80, %s96
      %p98 = scmp.eq.s32.totalorder %s46, 0
      %p99 = por %p97, %p98
      %s100 = ssub.s32 %s40, %s47
      %p101 = scmp.eq.s32.totalorder %s100, 0
      %s103 = sadd.s32 %s102, 1
      %s104 = scalar_select %p101, %s102, %s103
      %p107 = pneg %p101
      %p108 = scmp.eq.s32.totalorder %s40, 3
      %p109 = por %p107, %p108
      %p110 = scmp.ne.s32.totalorder %s102, %s105
      %p111 = scmp.eq.s32.totalorder %s40, 0
      %p112 = por %p110, %p111
      %p113 = scmp.ne.s32.totalorder %s102, %s105
      %p114 = scmp.eq.s32.totalorder %s45, 3
      %p115 = por %p113, %p114
      %p116 = scmp.ne.s32.totalorder %s105, %s106
      %p117 = scmp.eq.s32.totalorder %s45, 0
      %p118 = por %p116, %p117
      %p119 = scmp.ne.s32.totalorder %s105, %s106
      %p120 = scmp.eq.s32.totalorder %s46, 3
      %p121 = por %p119, %p120
      %p123 = scmp.ne.s32.totalorder %s106, %s122
      %p124 = scmp.eq.s32.totalorder %s46, 0
      %p125 = por %p123, %p124
      %s126 = ssub.s32 %s40, %s47
      %p127 = scmp.eq.s32.totalorder %s126, 0
      %s129 = sadd.s32 %s128, 1
      %s130 = scalar_select %p127, %s128, %s129
      %p133 = pneg %p127
      %p134 = scmp.eq.s32.totalorder %s40, 3
      %p135 = por %p133, %p134
      %p136 = scmp.ne.s32.totalorder %s128, %s131
      %p137 = scmp.eq.s32.totalorder %s40, 0
      %p138 = por %p136, %p137
      %p139 = scmp.ne.s32.totalorder %s128, %s131
      %p140 = scmp.eq.s32.totalorder %s45, 3
      %p141 = por %p139, %p140
      %p142 = scmp.ne.s32.totalorder %s131, %s132
      %p143 = scmp.eq.s32.totalorder %s45, 0
      %p144 = por %p142, %p143
      %p145 = scmp.ne.s32.totalorder %s131, %s132
      %p146 = scmp.eq.s32.totalorder %s46, 3
      %p147 = por %p145, %p146
      %p149 = scmp.ne.s32.totalorder %s132, %s148
      %p150 = scmp.eq.s32.totalorder %s46, 0
      %p151 = por %p149, %p150
      %s152 = ssub.s32 %s40, %s47
      %p153 = scmp.eq.s32.totalorder %s152, 0
      %s155 = sadd.s32 %s154, 1
      %s156 = scalar_select %p153, %s154, %s155
      %p159 = pneg %p153
      %p160 = scmp.eq.s32.totalorder %s40, 3
      %p161 = por %p159, %p160
      %p162 = scmp.ne.s32.totalorder %s154, %s157
      %p163 = scmp.eq.s32.totalorder %s40, 0
      %p164 = por %p162, %p163
      %p165 = scmp.ne.s32.totalorder %s154, %s157
      %p166 = scmp.eq.s32.totalorder %s45, 3
      %p167 = por %p165, %p166
      %p168 = scmp.ne.s32.totalorder %s157, %s158
      %p169 = scmp.eq.s32.totalorder %s45, 0
      %p170 = por %p168, %p169
      %p171 = scmp.ne.s32.totalorder %s157, %s158
      %p172 = scmp.eq.s32.totalorder %s46, 3
      %p173 = por %p171, %p172
      %p175 = scmp.ne.s32.totalorder %s158, %s174
      %p176 = scmp.eq.s32.totalorder %s46, 0
      %p177 = por %p175, %p176
      %s178 = ssub.s32 %s40, %s47
      %p179 = scmp.eq.s32.totalorder %s178, 0
      %s181 = sadd.s32 %s180, 1
      %s182 = scalar_select %p179, %s180, %s181
      %p185 = pneg %p179
      %p186 = scmp.eq.s32.totalorder %s40, 3
      %p187 = por %p185, %p186
      %p188 = scmp.ne.s32.totalorder %s180, %s183
      %p189 = scmp.eq.s32.totalorder %s40, 0
      %p190 = por %p188, %p189
      %p191 = scmp.ne.s32.totalorder %s180, %s183
      %p192 = scmp.eq.s32.totalorder %s45, 3
      %p193 = por %p191, %p192
      %p194 = scmp.ne.s32.totalorder %s183, %s184
      %p195 = scmp.eq.s32.totalorder %s45, 0
      %p196 = por %p194, %p195
      %p197 = scmp.ne.s32.totalorder %s183, %s184
      %p198 = scmp.eq.s32.totalorder %s46, 3
      %p199 = por %p197, %p198
      %p201 = scmp.ne.s32.totalorder %s184, %s200
      %p202 = scmp.eq.s32.totalorder %s46, 0
      %p203 = por %p201, %p202
      %s204 = ssub.s32 %s40, %s47
      %p205 = scmp.eq.s32.totalorder %s204, 0
      %s207 = sadd.s32 %s206, 1
      %s208 = scalar_select %p205, %s206, %s207
      %p211 = pneg %p205
      %p212 = scmp.eq.s32.totalorder %s40, 3
      %p213 = por %p211, %p212
      %p214 = scmp.ne.s32.totalorder %s206, %s209
      %p215 = scmp.eq.s32.totalorder %s40, 0
      %p216 = por %p214, %p215
      %p217 = scmp.ne.s32.totalorder %s206, %s209
      %p218 = scmp.eq.s32.totalorder %s45, 3
      %p219 = por %p217, %p218
      %p220 = scmp.ne.s32.totalorder %s209, %s210
      %p221 = scmp.eq.s32.totalorder %s45, 0
      %p222 = por %p220, %p221
      %p223 = scmp.ne.s32.totalorder %s209, %s210
      %p224 = scmp.eq.s32.totalorder %s46, 3
      %p225 = por %p223, %p224
      %p227 = scmp.ne.s32.totalorder %s210, %s226
      %p228 = scmp.eq.s32.totalorder %s46, 0
      %p229 = por %p227, %p228
      %s230 = ssub.s32 %s40, %s47
      %p231 = scmp.eq.s32.totalorder %s230, 0
      %s233 = sadd.s32 %s232, 1
      %s234 = scalar_select %p231, %s232, %s233
      %p237 = pneg %p231
      %p238 = scmp.eq.s32.totalorder %s40, 3
      %p239 = por %p237, %p238
      %p240 = scmp.ne.s32.totalorder %s232, %s235
      %p241 = scmp.eq.s32.totalorder %s40, 0
      %p242 = por %p240, %p241
      %p243 = scmp.ne.s32.totalorder %s232, %s235
      %p244 = scmp.eq.s32.totalorder %s45, 3
      %p245 = por %p243, %p244
      %p246 = scmp.ne.s32.totalorder %s235, %s236
      %p247 = scmp.eq.s32.totalorder %s45, 0
      %p248 = por %p246, %p247
      %p249 = scmp.ne.s32.totalorder %s235, %s236
      %p250 = scmp.eq.s32.totalorder %s46, 3
      %p251 = por %p249, %p250
      %p253 = scmp.ne.s32.totalorder %s236, %s252
      %p254 = scmp.eq.s32.totalorder %s46, 0
      %p255 = por %p253, %p254
      %s257 = sadd.s32 %s256, 1
      %p260 = scmp.eq.s32.totalorder %s40, 3
      %p261 = scmp.ne.s32.totalorder %s256, %s258
      %p262 = scmp.eq.s32.totalorder %s40, 0
      %p263 = por %p261, %p262
      %p264 = scmp.ne.s32.totalorder %s256, %s258
      %p265 = scmp.eq.s32.totalorder %s45, 3
      %p266 = por %p264, %p265
      %p267 = scmp.ne.s32.totalorder %s258, %s259
      %p268 = scmp.eq.s32.totalorder %s45, 0
      %p269 = por %p267, %p268
      %p270 = scmp.ne.s32.totalorder %s258, %s259
      %p271 = scmp.eq.s32.totalorder %s46, 3
      %p272 = por %p270, %p271
      %p274 = scmp.ne.s32.totalorder %s259, %s273
      %p275 = scmp.eq.s32.totalorder %s46, 0
      %p276 = por %p274, %p275
      %s278 = sadd.s32 %s277, 1
      %p281 = scmp.eq.s32.totalorder %s40, 3
      %p282 = scmp.ne.s32.totalorder %s277, %s279
      %p283 = scmp.eq.s32.totalorder %s40, 0
      %p284 = por %p282, %p283
      %p285 = scmp.ne.s32.totalorder %s277, %s279
      %p286 = scmp.eq.s32.totalorder %s45, 3
      %p287 = por %p285, %p286
      %p288 = scmp.ne.s32.totalorder %s279, %s280
      %p289 = scmp.eq.s32.totalorder %s45, 0
      %p290 = por %p288, %p289
      %p291 = scmp.ne.s32.totalorder %s279, %s280
      %p292 = scmp.eq.s32.totalorder %s46, 3
      %p293 = por %p291, %p292
      %p295 = scmp.ne.s32.totalorder %s280, %s294
      %p296 = scmp.eq.s32.totalorder %s46, 0
      %p297 = por %p295, %p296
      %s299 = sadd.s32 %s298, 1
      %p302 = scmp.eq.s32.totalorder %s40, 3
      %p303 = scmp.ne.s32.totalorder %s298, %s300
      %p304 = scmp.eq.s32.totalorder %s40, 0
      %p305 = por %p303, %p304
      %p306 = scmp.ne.s32.totalorder %s298, %s300
      %p307 = scmp.eq.s32.totalorder %s45, 3
      %p308 = por %p306, %p307
      %p309 = scmp.ne.s32.totalorder %s300, %s301
      %p310 = scmp.eq.s32.totalorder %s45, 0
      %p311 = por %p309, %p310
      %p312 = scmp.ne.s32.totalorder %s300, %s301
      %p313 = scmp.eq.s32.totalorder %s46, 3
      %p314 = por %p312, %p313
      %p316 = scmp.ne.s32.totalorder %s301, %s315
      %p317 = scmp.eq.s32.totalorder %s46, 0
      %p318 = por %p316, %p317
      %s320 = sadd.s32 %s319, 1
      %p323 = scmp.eq.s32.totalorder %s40, 3
      %p324 = scmp.ne.s32.totalorder %s319, %s321
      %p325 = scmp.eq.s32.totalorder %s40, 0
      %p326 = por %p324, %p325
      %p327 = scmp.ne.s32.totalorder %s319, %s321
      %p328 = scmp.eq.s32.totalorder %s45, 3
      %p329 = por %p327, %p328
      %p330 = scmp.ne.s32.totalorder %s321, %s322
      %p331 = scmp.eq.s32.totalorder %s45, 0
      %p332 = por %p330, %p331
      %p333 = scmp.ne.s32.totalorder %s321, %s322
      %p334 = scmp.eq.s32.totalorder %s46, 3
      %p335 = por %p333, %p334
      %p337 = scmp.ne.s32.totalorder %s322, %s336
      %p338 = scmp.eq.s32.totalorder %s46, 0
      %p339 = por %p337, %p338
      %s341 = sadd.s32 %s340, 1
      %p344 = scmp.eq.s32.totalorder %s40, 3
      %p345 = scmp.ne.s32.totalorder %s340, %s342
      %p346 = scmp.eq.s32.totalorder %s40, 0
      %p347 = por %p345, %p346
      %p348 = scmp.ne.s32.totalorder %s340, %s342
      %p349 = scmp.eq.s32.totalorder %s45, 3
      %p350 = por %p348, %p349
      %p351 = scmp.ne.s32.totalorder %s342, %s343
      %p352 = scmp.eq.s32.totalorder %s45, 0
      %p353 = por %p351, %p352
      %p354 = scmp.ne.s32.totalorder %s342, %s343
      %p355 = scmp.eq.s32.totalorder %s46, 3
      %p356 = por %p354, %p355
      %p358 = scmp.ne.s32.totalorder %s343, %s357
      %p359 = scmp.eq.s32.totalorder %s46, 0
      %p360 = por %p358, %p359
      %s362 = sadd.s32 %s361, 1
      %p365 = scmp.eq.s32.totalorder %s40, 3
      %p366 = scmp.ne.s32.totalorder %s361, %s363
      %p367 = scmp.eq.s32.totalorder %s40, 0
      %p368 = por %p366, %p367
      %p369 = scmp.ne.s32.totalorder %s361, %s363
      %p370 = scmp.eq.s32.totalorder %s45, 3
      %p371 = por %p369, %p370
      %p372 = scmp.ne.s32.totalorder %s363, %s364
      %p373 = scmp.eq.s32.totalorder %s45, 0
      %p374 = por %p372, %p373
      %p375 = scmp.ne.s32.totalorder %s363, %s364
      %p376 = scmp.eq.s32.totalorder %s46, 3
      %p377 = por %p375, %p376
      %p379 = scmp.ne.s32.totalorder %s364, %s378
      %p380 = scmp.eq.s32.totalorder %s46, 0
      %p381 = por %p379, %p380
      %s383 = sadd.s32 %s382, 1
      %p386 = scmp.eq.s32.totalorder %s40, 3
      %p387 = scmp.ne.s32.totalorder %s382, %s384
      %p388 = scmp.eq.s32.totalorder %s40, 0
      %p389 = por %p387, %p388
      %p390 = scmp.ne.s32.totalorder %s382, %s384
      %p391 = scmp.eq.s32.totalorder %s45, 3
      %p392 = por %p390, %p391
      %p393 = scmp.ne.s32.totalorder %s384, %s385
      %p394 = scmp.eq.s32.totalorder %s45, 0
      %p395 = por %p393, %p394
      %p396 = scmp.ne.s32.totalorder %s384, %s385
      %p397 = scmp.eq.s32.totalorder %s46, 3
      %p398 = por %p396, %p397
      %p400 = scmp.ne.s32.totalorder %s385, %s399
      %p401 = scmp.eq.s32.totalorder %s46, 0
      %p402 = por %p400, %p401
      %s404 = sadd.s32 %s403, 1
      %p407 = scmp.eq.s32.totalorder %s40, 3
      %p408 = scmp.ne.s32.totalorder %s403, %s405
      %p409 = scmp.eq.s32.totalorder %s40, 0
      %p410 = por %p408, %p409
      %p411 = scmp.ne.s32.totalorder %s403, %s405
      %p412 = scmp.eq.s32.totalorder %s45, 3
      %p413 = por %p411, %p412
      %p414 = scmp.ne.s32.totalorder %s405, %s406
      %p415 = scmp.eq.s32.totalorder %s45, 0
      %p416 = por %p414, %p415
      %p417 = scmp.ne.s32.totalorder %s405, %s406
      %p418 = scmp.eq.s32.totalorder %s46, 3
      %p419 = por %p417, %p418
      %p421 = scmp.ne.s32.totalorder %s406, %s420
      %p422 = scmp.eq.s32.totalorder %s46, 0
      %p423 = por %p421, %p422
      %s425 = sadd.s32 %s424, 1
      %p428 = scmp.eq.s32.totalorder %s40, 3
      %p429 = scmp.ne.s32.totalorder %s424, %s426
      %p430 = scmp.eq.s32.totalorder %s40, 0
      %p431 = por %p429, %p430
      %p432 = scmp.ne.s32.totalorder %s424, %s426
      %p433 = scmp.eq.s32.totalorder %s45, 3
      %p434 = por %p432, %p433
      %p435 = scmp.ne.s32.totalorder %s426, %s427
      %p436 = scmp.eq.s32.totalorder %s45, 0
      %p437 = por %p435, %p436
      %p438 = scmp.ne.s32.totalorder %s426, %s427
      %p439 = scmp.eq.s32.totalorder %s46, 3
      %p440 = por %p438, %p439
      %p442 = scmp.ne.s32.totalorder %s427, %s441
      %p443 = scmp.eq.s32.totalorder %s46, 0
      %p444 = por %p442, %p443
      %s446 = sadd.s32 %s445, 1
      %p449 = scmp.eq.s32.totalorder %s40, 3
      %p450 = scmp.ne.s32.totalorder %s445, %s447
      %p451 = scmp.eq.s32.totalorder %s40, 0
      %p452 = por %p450, %p451
      %p453 = scmp.ne.s32.totalorder %s445, %s447
      %p454 = scmp.eq.s32.totalorder %s45, 3
      %p455 = por %p453, %p454
      %p456 = scmp.ne.s32.totalorder %s447, %s448
      %p457 = scmp.eq.s32.totalorder %s45, 0
      %p458 = por %p456, %p457
      %p459 = scmp.ne.s32.totalorder %s447, %s448
      %p460 = scmp.eq.s32.totalorder %s46, 3
      %p461 = por %p459, %p460
      %p463 = scmp.ne.s32.totalorder %s448, %s462
      %p464 = scmp.eq.s32.totalorder %s46, 0
      %p465 = por %p463, %p464
      %s467 = sadd.s32 %s466, 1
      %p470 = scmp.eq.s32.totalorder %s40, 3
      %p471 = scmp.ne.s32.totalorder %s466, %s468
      %p472 = scmp.eq.s32.totalorder %s40, 0
      %p473 = por %p471, %p472
      %p474 = scmp.ne.s32.totalorder %s466, %s468
      %p475 = scmp.eq.s32.totalorder %s45, 3
      %p476 = por %p474, %p475
      %p477 = scmp.ne.s32.totalorder %s468, %s469
      %p478 = scmp.eq.s32.totalorder %s45, 0
      %p479 = por %p477, %p478
      %p480 = scmp.ne.s32.totalorder %s468, %s469
      %p481 = scmp.eq.s32.totalorder %s46, 3
      %p482 = por %p480, %p481
      %p484 = scmp.ne.s32.totalorder %s469, %s483
      %p485 = scmp.eq.s32.totalorder %s46, 0
      %p486 = por %p484, %p485
      %s488 = sadd.s32 %s487, 1
      %p491 = scmp.eq.s32.totalorder %s40, 3
      %p492 = scmp.ne.s32.totalorder %s487, %s489
      %p493 = scmp.eq.s32.totalorder %s40, 0
      %p494 = por %p492, %p493
      %p495 = scmp.ne.s32.totalorder %s487, %s489
      %p496 = scmp.eq.s32.totalorder %s45, 3
      %p497 = por %p495, %p496
      %p498 = scmp.ne.s32.totalorder %s489, %s490
      %p499 = scmp.eq.s32.totalorder %s45, 0
      %p500 = por %p498, %p499
      %p501 = scmp.ne.s32.totalorder %s489, %s490
      %p502 = scmp.eq.s32.totalorder %s46, 3
      %p503 = por %p501, %p502
      %p505 = scmp.ne.s32.totalorder %s490, %s504
      %p506 = scmp.eq.s32.totalorder %s46, 0
      %p507 = por %p505, %p506
      %s509 = sadd.s32 %s508, 1
      %p512 = scmp.eq.s32.totalorder %s40, 3
      %p513 = scmp.ne.s32.totalorder %s508, %s510
      %p514 = scmp.eq.s32.totalorder %s40, 0
      %p515 = por %p513, %p514
      %p516 = scmp.ne.s32.totalorder %s508, %s510
      %p517 = scmp.eq.s32.totalorder %s45, 3
      %p518 = por %p516, %p517
      %p519 = scmp.ne.s32.totalorder %s510, %s511
      %p520 = scmp.eq.s32.totalorder %s45, 0
      %p521 = por %p519, %p520
      %p522 = scmp.ne.s32.totalorder %s510, %s511
      %p523 = scmp.eq.s32.totalorder %s46, 3
      %p524 = por %p522, %p523
      %p526 = scmp.ne.s32.totalorder %s511, %s525
      %p527 = scmp.eq.s32.totalorder %s46, 0
      %p528 = por %p526, %p527
      %s530 = sadd.s32 %s529, 1
      %p533 = scmp.eq.s32.totalorder %s40, 3
      %p534 = scmp.ne.s32.totalorder %s529, %s531
      %p535 = scmp.eq.s32.totalorder %s40, 0
      %p536 = por %p534, %p535
      %p537 = scmp.ne.s32.totalorder %s529, %s531
      %p538 = scmp.eq.s32.totalorder %s45, 3
      %p539 = por %p537, %p538
      %p540 = scmp.ne.s32.totalorder %s531, %s532
      %p541 = scmp.eq.s32.totalorder %s45, 0
      %p542 = por %p540, %p541
      %p543 = scmp.ne.s32.totalorder %s531, %s532
      %p544 = scmp.eq.s32.totalorder %s46, 3
      %p545 = por %p543, %p544
      %p547 = scmp.ne.s32.totalorder %s532, %s546
      %p548 = scmp.eq.s32.totalorder %s46, 0
      %p549 = por %p547, %p548
      %s551 = sadd.s32 %s550, 1
      %p554 = scmp.eq.s32.totalorder %s40, 3
      %p555 = scmp.ne.s32.totalorder %s550, %s552
      %p556 = scmp.eq.s32.totalorder %s40, 0
      %p557 = por %p555, %p556
      %p558 = scmp.ne.s32.totalorder %s550, %s552
      %p559 = scmp.eq.s32.totalorder %s45, 3
      %p560 = por %p558, %p559
      %p561 = scmp.ne.s32.totalorder %s552, %s553
      %p562 = scmp.eq.s32.totalorder %s45, 0
      %p563 = por %p561, %p562
      %p564 = scmp.ne.s32.totalorder %s552, %s553
      %p565 = scmp.eq.s32.totalorder %s46, 3
      %p566 = por %p564, %p565
      %p568 = scmp.ne.s32.totalorder %s553, %s567
      %p569 = scmp.eq.s32.totalorder %s46, 0
      %p570 = por %p568, %p569
      %s572 = sadd.s32 %s571, 1
      %p575 = scmp.eq.s32.totalorder %s40, 3
      %p576 = scmp.ne.s32.totalorder %s571, %s573
      %p577 = scmp.eq.s32.totalorder %s40, 0
      %p578 = por %p576, %p577
      %p579 = scmp.ne.s32.totalorder %s571, %s573
      %p580 = scmp.eq.s32.totalorder %s45, 3
      %p581 = por %p579, %p580
      %p582 = scmp.ne.s32.totalorder %s573, %s574
      %p583 = scmp.eq.s32.totalorder %s45, 0
      %p584 = por %p582, %p583
      %p585 = scmp.ne.s32.totalorder %s573, %s574
      %p586 = scmp.eq.s32.totalorder %s46, 3
      %p587 = por %p585, %p586
      %p589 = scmp.ne.s32.totalorder %s574, %s588
      %p590 = scmp.eq.s32.totalorder %s46, 0
      %p591 = por %p589, %p590
      %s593 = sadd.s32 %s592, 1
      %p596 = scmp.eq.s32.totalorder %s40, 3
      %p597 = scmp.ne.s32.totalorder %s592, %s594
      %p598 = scmp.eq.s32.totalorder %s40, 0
      %p599 = por %p597, %p598
      %p600 = scmp.ne.s32.totalorder %s592, %s594
      %p601 = scmp.eq.s32.totalorder %s45, 3
      %p602 = por %p600, %p601
      %p603 = scmp.ne.s32.totalorder %s594, %s595
      %p604 = scmp.eq.s32.totalorder %s45, 0
      %p605 = por %p603, %p604
      %p606 = scmp.ne.s32.totalorder %s594, %s595
      %p607 = scmp.eq.s32.totalorder %s46, 3
      %p608 = por %p606, %p607
      %p610 = scmp.ne.s32.totalorder %s595, %s609
      %p611 = scmp.eq.s32.totalorder %s46, 0
      %p612 = por %p610, %p611
      %s614 = sadd.s32 %s613, 1
      %p617 = scmp.eq.s32.totalorder %s40, 3
      %p618 = scmp.ne.s32.totalorder %s613, %s615
      %p619 = scmp.eq.s32.totalorder %s40, 0
      %p620 = por %p618, %p619
      %p621 = scmp.ne.s32.totalorder %s613, %s615
      %p622 = scmp.eq.s32.totalorder %s45, 3
      %p623 = por %p621, %p622
      %p624 = scmp.ne.s32.totalorder %s615, %s616
      %p625 = scmp.eq.s32.totalorder %s45, 0
      %p626 = por %p624, %p625
      %p627 = scmp.ne.s32.totalorder %s615, %s616
      %p628 = scmp.eq.s32.totalorder %s46, 3
      %p629 = por %p627, %p628
      %p631 = scmp.ne.s32.totalorder %s616, %s630
      %p632 = scmp.eq.s32.totalorder %s46, 0
      %p633 = por %p631, %p632
      %s634 = ssub.s32 %s40, %s47
      %p635 = scmp.eq.s32.totalorder %s634, 0
      %s637 = sadd.s32 %s636, 1
      %s638 = scalar_select %p635, %s636, %s637
      %p641 = pneg %p635
      %p642 = scmp.eq.s32.totalorder %s40, 3
      %p643 = por %p641, %p642
      %p644 = scmp.ne.s32.totalorder %s636, %s639
      %p645 = scmp.eq.s32.totalorder %s40, 0
      %p646 = por %p644, %p645
      %p647 = scmp.ne.s32.totalorder %s636, %s639
      %p648 = scmp.eq.s32.totalorder %s45, 3
      %p649 = por %p647, %p648
      %p650 = scmp.ne.s32.totalorder %s639, %s640
      %p651 = scmp.eq.s32.totalorder %s45, 0
      %p652 = por %p650, %p651
      %p653 = scmp.ne.s32.totalorder %s639, %s640
      %p654 = scmp.eq.s32.totalorder %s46, 3
      %p655 = por %p653, %p654
      %p657 = scmp.ne.s32.totalorder %s640, %s656
      %p658 = scmp.eq.s32.totalorder %s46, 0
      %p659 = por %p657, %p658
      %s660 = ssub.s32 %s40, %s47
      %p661 = scmp.eq.s32.totalorder %s660, 0
      %s663 = sadd.s32 %s662, 1
      %s664 = scalar_select %p661, %s662, %s663
      %p667 = pneg %p661
      %p668 = scmp.eq.s32.totalorder %s40, 3
      %p669 = por %p667, %p668
      %p670 = scmp.ne.s32.totalorder %s662, %s665
      %p671 = scmp.eq.s32.totalorder %s40, 0
      %p672 = por %p670, %p671
      %p673 = scmp.ne.s32.totalorder %s662, %s665
      %p674 = scmp.eq.s32.totalorder %s45, 3
      %p675 = por %p673, %p674
      %p676 = scmp.ne.s32.totalorder %s665, %s666
      %p677 = scmp.eq.s32.totalorder %s45, 0
      %p678 = por %p676, %p677
      %p679 = scmp.ne.s32.totalorder %s665, %s666
      %p680 = scmp.eq.s32.totalorder %s46, 3
      %p681 = por %p679, %p680
      %p683 = scmp.ne.s32.totalorder %s666, %s682
      %p684 = scmp.eq.s32.totalorder %s46, 0
      %p685 = por %p683, %p684
      %p686 = scmp.le.s32.totalorder 1, %s40
      %p687 = scmp.lt.s32.totalorder %s40, 5
      %p688 = pnand %p686, %p687
      %p689 = pneg %p688
      // Predicated region
      $region9: #{geomol_forward.1} parent=5 // pred_check
        _
      $region10: #{geomol_forward.1} parent=5 // pred_check_branch
        %691 = sbr.rel (%p688) target = $region12
      $region11: #{geomol_forward.1} parent=5 // pred_region
        %s692 = ssub.s32 %s40, 1
        // Predicated region
        $region13: #{geomol_forward.1} parent=11 // pred_check
          %p693 = pneg %p269
        $region14: #{geomol_forward.1} parent=11 // pred_check_branch
          %695 = sbr.rel (%p693) target = $region16
        $region15: #{geomol_forward.1} parent=11 // pred_region
          _
        $region16: #{geomol_forward.1} parent=11 // pred_fallthru
          _
        // Predicated region
        $region17: #{geomol_forward.1} parent=11 // pred_check
          %p696 = pneg %p290
        $region18: #{geomol_forward.1} parent=11 // pred_check_branch
          %698 = sbr.rel (%p696) target = $region20
        $region19: #{geomol_forward.1} parent=11 // pred_region
          _
        $region20: #{geomol_forward.1} parent=11 // pred_fallthru
          _
        // Predicated region
        $region21: #{geomol_forward.1} parent=11 // pred_check
          %p699 = pneg %p311
        $region22: #{geomol_forward.1} parent=11 // pred_check_branch
          %701 = sbr.rel (%p699) target = $region24
        $region23: #{geomol_forward.1} parent=11 // pred_region
          _
        $region24: #{geomol_forward.1} parent=11 // pred_fallthru
          _
        // Predicated region
        $region25: #{geomol_forward.1} parent=11 // pred_check
          %p702 = pneg %p332
        $region26: #{geomol_forward.1} parent=11 // pred_check_branch
          %704 = sbr.rel (%p702) target = $region28
        $region27: #{geomol_forward.1} parent=11 // pred_region
          _
        $region28: #{geomol_forward.1} parent=11 // pred_fallthru
          _
        // Predicated region
        $region29: #{geomol_forward.1} parent=11 // pred_check
          %p705 = pneg %p353
        $region30: #{geomol_forward.1} parent=11 // pred_check_branch
          %707 = sbr.rel (%p705) target = $region32
        $region31: #{geomol_forward.1} parent=11 // pred_region
          _
        $region32: #{geomol_forward.1} parent=11 // pred_fallthru
          _
        // Predicated region
        $region33: #{geomol_forward.1} parent=11 // pred_check
          %p708 = pneg %p374
        $region34: #{geomol_forward.1} parent=11 // pred_check_branch
          %710 = sbr.rel (%p708) target = $region36
        $region35: #{geomol_forward.1} parent=11 // pred_region
          _
        $region36: #{geomol_forward.1} parent=11 // pred_fallthru
          _
        // Predicated region
        $region37: #{geomol_forward.1} parent=11 // pred_check
          %p711 = pneg %p395
        $region38: #{geomol_forward.1} parent=11 // pred_check_branch
          %713 = sbr.rel (%p711) target = $region40
        $region39: #{geomol_forward.1} parent=11 // pred_region
          _
        $region40: #{geomol_forward.1} parent=11 // pred_fallthru
          _
        // Predicated region
        $region41: #{geomol_forward.1} parent=11 // pred_check
          %p714 = pneg %p416
        $region42: #{geomol_forward.1} parent=11 // pred_check_branch
          %716 = sbr.rel (%p714) target = $region44
        $region43: #{geomol_forward.1} parent=11 // pred_region
          _
        $region44: #{geomol_forward.1} parent=11 // pred_fallthru
          _
        // Predicated region
        $region45: #{geomol_forward.1} parent=11 // pred_check
          %p717 = pneg %p437
        $region46: #{geomol_forward.1} parent=11 // pred_check_branch
          %719 = sbr.rel (%p717) target = $region48
        $region47: #{geomol_forward.1} parent=11 // pred_region
          _
        $region48: #{geomol_forward.1} parent=11 // pred_fallthru
          _
        // Predicated region
        $region49: #{geomol_forward.1} parent=11 // pred_check
          %p720 = pneg %p458
        $region50: #{geomol_forward.1} parent=11 // pred_check_branch
          %722 = sbr.rel (%p720) target = $region52
        $region51: #{geomol_forward.1} parent=11 // pred_region
          _
        $region52: #{geomol_forward.1} parent=11 // pred_fallthru
          _
        // Predicated region
        $region53: #{geomol_forward.1} parent=11 // pred_check
          %p723 = pneg %p479
        $region54: #{geomol_forward.1} parent=11 // pred_check_branch
          %725 = sbr.rel (%p723) target = $region56
        $region55: #{geomol_forward.1} parent=11 // pred_region
          _
        $region56: #{geomol_forward.1} parent=11 // pred_fallthru
          _
        // Predicated region
        $region57: #{geomol_forward.1} parent=11 // pred_check
          %p726 = pneg %p500
        $region58: #{geomol_forward.1} parent=11 // pred_check_branch
          %728 = sbr.rel (%p726) target = $region60
        $region59: #{geomol_forward.1} parent=11 // pred_region
          _
        $region60: #{geomol_forward.1} parent=11 // pred_fallthru
          _
        // Predicated region
        $region61: #{geomol_forward.1} parent=11 // pred_check
          %p729 = pneg %p521
        $region62: #{geomol_forward.1} parent=11 // pred_check_branch
          %731 = sbr.rel (%p729) target = $region64
        $region63: #{geomol_forward.1} parent=11 // pred_region
          _
        $region64: #{geomol_forward.1} parent=11 // pred_fallthru
          _
        // Predicated region
        $region65: #{geomol_forward.1} parent=11 // pred_check
          %p732 = pneg %p542
        $region66: #{geomol_forward.1} parent=11 // pred_check_branch
          %734 = sbr.rel (%p732) target = $region68
        $region67: #{geomol_forward.1} parent=11 // pred_region
          _
        $region68: #{geomol_forward.1} parent=11 // pred_fallthru
          _
        // Predicated region
        $region69: #{geomol_forward.1} parent=11 // pred_check
          %p735 = pneg %p563
        $region70: #{geomol_forward.1} parent=11 // pred_check_branch
          %737 = sbr.rel (%p735) target = $region72
        $region71: #{geomol_forward.1} parent=11 // pred_region
          _
        $region72: #{geomol_forward.1} parent=11 // pred_fallthru
          _
        // Predicated region
        $region73: #{geomol_forward.1} parent=11 // pred_check
          %p738 = pneg %p584
        $region74: #{geomol_forward.1} parent=11 // pred_check_branch
          %740 = sbr.rel (%p738) target = $region76
        $region75: #{geomol_forward.1} parent=11 // pred_region
          _
        $region76: #{geomol_forward.1} parent=11 // pred_fallthru
          _
        // Predicated region
        $region77: #{geomol_forward.1} parent=11 // pred_check
          %p741 = pneg %p605
        $region78: #{geomol_forward.1} parent=11 // pred_check_branch
          %743 = sbr.rel (%p741) target = $region80
        $region79: #{geomol_forward.1} parent=11 // pred_region
          _
        $region80: #{geomol_forward.1} parent=11 // pred_fallthru
          _
        // Predicated region
        $region81: #{geomol_forward.1} parent=11 // pred_check
          %p744 = pneg %p626
        $region82: #{geomol_forward.1} parent=11 // pred_check_branch
          %746 = sbr.rel (%p744) target = $region84
        $region83: #{geomol_forward.1} parent=11 // pred_region
          _
        $region84: #{geomol_forward.1} parent=11 // pred_fallthru
          _
      $region12: #{geomol_forward.1} parent=5 // pred_fallthru
        _
      %p747 = scmp.lt.s32.totalorder %s40, 4
      // Predicated region
      $region85: #{geomol_forward.1} parent=5 // pred_check
        %p748 = pneg %p747
      $region86: #{geomol_forward.1} parent=5 // pred_check_branch
        %750 = sbr.rel (%p748) target = $region88
      $region87: #{geomol_forward.1} parent=5 // pred_region
        // Predicated region
        $region89: #{geomol_forward.1} parent=87 // pred_check
          %p751 = pneg %p60
        $region90: #{geomol_forward.1} parent=87 // pred_check_branch
          %753 = sbr.rel (%p751) target = $region92
        $region91: #{geomol_forward.1} parent=87 // pred_region
          %p754 = scmp.lt.s32.totalorder %s40, 3
          %s755 = scalar_select %p754, %s40, 3
          %s756 = smul.addr %s755, 2
          %s757 = smul.addr %s756, 4
          %s758 = scalar_lea.vmem %s0, %s757
        $region92: #{geomol_forward.1} parent=87 // pred_fallthru
          _
        // Predicated region
        $region93: #{geomol_forward.1} parent=87 // pred_check
          %p759 = pneg %p86
        $region94: #{geomol_forward.1} parent=87 // pred_check_branch
          %761 = sbr.rel (%p759) target = $region96
        $region95: #{geomol_forward.1} parent=87 // pred_region
          %p762 = scmp.lt.s32.totalorder %s40, 3
          %s763 = scalar_select %p762, %s40, 3
          %s764 = smul.addr %s763, 4
          %s765 = smul.addr %s764, 4
          %s766 = scalar_lea.vmem %s1, %s765
        $region96: #{geomol_forward.1} parent=87 // pred_fallthru
          _
        // Predicated region
        $region97: #{geomol_forward.1} parent=87 // pred_check
          %p767 = pneg %p112
        $region98: #{geomol_forward.1} parent=87 // pred_check_branch
          %769 = sbr.rel (%p767) target = $region100
        $region99: #{geomol_forward.1} parent=87 // pred_region
          %p770 = scmp.lt.s32.totalorder %s40, 3
          %s771 = scalar_select %p770, %s40, 3
          %s772 = smul.addr %s771, 2
          %s773 = smul.addr %s772, 8
          %s774 = scalar_lea.vmem %s2, %s773
        $region100: #{geomol_forward.1} parent=87 // pred_fallthru
          _
        // Predicated region
        $region101: #{geomol_forward.1} parent=87 // pred_check
          %p775 = pneg %p138
        $region102: #{geomol_forward.1} parent=87 // pred_check_branch
          %777 = sbr.rel (%p775) target = $region104
        $region103: #{geomol_forward.1} parent=87 // pred_region
          %p778 = scmp.lt.s32.totalorder %s40, 3
          %s779 = scalar_select %p778, %s40, 3
          %s780 = smul.addr %s779, 4
          %s781 = smul.addr %s780, 8
          %s782 = scalar_lea.vmem %s3, %s781
        $region104: #{geomol_forward.1} parent=87 // pred_fallthru
          _
        // Predicated region
        $region105: #{geomol_forward.1} parent=87 // pred_check
          %p783 = pneg %p164
        $region106: #{geomol_forward.1} parent=87 // pred_check_branch
          %785 = sbr.rel (%p783) target = $region108
        $region107: #{geomol_forward.1} parent=87 // pred_region
          %p786 = scmp.lt.s32.totalorder %s40, 3
          %s787 = scalar_select %p786, %s40, 3
          %s788 = smul.addr %s787, 4
          %s789 = smul.addr %s788, 4
          %s790 = scalar_lea.vmem %s4, %s789
        $region108: #{geomol_forward.1} parent=87 // pred_fallthru
          _
        // Predicated region
        $region109: #{geomol_forward.1} parent=87 // pred_check
          %p791 = pneg %p190
        $region110: #{geomol_forward.1} parent=87 // pred_check_branch
          %793 = sbr.rel (%p791) target = $region112
        $region111: #{geomol_forward.1} parent=87 // pred_region
          %p794 = scmp.lt.s32.totalorder %s40, 3
          %s795 = scalar_select %p794, %s40, 3
          %s796 = smul.addr %s795, 4
          %s797 = smul.addr %s796, 4
          %s798 = scalar_lea.vmem %s5, %s797
        $region112: #{geomol_forward.1} parent=87 // pred_fallthru
          _
        // Predicated region
        $region113: #{geomol_forward.1} parent=87 // pred_check
          %p799 = pneg %p216
        $region114: #{geomol_forward.1} parent=87 // pred_check_branch
          %801 = sbr.rel (%p799) target = $region116
        $region115: #{geomol_forward.1} parent=87 // pred_region
          %p802 = scmp.lt.s32.totalorder %s40, 3
          %s803 = scalar_select %p802, %s40, 3
          %s804 = smul.addr %s803, 2
          %s805 = smul.addr %s804, 4
          %s806 = scalar_lea.vmem %s6, %s805
        $region116: #{geomol_forward.1} parent=87 // pred_fallthru
          _
        // Predicated region
        $region117: #{geomol_forward.1} parent=87 // pred_check
          %p807 = pneg %p242
        $region118: #{geomol_forward.1} parent=87 // pred_check_branch
          %809 = sbr.rel (%p807) target = $region120
        $region119: #{geomol_forward.1} parent=87 // pred_region
          %p810 = scmp.lt.s32.totalorder %s40, 3
          %s811 = scalar_select %p810, %s40, 3
          %s812 = smul.addr %s811, 2
          %s813 = smul.addr %s812, 8
          %s814 = scalar_lea.vmem %s7, %s813
        $region120: #{geomol_forward.1} parent=87 // pred_fallthru
          _
      $region88: #{geomol_forward.1} parent=5 // pred_fallthru
        _
      %p815 = scmp.le.s32.totalorder 1, %s40
      %p816 = scmp.lt.s32.totalorder %s40, 5
      %p817 = pnand %p815, %p816
      %p818 = pneg %p817
      // Predicated region
      $region121: #{geomol_forward.1} parent=5 // pred_check
        _
      $region122: #{geomol_forward.1} parent=5 // pred_check_branch
        %820 = sbr.rel (%p817) target = $region124
      $region123: #{geomol_forward.1} parent=5 // pred_region
        %s821 = ssub.s32 %s40, 1
        %p822 = scmp.lt.s32.totalorder %s45, 3
        %s823 = scalar_select %p822, %s45, 3
        %s824 = smul.addr %s823, 2
        %s825 = smul.addr %s824, 4
        %s826 = scalar_lea.vmem %s0, %s825
        %p827 = pneg %p66
        %p828 = pneg %p63
        %p829 = scmp.lt.s32.totalorder %s45, 3
        %s830 = scalar_select %p829, %s45, 3
        %s831 = smul.addr %s830, 4
        %s832 = smul.addr %s831, 4
        %s833 = scalar_lea.vmem %s1, %s832
        %p834 = pneg %p92
        %p835 = pneg %p89
        %p836 = scmp.lt.s32.totalorder %s45, 3
        %s837 = scalar_select %p836, %s45, 3
        %s838 = smul.addr %s837, 2
        %s839 = smul.addr %s838, 8
        %s840 = scalar_lea.vmem %s2, %s839
        %p841 = pneg %p118
        %p842 = pneg %p115
        %p843 = scmp.lt.s32.totalorder %s45, 3
        %s844 = scalar_select %p843, %s45, 3
        %s845 = smul.addr %s844, 4
        %s846 = smul.addr %s845, 8
        %s847 = scalar_lea.vmem %s3, %s846
        %p848 = pneg %p144
        %p849 = pneg %p141
        %p850 = scmp.lt.s32.totalorder %s45, 3
        %s851 = scalar_select %p850, %s45, 3
        %s852 = smul.addr %s851, 4
        %s853 = smul.addr %s852, 4
        %s854 = scalar_lea.vmem %s4, %s853
        %p855 = pneg %p170
        %p856 = pneg %p167
        %p857 = scmp.lt.s32.totalorder %s45, 3
        %s858 = scalar_select %p857, %s45, 3
        %s859 = smul.addr %s858, 4
        %s860 = smul.addr %s859, 4
        %s861 = scalar_lea.vmem %s5, %s860
        %p862 = pneg %p196
        %p863 = pneg %p193
        %p864 = scmp.lt.s32.totalorder %s45, 3
        %s865 = scalar_select %p864, %s45, 3
        %s866 = smul.addr %s865, 2
        %s867 = smul.addr %s866, 4
        %s868 = scalar_lea.vmem %s6, %s867
        %p869 = pneg %p222
        %p870 = pneg %p219
        %p871 = scmp.lt.s32.totalorder %s45, 3
        %s872 = scalar_select %p871, %s45, 3
        %s873 = smul.addr %s872, 2
        %s874 = smul.addr %s873, 8
        %s875 = scalar_lea.vmem %s7, %s874
        %p876 = pneg %p248
        %p877 = pneg %p245
        %p878 = pneg %p269
        %p879 = pneg %p266
        %p880 = pneg %p290
        %p881 = pneg %p287
        %p882 = pneg %p311
        %p883 = pneg %p308
        %p884 = pneg %p332
        %p885 = pneg %p329
        %p886 = pneg %p353
        %p887 = pneg %p350
        %p888 = pneg %p374
        %p889 = pneg %p371
        %p890 = pneg %p395
        %p891 = pneg %p392
        %p892 = pneg %p416
        %p893 = pneg %p413
        %p894 = pneg %p437
        %p895 = pneg %p434
        %p896 = pneg %p458
        %p897 = pneg %p455
        %p898 = pneg %p479
        %p899 = pneg %p476
        %p900 = pneg %p500
        %p901 = pneg %p497
        %p902 = pneg %p521
        %p903 = pneg %p518
        %p904 = pneg %p542
        %p905 = pneg %p539
        %p906 = pneg %p563
        %p907 = pneg %p560
        %p908 = pneg %p584
        %p909 = pneg %p581
        %p910 = pneg %p605
        %p911 = pneg %p602
        %p912 = pneg %p626
        %p913 = pneg %p623
        %p914 = pneg %p652
        %p915 = pneg %p649
        %s916 = sand.u32 %s639, 1
        %s917 = scalar_lea.sflag [#allocation3], %s916
        %s918 = sand.u32 %s639, 1
        %s919 = smul.addr %s918, 16
        %s920 = scalar_lea.vmem [#allocation2], %s919
        %p921 = pneg %p678
        %p922 = pneg %p675
        %s923 = sand.u32 %s665, 1
        %s924 = scalar_lea.sflag [#allocation5], %s923
        %s925 = sand.u32 %s665, 1
        %s926 = smul.addr %s925, 32
        %s927 = scalar_lea.vmem [#allocation4], %s926
        %p928 = scmp.lt.s32.totalorder %s45, 3
        %s929 = scalar_select %p928, %s45, 3
        %s930 = smul.addr %s929, 2
        %s931 = smul.addr %s930, 4
        %s932 = scalar_lea.vmem %s0, %s931
        %p933 = scmp.lt.s32.totalorder %s45, 3
        %s934 = scalar_select %p933, %s45, 3
        %s935 = smul.addr %s934, 4
        %s936 = smul.addr %s935, 4
        %s937 = scalar_lea.vmem %s1, %s936
        %p938 = scmp.lt.s32.totalorder %s45, 3
        %s939 = scalar_select %p938, %s45, 3
        %s940 = smul.addr %s939, 2
        %s941 = smul.addr %s940, 8
        %s942 = scalar_lea.vmem %s2, %s941
        %p943 = scmp.lt.s32.totalorder %s45, 3
        %s944 = scalar_select %p943, %s45, 3
        %s945 = smul.addr %s944, 4
        %s946 = smul.addr %s945, 8
        %s947 = scalar_lea.vmem %s3, %s946
        %p948 = scmp.lt.s32.totalorder %s45, 3
        %s949 = scalar_select %p948, %s45, 3
        %s950 = smul.addr %s949, 4
        %s951 = smul.addr %s950, 4
        %s952 = scalar_lea.vmem %s4, %s951
        %p953 = scmp.lt.s32.totalorder %s45, 3
        %s954 = scalar_select %p953, %s45, 3
        %s955 = smul.addr %s954, 4
        %s956 = smul.addr %s955, 4
        %s957 = scalar_lea.vmem %s5, %s956
        %p958 = scmp.lt.s32.totalorder %s45, 3
        %s959 = scalar_select %p958, %s45, 3
        %s960 = smul.addr %s959, 2
        %s961 = smul.addr %s960, 4
        %s962 = scalar_lea.vmem %s6, %s961
        %p963 = scmp.lt.s32.totalorder %s45, 3
        %s964 = scalar_select %p963, %s45, 3
        %s965 = smul.addr %s964, 2
        %s966 = smul.addr %s965, 8
        %s967 = scalar_lea.vmem %s7, %s966
        %v969 = vld [vmem:[%s932] sm:$0xf]
        %v970 = vld [vmem:[%s932 + $0x4] sm:$0xf]
        %v971 = vld [vmem:[%s8] sm:$0xf]
        %v972 = vld [vmem:[%s8 + $0x4] sm:$0xf]
        %v973 = vld [vmem:[%s8 + $0x8] sm:$0xf]
        %v974 = vld [vmem:[%s8 + $0xc] sm:$0xf]
        %v975 = vld [vmem:[%s8 + $0x10] sm:$0xf]
        %v976 = vld [vmem:[%s8 + $0x14] sm:$0xf]
        %v977 = vld [vmem:[%s8 + $0x18] sm:$0xf]
        %v978 = vld [vmem:[%s8 + $0x1c] sm:$0xf]
        %v979 = vld [vmem:[%s8 + $0x20] sm:$0xf]
        %v980 = vld [vmem:[%s8 + $0x24] sm:$0xf]
        %v981 = vld [vmem:[%s8 + $0x28] sm:$0xf]
        %v982 = vld [vmem:[%s8 + $0x2c] sm:$0xf]
        %v983 = vld [vmem:[%s8 + $0x30] sm:$0xf]
        %v984 = vld [vmem:[%s8 + $0x34] sm:$0xf]
        %v985 = vld [vmem:[%s8 + $0x38] sm:$0xf]
        %v986 = vld [vmem:[%s8 + $0x3c] sm:$0xf]
        %v987 = vld [vmem:[%s942] sm:$0xff]
        %v988 = vld [vmem:[%s942 + $0x8] sm:$0xff]
        %v991 = vunpack.c.l.b16 %v969
        %v992 = vunpack.c.l.b16 %v970
        %v993 = vpack.c.b16 %v992, %v991
        %v1011 = vunpack.c.l.b16 %v971
        %v1012 = vunpack.c.l.b16 %v972
        %v1013 = vunpack.c.l.b16 %v973
        %v1014 = vunpack.c.l.b16 %v974
        %v1015 = vunpack.c.l.b16 %v975
        %v1016 = vunpack.c.l.b16 %v976
        %v1017 = vunpack.c.l.b16 %v977
        %v1018 = vunpack.c.l.b16 %v978
        %v1019 = vunpack.c.l.b16 %v979
        %v1020 = vunpack.c.l.b16 %v980
        %v1021 = vunpack.c.l.b16 %v981
        %v1022 = vunpack.c.l.b16 %v982
        %v1023 = vunpack.c.l.b16 %v983
        %v1024 = vunpack.c.l.b16 %v984
        %v1025 = vunpack.c.l.b16 %v985
        %v1026 = vunpack.c.l.b16 %v986
        %v1027 = vpack.c.b16 %v1012, %v1011
        %v1028 = vpack.c.b16 %v1014, %v1013
        %v1029 = vpack.c.b16 %v1016, %v1015
        %v1030 = vpack.c.b16 %v1018, %v1017
        %v1031 = vpack.c.b16 %v1020, %v1019
        %v1032 = vpack.c.b16 %v1022, %v1021
        %v1033 = vpack.c.b16 %v1024, %v1023
        %v1034 = vpack.c.b16 %v1026, %v1025
        %1043 = vmatpush.bf16.msra.mxu0 %v1034
        %1044 = vmatpush.bf16.msra.mxu0 %v1033
        %1045 = vmatpush.bf16.msra.mxu0 %v1032
        %1046 = vmatpush.bf16.msra.mxu0 %v1031
        %1047 = vmatpush.bf16.msra.mxu0 %v1030
        %1048 = vmatpush.bf16.msra.mxu0 %v1029
        %1049 = vmatpush.bf16.msra.mxu0 %v1028
        %1050 = vmatpush.bf16.msra.mxu0 %v1027
        %1051 = vmatmul.bf16.gmra.mxu0 %v993
        %v1052 = vpop.f32.mrf.mxu0
        %v1053 = vadd.f32 %v987, %v1052
        %v1054 = vpop.f32.mrf.mxu0
        %v1055 = vadd.f32 %v988, %v1054
        %1056 = vdwg.mxu0
        %v1057 = vmax.f32 %v1053, 0.0
        %v1058 = vmax.f32 %v1055, 0.0
        %v1059 = vpack.c.bf16 %v1058, %v1057
        %v1060 = vld [vmem:[%s9] sm:$0xf]
        %v1061 = vld [vmem:[%s9 + $0x4] sm:$0xf]
        %v1062 = vld [vmem:[%s9 + $0x8] sm:$0xf]
        %v1063 = vld [vmem:[%s9 + $0xc] sm:$0xf]
        %v1064 = vld [vmem:[%s9 + $0x10] sm:$0xf]
        %v1065 = vld [vmem:[%s9 + $0x14] sm:$0xf]
        %v1066 = vld [vmem:[%s9 + $0x18] sm:$0xf]
        %v1067 = vld [vmem:[%s9 + $0x1c] sm:$0xf]
        %v1068 = vld [vmem:[%s9 + $0x20] sm:$0xf]
        %v1069 = vld [vmem:[%s9 + $0x24] sm:$0xf]
        %v1070 = vld [vmem:[%s9 + $0x28] sm:$0xf]
        %v1071 = vld [vmem:[%s9 + $0x2c] sm:$0xf]
        %v1072 = vld [vmem:[%s9 + $0x30] sm:$0xf]
        %v1073 = vld [vmem:[%s9 + $0x34] sm:$0xf]
        %v1074 = vld [vmem:[%s9 + $0x38] sm:$0xf]
        %v1075 = vld [vmem:[%s9 + $0x3c] sm:$0xf]
        %v1076 = vld [vmem:[%s10] sm:$0x1]
        %v1078 = vperm.slane %v1076, 0
        %v1096 = vunpack.c.l.b16 %v1060
        %v1097 = vunpack.c.l.b16 %v1061
        %v1098 = vunpack.c.l.b16 %v1062
        %v1099 = vunpack.c.l.b16 %v1063
        %v1100 = vunpack.c.l.b16 %v1064
        %v1101 = vunpack.c.l.b16 %v1065
        %v1102 = vunpack.c.l.b16 %v1066
        %v1103 = vunpack.c.l.b16 %v1067
        %v1104 = vunpack.c.l.b16 %v1068
        %v1105 = vunpack.c.l.b16 %v1069
        %v1106 = vunpack.c.l.b16 %v1070
        %v1107 = vunpack.c.l.b16 %v1071
        %v1108 = vunpack.c.l.b16 %v1072
        %v1109 = vunpack.c.l.b16 %v1073
        %v1110 = vunpack.c.l.b16 %v1074
        %v1111 = vunpack.c.l.b16 %v1075
        %v1112 = vpack.c.b16 %v1097, %v1096
        %v1113 = vpack.c.b16 %v1099, %v1098
        %v1114 = vpack.c.b16 %v1101, %v1100
        %v1115 = vpack.c.b16 %v1103, %v1102
        %v1116 = vpack.c.b16 %v1105, %v1104
        %v1117 = vpack.c.b16 %v1107, %v1106
        %v1118 = vpack.c.b16 %v1109, %v1108
        %v1119 = vpack.c.b16 %v1111, %v1110
        %1128 = vmatpush.bf16.msra.mxu0 %v1119
        %1129 = vmatpush.bf16.msra.mxu0 %v1118
        %1130 = vmatpush.bf16.msra.mxu0 %v1117
        %1131 = vmatpush.bf16.msra.mxu0 %v1116
        %1132 = vmatpush.bf16.msra.mxu0 %v1115
        %1133 = vmatpush.bf16.msra.mxu0 %v1114
        %1134 = vmatpush.bf16.msra.mxu0 %v1113
        %1135 = vmatpush.bf16.msra.mxu0 %v1112
        %1136 = vmatmul.bf16.gmra.mxu0 %v1059
        %v1137 = vpop.f32.mrf.mxu0
        %v1138 = vadd.f32 %v1078, %v1137
        %v1139 = vpop.f32.mrf.mxu0
        %v1140 = vadd.f32 %v1078, %v1139
        %1141 = vdwg.mxu0
        %v1142 = vld [vmem:[%s937] sm:$0xf]
        %v1143 = vld [vmem:[%s937 + $0x4] sm:$0xf]
        %v1144 = vld [vmem:[%s937 + $0x8] sm:$0xf]
        %v1145 = vld [vmem:[%s937 + $0xc] sm:$0xf]
        %v1146 = vld [vmem:[%s11] sm:$0xf]
        %v1147 = vld [vmem:[%s11 + $0x4] sm:$0xf]
        %v1148 = vld [vmem:[%s11 + $0x8] sm:$0xf]
        %v1149 = vld [vmem:[%s11 + $0xc] sm:$0xf]
        %v1150 = vld [vmem:[%s11 + $0x10] sm:$0xf]
        %v1151 = vld [vmem:[%s11 + $0x14] sm:$0xf]
        %v1152 = vld [vmem:[%s11 + $0x18] sm:$0xf]
        %v1153 = vld [vmem:[%s11 + $0x1c] sm:$0xf]
        %v1154 = vld [vmem:[%s11 + $0x20] sm:$0xf]
        %v1155 = vld [vmem:[%s11 + $0x24] sm:$0xf]
        %v1156 = vld [vmem:[%s11 + $0x28] sm:$0xf]
        %v1157 = vld [vmem:[%s11 + $0x2c] sm:$0xf]
        %v1158 = vld [vmem:[%s11 + $0x30] sm:$0xf]
        %v1159 = vld [vmem:[%s11 + $0x34] sm:$0xf]
        %v1160 = vld [vmem:[%s11 + $0x38] sm:$0xf]
        %v1161 = vld [vmem:[%s11 + $0x3c] sm:$0xf]
        %v1162 = vld [vmem:[%s947] sm:$0xff]
        %v1163 = vld [vmem:[%s947 + $0x8] sm:$0xff]
        %v1164 = vld [vmem:[%s947 + $0x10] sm:$0xff]
        %v1165 = vld [vmem:[%s947 + $0x18] sm:$0xff]
        %v1170 = vunpack.c.l.b16 %v1142
        %v1171 = vunpack.c.l.b16 %v1143
        %v1172 = vunpack.c.l.b16 %v1144
        %v1173 = vunpack.c.l.b16 %v1145
        %v1174 = vpack.c.b16 %v1171, %v1170
        %v1175 = vpack.c.b16 %v1173, %v1172
        %v1194 = vunpack.c.l.b16 %v1146
        %v1195 = vunpack.c.l.b16 %v1147
        %v1196 = vunpack.c.l.b16 %v1148
        %v1197 = vunpack.c.l.b16 %v1149
        %v1198 = vunpack.c.l.b16 %v1150
        %v1199 = vunpack.c.l.b16 %v1151
        %v1200 = vunpack.c.l.b16 %v1152
        %v1201 = vunpack.c.l.b16 %v1153
        %v1202 = vunpack.c.l.b16 %v1154
        %v1203 = vunpack.c.l.b16 %v1155
        %v1204 = vunpack.c.l.b16 %v1156
        %v1205 = vunpack.c.l.b16 %v1157
        %v1206 = vunpack.c.l.b16 %v1158
        %v1207 = vunpack.c.l.b16 %v1159
        %v1208 = vunpack.c.l.b16 %v1160
        %v1209 = vunpack.c.l.b16 %v1161
        %v1210 = vpack.c.b16 %v1195, %v1194
        %v1211 = vpack.c.b16 %v1197, %v1196
        %v1212 = vpack.c.b16 %v1199, %v1198
        %v1213 = vpack.c.b16 %v1201, %v1200
        %v1214 = vpack.c.b16 %v1203, %v1202
        %v1215 = vpack.c.b16 %v1205, %v1204
        %v1216 = vpack.c.b16 %v1207, %v1206
        %v1217 = vpack.c.b16 %v1209, %v1208
        %1226 = vmatpush.bf16.msra.mxu0 %v1217
        %1227 = vmatpush.bf16.msra.mxu0 %v1216
        %1228 = vmatpush.bf16.msra.mxu0 %v1215
        %1229 = vmatpush.bf16.msra.mxu0 %v1214
        %1230 = vmatpush.bf16.msra.mxu0 %v1213
        %1231 = vmatpush.bf16.msra.mxu0 %v1212
        %1232 = vmatpush.bf16.msra.mxu0 %v1211
        %1233 = vmatpush.bf16.msra.mxu0 %v1210
        %1234 = vmatmul.bf16.gmra.mxu0 %v1174
        %v1235 = vpop.f32.mrf.mxu0
        %v1236 = vadd.f32 %v1162, %v1235
        %v1237 = vpop.f32.mrf.mxu0
        %v1238 = vadd.f32 %v1163, %v1237
        %1239 = vmatmul.bf16.gmra.mxu0 %v1175
        %v1240 = vpop.f32.mrf.mxu0
        %v1241 = vadd.f32 %v1164, %v1240
        %v1242 = vpop.f32.mrf.mxu0
        %v1243 = vadd.f32 %v1165, %v1242
        %1244 = vdwg.mxu0
        %v1245 = vmax.f32 %v1236, 0.0
        %v1246 = vmax.f32 %v1238, 0.0
        %v1247 = vmax.f32 %v1241, 0.0
        %v1248 = vmax.f32 %v1243, 0.0
        %v1249 = vpack.c.bf16 %v1246, %v1245
        %v1250 = vpack.c.bf16 %v1248, %v1247
        %v1251 = vld [vmem:[%s12] sm:$0xf]
        %v1252 = vld [vmem:[%s12 + $0x4] sm:$0xf]
        %v1253 = vld [vmem:[%s12 + $0x8] sm:$0xf]
        %v1254 = vld [vmem:[%s12 + $0xc] sm:$0xf]
        %v1255 = vld [vmem:[%s12 + $0x10] sm:$0xf]
        %v1256 = vld [vmem:[%s12 + $0x14] sm:$0xf]
        %v1257 = vld [vmem:[%s12 + $0x18] sm:$0xf]
        %v1258 = vld [vmem:[%s12 + $0x1c] sm:$0xf]
        %v1259 = vld [vmem:[%s12 + $0x20] sm:$0xf]
        %v1260 = vld [vmem:[%s12 + $0x24] sm:$0xf]
        %v1261 = vld [vmem:[%s12 + $0x28] sm:$0xf]
        %v1262 = vld [vmem:[%s12 + $0x2c] sm:$0xf]
        %v1263 = vld [vmem:[%s12 + $0x30] sm:$0xf]
        %v1264 = vld [vmem:[%s12 + $0x34] sm:$0xf]
        %v1265 = vld [vmem:[%s12 + $0x38] sm:$0xf]
        %v1266 = vld [vmem:[%s12 + $0x3c] sm:$0xf]
        %v1267 = vld [vmem:[%s13] sm:$0x1]
        %v1269 = vperm.slane %v1267, 0
        %v1287 = vunpack.c.l.b16 %v1251
        %v1288 = vunpack.c.l.b16 %v1252
        %v1289 = vunpack.c.l.b16 %v1253
        %v1290 = vunpack.c.l.b16 %v1254
        %v1291 = vunpack.c.l.b16 %v1255
        %v1292 = vunpack.c.l.b16 %v1256
        %v1293 = vunpack.c.l.b16 %v1257
        %v1294 = vunpack.c.l.b16 %v1258
        %v1295 = vunpack.c.l.b16 %v1259
        %v1296 = vunpack.c.l.b16 %v1260
        %v1297 = vunpack.c.l.b16 %v1261
        %v1298 = vunpack.c.l.b16 %v1262
        %v1299 = vunpack.c.l.b16 %v1263
        %v1300 = vunpack.c.l.b16 %v1264
        %v1301 = vunpack.c.l.b16 %v1265
        %v1302 = vunpack.c.l.b16 %v1266
        %v1303 = vpack.c.b16 %v1288, %v1287
        %v1304 = vpack.c.b16 %v1290, %v1289
        %v1305 = vpack.c.b16 %v1292, %v1291
        %v1306 = vpack.c.b16 %v1294, %v1293
        %v1307 = vpack.c.b16 %v1296, %v1295
        %v1308 = vpack.c.b16 %v1298, %v1297
        %v1309 = vpack.c.b16 %v1300, %v1299
        %v1310 = vpack.c.b16 %v1302, %v1301
        %1319 = vmatpush.bf16.msra.mxu0 %v1310
        %1320 = vmatpush.bf16.msra.mxu0 %v1309
        %1321 = vmatpush.bf16.msra.mxu0 %v1308
        %1322 = vmatpush.bf16.msra.mxu0 %v1307
        %1323 = vmatpush.bf16.msra.mxu0 %v1306
        %1324 = vmatpush.bf16.msra.mxu0 %v1305
        %1325 = vmatpush.bf16.msra.mxu0 %v1304
        %1326 = vmatpush.bf16.msra.mxu0 %v1303
        %1327 = vmatmul.bf16.gmra.mxu0 %v1249
        %v1328 = vpop.f32.mrf.mxu0
        %v1329 = vadd.f32 %v1269, %v1328
        %v1330 = vpop.f32.mrf.mxu0
        %v1331 = vadd.f32 %v1269, %v1330
        %1332 = vmatmul.bf16.gmra.mxu0 %v1250
        %v1333 = vpop.f32.mrf.mxu0
        %v1334 = vadd.f32 %v1269, %v1333
        %v1335 = vpop.f32.mrf.mxu0
        %v1336 = vadd.f32 %v1269, %v1335
        %1337 = vdwg.mxu0
        %v1338 = vld [vmem:[%s952] sm:$0xf]
        %v1339 = vld [vmem:[%s952 + $0x4] sm:$0xf]
        %v1340 = vld [vmem:[%s952 + $0x8] sm:$0xf]
        %v1341 = vld [vmem:[%s952 + $0xc] sm:$0xf]
        %v1342 = vld [vmem:[%s957] sm:$0xf]
        %v1343 = vld [vmem:[%s957 + $0x4] sm:$0xf]
        %v1344 = vld [vmem:[%s957 + $0x8] sm:$0xf]
        %v1345 = vld [vmem:[%s957 + $0xc] sm:$0xf]
        %v1346 = vld [vmem:[%s962] sm:$0xf]
        %v1347 = vld [vmem:[%s962 + $0x4] sm:$0xf]
        %v1348 = vld [vmem:[%s967] sm:$0xff]
        %v1349 = vld [vmem:[%s967 + $0x8] sm:$0xff]
        %v1350 = vld [vmem:[%s15] sm:$0x1]
        %v1351 = vld [vmem:[%s17] sm:$0x1]
        %v1352 = vld [vmem:[%s19] sm:$0x1]
        %v1353 = vld [vmem:[%s21] sm:$0x1]
        %v1354 = vld [vmem:[%s23] sm:$0x1]
        %v1355 = vld [vmem:[%s25] sm:$0x1]
        %v1356 = vpack.c.bf16 %v1138, %v1138
        %v1357 = vpack.c.bf16 %v1140, %v1140
        %v1358 = vpack.c.bf16 %v1329, %v1329
        %v1359 = vpack.c.bf16 %v1331, %v1331
        %v1360 = vpack.c.bf16 %v1334, %v1334
        %v1361 = vpack.c.bf16 %v1336, %v1336
        %v1366 = vunpack.c.l.b16 %v1338
        %v1367 = vunpack.c.l.b16 %v1339
        %v1368 = vunpack.c.l.b16 %v1340
        %v1369 = vunpack.c.l.b16 %v1341
        %v1370 = vpack.c.b16 %v1367, %v1366
        %v1371 = vpack.c.b16 %v1369, %v1368
        %v1374 = vunpack.c.l.b16 %v1356
        %v1375 = vunpack.c.l.b16 %v1357
        %v1376 = vpack.c.b16 %v1375, %v1374
        %vm1378 = vcmask 130048
        %v1380 = vsel %vm1378, %v1370, 0
        %v1383 = vsel %vm1378, %v1371, 0
        %1385 = vmatpush.bf16.msra.mxu0 0
        %1386 = vmatpush.bf16.msra.mxu0 0
        %1387 = vmatpush.bf16.msra.mxu0 0
        %1388 = vmatpush.bf16.msra.mxu0 0
        %1389 = vmatpush.bf16.msra.mxu0 0
        %1390 = vmatpush.bf16.msra.mxu0 0
        %1391 = vmatpush.bf16.msra.mxu0 0
        %1392 = vmatpush.bf16.msra.mxu0 %v1376
        %1393 = vmatmul.bf16.gmra.mxu0 %v1380
        %v1394 = vpop.f32.mrf.mxu0
        %v1395 = vadd.f32 0.0, %v1394
        %v1396 = vpop.f32.mrf.mxu0
        %v1397 = vadd.f32 0.0, %v1396
        %1398 = vmatmul.bf16.gmra.mxu0 %v1383
        %v1399 = vpop.f32.mrf.mxu0
        %v1400 = vadd.f32 0.0, %v1399
        %v1401 = vpop.f32.mrf.mxu0
        %v1402 = vadd.f32 0.0, %v1401
        %1403 = vdwg.mxu0
        %v1404 = vpack.c.bf16 %v1395, %v1395
        %v1405 = vpack.c.bf16 %v1397, %v1397
        %v1406 = vpack.c.bf16 %v1400, %v1400
        %v1407 = vpack.c.bf16 %v1402, %v1402
        %v1412 = vunpack.c.l.b16 %v1342
        %v1413 = vunpack.c.l.b16 %v1343
        %v1414 = vunpack.c.l.b16 %v1344
        %v1415 = vunpack.c.l.b16 %v1345
        %v1416 = vpack.c.b16 %v1413, %v1412
        %v1417 = vpack.c.b16 %v1415, %v1414
        %v1419 = vsel %vm1378, %v1416, 0
        %v1422 = vsel %vm1378, %v1417, 0
        %1424 = vmatpush.bf16.msra.mxu0 0
        %1425 = vmatpush.bf16.msra.mxu0 0
        %1426 = vmatpush.bf16.msra.mxu0 0
        %1427 = vmatpush.bf16.msra.mxu0 0
        %1428 = vmatpush.bf16.msra.mxu0 0
        %1429 = vmatpush.bf16.msra.mxu0 0
        %1430 = vmatpush.bf16.msra.mxu0 0
        %1431 = vmatpush.bf16.msra.mxu0 %v1376
        %1432 = vmatmul.bf16.gmra.mxu0 %v1419
        %v1433 = vpop.f32.mrf.mxu0
        %v1434 = vadd.f32 0.0, %v1433
        %v1435 = vpop.f32.mrf.mxu0
        %v1436 = vadd.f32 0.0, %v1435
        %1437 = vmatmul.bf16.gmra.mxu0 %v1422
        %v1438 = vpop.f32.mrf.mxu0
        %v1439 = vadd.f32 0.0, %v1438
        %v1440 = vpop.f32.mrf.mxu0
        %v1441 = vadd.f32 0.0, %v1440
        %1442 = vdwg.mxu0
        %v1443 = vpack.c.bf16 %v1434, %v1434
        %v1444 = vpack.c.bf16 %v1436, %v1436
        %v1445 = vpack.c.bf16 %v1439, %v1439
        %v1446 = vpack.c.bf16 %v1441, %v1441
        %v1451 = vunpack.c.l.b16 %v1404
        %v1452 = vunpack.c.l.b16 %v1405
        %v1453 = vunpack.c.l.b16 %v1406
        %v1454 = vunpack.c.l.b16 %v1407
        %v1455 = vpack.c.b16 %v1452, %v1451
        %v1456 = vpack.c.b16 %v1454, %v1453
        %v1463 = vunpack.c.l.b16 %v1443
        %v1464 = vunpack.c.l.b16 %v1444
        %v1465 = vunpack.c.l.b16 %v1445
        %v1466 = vunpack.c.l.b16 %v1446
        %v1467 = vpack.c.b16 %v1464, %v1463
        %v1468 = vpack.c.b16 %v1466, %v1465
        %v1475 = vunpack.c.l.b16 %v1358
        %v1476 = vunpack.c.l.b16 %v1359
        %v1477 = vunpack.c.l.b16 %v1360
        %v1478 = vunpack.c.l.b16 %v1361
        %v1479 = vpack.c.b16 %v1476, %v1475
        %v1480 = vpack.c.b16 %v1478, %v1477
        %v1483 = vld [vmem:[%s14] sm:$0xf]
        %v1484 = vld [vmem:[%s14 + $0x4] sm:$0xf]
        %v1485 = vld [vmem:[%s14 + $0x8] sm:$0xf]
        %v1486 = vld [vmem:[%s14 + $0xc] sm:$0xf]
        %v1487 = vld [vmem:[%s14 + $0x10] sm:$0xf]
        %v1488 = vld [vmem:[%s14 + $0x14] sm:$0xf]
        %v1489 = vld [vmem:[%s14 + $0x18] sm:$0xf]
        %v1490 = vld [vmem:[%s14 + $0x1c] sm:$0xf]
        %v1491 = vld [vmem:[%s14 + $0x20] sm:$0xf]
        %v1492 = vld [vmem:[%s14 + $0x24] sm:$0xf]
        %v1493 = vld [vmem:[%s14 + $0x28] sm:$0xf]
        %v1494 = vld [vmem:[%s14 + $0x2c] sm:$0xf]
        %v1495 = vld [vmem:[%s14 + $0x30] sm:$0xf]
        %v1496 = vld [vmem:[%s14 + $0x34] sm:$0xf]
        %v1497 = vld [vmem:[%s14 + $0x38] sm:$0xf]
        %v1498 = vld [vmem:[%s14 + $0x3c] sm:$0xf]
        %v1499 = vld [vmem:[%s14 + $0x40] sm:$0xf]
        %v1500 = vld [vmem:[%s14 + $0x44] sm:$0xf]
        %v1501 = vld [vmem:[%s14 + $0x48] sm:$0xf]
        %v1502 = vld [vmem:[%s14 + $0x4c] sm:$0xf]
        %v1503 = vld [vmem:[%s14 + $0x50] sm:$0xf]
        %v1504 = vld [vmem:[%s14 + $0x54] sm:$0xf]
        %v1505 = vld [vmem:[%s14 + $0x58] sm:$0xf]
        %v1506 = vld [vmem:[%s14 + $0x5c] sm:$0xf]
        %v1507 = vld [vmem:[%s14 + $0x60] sm:$0xf]
        %v1508 = vld [vmem:[%s14 + $0x64] sm:$0xf]
        %v1509 = vld [vmem:[%s14 + $0x68] sm:$0xf]
        %v1510 = vld [vmem:[%s14 + $0x6c] sm:$0xf]
        %v1511 = vld [vmem:[%s14 + $0x70] sm:$0xf]
        %v1512 = vld [vmem:[%s14 + $0x74] sm:$0xf]
        %v1513 = vld [vmem:[%s14 + $0x78] sm:$0xf]
        %v1514 = vld [vmem:[%s14 + $0x7c] sm:$0xf]
        %v1515 = vld [vmem:[%s14 + $0x80] sm:$0xf]
        %v1516 = vld [vmem:[%s14 + $0x84] sm:$0xf]
        %v1517 = vld [vmem:[%s14 + $0x88] sm:$0xf]
        %v1518 = vld [vmem:[%s14 + $0x8c] sm:$0xf]
        %v1519 = vld [vmem:[%s14 + $0x90] sm:$0xf]
        %v1520 = vld [vmem:[%s14 + $0x94] sm:$0xf]
        %v1521 = vld [vmem:[%s14 + $0x98] sm:$0xf]
        %v1522 = vld [vmem:[%s14 + $0x9c] sm:$0xf]
        %v1523 = vld [vmem:[%s14 + $0xa0] sm:$0xf]
        %v1524 = vld [vmem:[%s14 + $0xa4] sm:$0xf]
        %v1525 = vld [vmem:[%s14 + $0xa8] sm:$0xf]
        %v1526 = vld [vmem:[%s14 + $0xac] sm:$0xf]
        %v1527 = vld [vmem:[%s14 + $0xb0] sm:$0xf]
        %v1528 = vld [vmem:[%s14 + $0xb4] sm:$0xf]
        %v1529 = vld [vmem:[%s14 + $0xb8] sm:$0xf]
        %v1530 = vld [vmem:[%s14 + $0xbc] sm:$0xf]
        %v1532 = vperm.slane %v1350, 0
        %v1582 = vunpack.c.l.b16 %v1483
        %v1583 = vunpack.c.l.b16 %v1484
        %v1584 = vunpack.c.l.b16 %v1485
        %v1585 = vunpack.c.l.b16 %v1486
        %v1586 = vunpack.c.l.b16 %v1487
        %v1587 = vunpack.c.l.b16 %v1488
        %v1588 = vunpack.c.l.b16 %v1489
        %v1589 = vunpack.c.l.b16 %v1490
        %v1590 = vunpack.c.l.b16 %v1491
        %v1591 = vunpack.c.l.b16 %v1492
        %v1592 = vunpack.c.l.b16 %v1493
        %v1593 = vunpack.c.l.b16 %v1494
        %v1594 = vunpack.c.l.b16 %v1495
        %v1595 = vunpack.c.l.b16 %v1496
        %v1596 = vunpack.c.l.b16 %v1497
        %v1597 = vunpack.c.l.b16 %v1498
        %v1598 = vunpack.c.l.b16 %v1499
        %v1599 = vunpack.c.l.b16 %v1500
        %v1600 = vunpack.c.l.b16 %v1501
        %v1601 = vunpack.c.l.b16 %v1502
        %v1602 = vunpack.c.l.b16 %v1503
        %v1603 = vunpack.c.l.b16 %v1504
        %v1604 = vunpack.c.l.b16 %v1505
        %v1605 = vunpack.c.l.b16 %v1506
        %v1606 = vunpack.c.l.b16 %v1507
        %v1607 = vunpack.c.l.b16 %v1508
        %v1608 = vunpack.c.l.b16 %v1509
        %v1609 = vunpack.c.l.b16 %v1510
        %v1610 = vunpack.c.l.b16 %v1511
        %v1611 = vunpack.c.l.b16 %v1512
        %v1612 = vunpack.c.l.b16 %v1513
        %v1613 = vunpack.c.l.b16 %v1514
        %v1614 = vunpack.c.l.b16 %v1515
        %v1615 = vunpack.c.l.b16 %v1516
        %v1616 = vunpack.c.l.b16 %v1517
        %v1617 = vunpack.c.l.b16 %v1518
        %v1618 = vunpack.c.l.b16 %v1519
        %v1619 = vunpack.c.l.b16 %v1520
        %v1620 = vunpack.c.l.b16 %v1521
        %v1621 = vunpack.c.l.b16 %v1522
        %v1622 = vunpack.c.l.b16 %v1523
        %v1623 = vunpack.c.l.b16 %v1524
        %v1624 = vunpack.c.l.b16 %v1525
        %v1625 = vunpack.c.l.b16 %v1526
        %v1626 = vunpack.c.l.b16 %v1527
        %v1627 = vunpack.c.l.b16 %v1528
        %v1628 = vunpack.c.l.b16 %v1529
        %v1629 = vunpack.c.l.b16 %v1530
        %v1630 = vpack.c.b16 %v1583, %v1582
        %v1631 = vpack.c.b16 %v1585, %v1584
        %v1632 = vpack.c.b16 %v1587, %v1586
        %v1633 = vpack.c.b16 %v1589, %v1588
        %v1634 = vpack.c.b16 %v1591, %v1590
        %v1635 = vpack.c.b16 %v1593, %v1592
        %v1636 = vpack.c.b16 %v1595, %v1594
        %v1637 = vpack.c.b16 %v1597, %v1596
        %v1638 = vpack.c.b16 %v1599, %v1598
        %v1639 = vpack.c.b16 %v1601, %v1600
        %v1640 = vpack.c.b16 %v1603, %v1602
        %v1641 = vpack.c.b16 %v1605, %v1604
        %v1642 = vpack.c.b16 %v1607, %v1606
        %v1643 = vpack.c.b16 %v1609, %v1608
        %v1644 = vpack.c.b16 %v1611, %v1610
        %v1645 = vpack.c.b16 %v1613, %v1612
        %v1646 = vpack.c.b16 %v1615, %v1614
        %v1647 = vpack.c.b16 %v1617, %v1616
        %v1648 = vpack.c.b16 %v1619, %v1618
        %v1649 = vpack.c.b16 %v1621, %v1620
        %v1650 = vpack.c.b16 %v1623, %v1622
        %v1651 = vpack.c.b16 %v1625, %v1624
        %v1652 = vpack.c.b16 %v1627, %v1626
        %v1653 = vpack.c.b16 %v1629, %v1628
        %1678 = vmatpush.bf16.msra.mxu0 %v1637
        %1679 = vmatpush.bf16.msra.mxu0 %v1636
        %1680 = vmatpush.bf16.msra.mxu0 %v1635
        %1681 = vmatpush.bf16.msra.mxu0 %v1634
        %1682 = vmatpush.bf16.msra.mxu0 %v1633
        %1683 = vmatpush.bf16.msra.mxu0 %v1632
        %1684 = vmatpush.bf16.msra.mxu0 %v1631
        %1685 = vmatpush.bf16.msra.mxu0 %v1630
        %1686 = vmatmul.bf16.gmra.mxu0 %v1455
        %v1687 = vpop.f32.mrf.mxu0
        %v1688 = vadd.f32 %v1532, %v1687
        %v1689 = vpop.f32.mrf.mxu0
        %v1690 = vadd.f32 %v1532, %v1689
        %1691 = vmatmul.bf16.gmra.mxu0 %v1456
        %v1692 = vpop.f32.mrf.mxu0
        %v1693 = vadd.f32 %v1532, %v1692
        %v1694 = vpop.f32.mrf.mxu0
        %v1695 = vadd.f32 %v1532, %v1694
        %1696 = vdwg.mxu0
        %1697 = vmatpush.bf16.msra.mxu0 %v1645
        %1698 = vmatpush.bf16.msra.mxu0 %v1644
        %1699 = vmatpush.bf16.msra.mxu0 %v1643
        %1700 = vmatpush.bf16.msra.mxu0 %v1642
        %1701 = vmatpush.bf16.msra.mxu0 %v1641
        %1702 = vmatpush.bf16.msra.mxu0 %v1640
        %1703 = vmatpush.bf16.msra.mxu0 %v1639
        %1704 = vmatpush.bf16.msra.mxu0 %v1638
        %1705 = vmatmul.bf16.gmra.mxu0 %v1467
        %v1706 = vpop.f32.mrf.mxu0
        %v1707 = vadd.f32 %v1688, %v1706
        %v1708 = vpop.f32.mrf.mxu0
        %v1709 = vadd.f32 %v1690, %v1708
        %1710 = vmatmul.bf16.gmra.mxu0 %v1468
        %v1711 = vpop.f32.mrf.mxu0
        %v1712 = vadd.f32 %v1693, %v1711
        %v1713 = vpop.f32.mrf.mxu0
        %v1714 = vadd.f32 %v1695, %v1713
        %1715 = vdwg.mxu0
        %1716 = vmatpush.bf16.msra.mxu0 %v1653
        %1717 = vmatpush.bf16.msra.mxu0 %v1652
        %1718 = vmatpush.bf16.msra.mxu0 %v1651
        %1719 = vmatpush.bf16.msra.mxu0 %v1650
        %1720 = vmatpush.bf16.msra.mxu0 %v1649
        %1721 = vmatpush.bf16.msra.mxu0 %v1648
        %1722 = vmatpush.bf16.msra.mxu0 %v1647
        %1723 = vmatpush.bf16.msra.mxu0 %v1646
        %1724 = vmatmul.bf16.gmra.mxu0 %v1479
        %v1725 = vpop.f32.mrf.mxu0
        %v1726 = vadd.f32 %v1707, %v1725
        %v1727 = vpop.f32.mrf.mxu0
        %v1728 = vadd.f32 %v1709, %v1727
        %1729 = vmatmul.bf16.gmra.mxu0 %v1480
        %v1730 = vpop.f32.mrf.mxu0
        %v1731 = vadd.f32 %v1712, %v1730
        %v1732 = vpop.f32.mrf.mxu0
        %v1733 = vadd.f32 %v1714, %v1732
        %1734 = vdwg.mxu0
        %v1735 = vmax.f32 %v1726, 0.0
        %v1736 = vmax.f32 %v1728, 0.0
        %v1737 = vmax.f32 %v1731, 0.0
        %v1738 = vmax.f32 %v1733, 0.0
        %v1739 = vpack.c.bf16 %v1736, %v1735
        %v1740 = vpack.c.bf16 %v1738, %v1737
        %v1741 = vld [vmem:[%s16] sm:$0xf]
        %v1742 = vld [vmem:[%s16 + $0x4] sm:$0xf]
        %v1743 = vld [vmem:[%s16 + $0x8] sm:$0xf]
        %v1744 = vld [vmem:[%s16 + $0xc] sm:$0xf]
        %v1745 = vld [vmem:[%s16 + $0x10] sm:$0xf]
        %v1746 = vld [vmem:[%s16 + $0x14] sm:$0xf]
        %v1747 = vld [vmem:[%s16 + $0x18] sm:$0xf]
        %v1748 = vld [vmem:[%s16 + $0x1c] sm:$0xf]
        %v1749 = vld [vmem:[%s16 + $0x20] sm:$0xf]
        %v1750 = vld [vmem:[%s16 + $0x24] sm:$0xf]
        %v1751 = vld [vmem:[%s16 + $0x28] sm:$0xf]
        %v1752 = vld [vmem:[%s16 + $0x2c] sm:$0xf]
        %v1753 = vld [vmem:[%s16 + $0x30] sm:$0xf]
        %v1754 = vld [vmem:[%s16 + $0x34] sm:$0xf]
        %v1755 = vld [vmem:[%s16 + $0x38] sm:$0xf]
        %v1756 = vld [vmem:[%s16 + $0x3c] sm:$0xf]
        %v1758 = vperm.slane %v1351, 0
        %v1776 = vunpack.c.l.b16 %v1741
        %v1777 = vunpack.c.l.b16 %v1742
        %v1778 = vunpack.c.l.b16 %v1743
        %v1779 = vunpack.c.l.b16 %v1744
        %v1780 = vunpack.c.l.b16 %v1745
        %v1781 = vunpack.c.l.b16 %v1746
        %v1782 = vunpack.c.l.b16 %v1747
        %v1783 = vunpack.c.l.b16 %v1748
        %v1784 = vunpack.c.l.b16 %v1749
        %v1785 = vunpack.c.l.b16 %v1750
        %v1786 = vunpack.c.l.b16 %v1751
        %v1787 = vunpack.c.l.b16 %v1752
        %v1788 = vunpack.c.l.b16 %v1753
        %v1789 = vunpack.c.l.b16 %v1754
        %v1790 = vunpack.c.l.b16 %v1755
        %v1791 = vunpack.c.l.b16 %v1756
        %v1792 = vpack.c.b16 %v1777, %v1776
        %v1793 = vpack.c.b16 %v1779, %v1778
        %v1794 = vpack.c.b16 %v1781, %v1780
        %v1795 = vpack.c.b16 %v1783, %v1782
        %v1796 = vpack.c.b16 %v1785, %v1784
        %v1797 = vpack.c.b16 %v1787, %v1786
        %v1798 = vpack.c.b16 %v1789, %v1788
        %v1799 = vpack.c.b16 %v1791, %v1790
        %1808 = vmatpush.bf16.msra.mxu0 %v1799
        %1809 = vmatpush.bf16.msra.mxu0 %v1798
        %1810 = vmatpush.bf16.msra.mxu0 %v1797
        %1811 = vmatpush.bf16.msra.mxu0 %v1796
        %1812 = vmatpush.bf16.msra.mxu0 %v1795
        %1813 = vmatpush.bf16.msra.mxu0 %v1794
        %1814 = vmatpush.bf16.msra.mxu0 %v1793
        %1815 = vmatpush.bf16.msra.mxu0 %v1792
        %1816 = vmatmul.bf16.gmra.mxu0 %v1739
        %v1817 = vpop.f32.mrf.mxu0
        %v1818 = vadd.f32 %v1758, %v1817
        %v1819 = vpop.f32.mrf.mxu0
        %v1820 = vadd.f32 %v1758, %v1819
        %1821 = vmatmul.bf16.gmra.mxu0 %v1740
        %v1822 = vpop.f32.mrf.mxu0
        %v1823 = vadd.f32 %v1758, %v1822
        %v1824 = vpop.f32.mrf.mxu0
        %v1825 = vadd.f32 %v1758, %v1824
        %1826 = vdwg.mxu0
        %v1827 = vpack.c.bf16 %v1818, %v1818
        %v1828 = vpack.c.bf16 %v1820, %v1820
        %v1829 = vpack.c.bf16 %v1823, %v1823
        %v1830 = vpack.c.bf16 %v1825, %v1825
        %v1835 = vunpack.c.l.b16 %v1827
        %v1836 = vunpack.c.l.b16 %v1828
        %v1837 = vunpack.c.l.b16 %v1829
        %v1838 = vunpack.c.l.b16 %v1830
        %v1839 = vpack.c.b16 %v1836, %v1835
        %v1840 = vpack.c.b16 %v1838, %v1837
        %v1843 = vld [vmem:[%s18] sm:$0xf]
        %v1844 = vld [vmem:[%s18 + $0x4] sm:$0xf]
        %v1845 = vld [vmem:[%s18 + $0x8] sm:$0xf]
        %v1846 = vld [vmem:[%s18 + $0xc] sm:$0xf]
        %v1847 = vld [vmem:[%s18 + $0x10] sm:$0xf]
        %v1848 = vld [vmem:[%s18 + $0x14] sm:$0xf]
        %v1849 = vld [vmem:[%s18 + $0x18] sm:$0xf]
        %v1850 = vld [vmem:[%s18 + $0x1c] sm:$0xf]
        %v1851 = vld [vmem:[%s18 + $0x20] sm:$0xf]
        %v1852 = vld [vmem:[%s18 + $0x24] sm:$0xf]
        %v1853 = vld [vmem:[%s18 + $0x28] sm:$0xf]
        %v1854 = vld [vmem:[%s18 + $0x2c] sm:$0xf]
        %v1855 = vld [vmem:[%s18 + $0x30] sm:$0xf]
        %v1856 = vld [vmem:[%s18 + $0x34] sm:$0xf]
        %v1857 = vld [vmem:[%s18 + $0x38] sm:$0xf]
        %v1858 = vld [vmem:[%s18 + $0x3c] sm:$0xf]
        %v1859 = vld [vmem:[%s18 + $0x40] sm:$0xf]
        %v1860 = vld [vmem:[%s18 + $0x44] sm:$0xf]
        %v1861 = vld [vmem:[%s18 + $0x48] sm:$0xf]
        %v1862 = vld [vmem:[%s18 + $0x4c] sm:$0xf]
        %v1863 = vld [vmem:[%s18 + $0x50] sm:$0xf]
        %v1864 = vld [vmem:[%s18 + $0x54] sm:$0xf]
        %v1865 = vld [vmem:[%s18 + $0x58] sm:$0xf]
        %v1866 = vld [vmem:[%s18 + $0x5c] sm:$0xf]
        %v1867 = vld [vmem:[%s18 + $0x60] sm:$0xf]
        %v1868 = vld [vmem:[%s18 + $0x64] sm:$0xf]
        %v1869 = vld [vmem:[%s18 + $0x68] sm:$0xf]
        %v1870 = vld [vmem:[%s18 + $0x6c] sm:$0xf]
        %v1871 = vld [vmem:[%s18 + $0x70] sm:$0xf]
        %v1872 = vld [vmem:[%s18 + $0x74] sm:$0xf]
        %v1873 = vld [vmem:[%s18 + $0x78] sm:$0xf]
        %v1874 = vld [vmem:[%s18 + $0x7c] sm:$0xf]
        %v1876 = vperm.slane %v1352, 0
        %v1910 = vunpack.c.l.b16 %v1843
        %v1911 = vunpack.c.l.b16 %v1844
        %v1912 = vunpack.c.l.b16 %v1845
        %v1913 = vunpack.c.l.b16 %v1846
        %v1914 = vunpack.c.l.b16 %v1847
        %v1915 = vunpack.c.l.b16 %v1848
        %v1916 = vunpack.c.l.b16 %v1849
        %v1917 = vunpack.c.l.b16 %v1850
        %v1918 = vunpack.c.l.b16 %v1851
        %v1919 = vunpack.c.l.b16 %v1852
        %v1920 = vunpack.c.l.b16 %v1853
        %v1921 = vunpack.c.l.b16 %v1854
        %v1922 = vunpack.c.l.b16 %v1855
        %v1923 = vunpack.c.l.b16 %v1856
        %v1924 = vunpack.c.l.b16 %v1857
        %v1925 = vunpack.c.l.b16 %v1858
        %v1926 = vunpack.c.l.b16 %v1859
        %v1927 = vunpack.c.l.b16 %v1860
        %v1928 = vunpack.c.l.b16 %v1861
        %v1929 = vunpack.c.l.b16 %v1862
        %v1930 = vunpack.c.l.b16 %v1863
        %v1931 = vunpack.c.l.b16 %v1864
        %v1932 = vunpack.c.l.b16 %v1865
        %v1933 = vunpack.c.l.b16 %v1866
        %v1934 = vunpack.c.l.b16 %v1867
        %v1935 = vunpack.c.l.b16 %v1868
        %v1936 = vunpack.c.l.b16 %v1869
        %v1937 = vunpack.c.l.b16 %v1870
        %v1938 = vunpack.c.l.b16 %v1871
        %v1939 = vunpack.c.l.b16 %v1872
        %v1940 = vunpack.c.l.b16 %v1873
        %v1941 = vunpack.c.l.b16 %v1874
        %v1942 = vpack.c.b16 %v1911, %v1910
        %v1943 = vpack.c.b16 %v1913, %v1912
        %v1944 = vpack.c.b16 %v1915, %v1914
        %v1945 = vpack.c.b16 %v1917, %v1916
        %v1946 = vpack.c.b16 %v1919, %v1918
        %v1947 = vpack.c.b16 %v1921, %v1920
        %v1948 = vpack.c.b16 %v1923, %v1922
        %v1949 = vpack.c.b16 %v1925, %v1924
        %v1950 = vpack.c.b16 %v1927, %v1926
        %v1951 = vpack.c.b16 %v1929, %v1928
        %v1952 = vpack.c.b16 %v1931, %v1930
        %v1953 = vpack.c.b16 %v1933, %v1932
        %v1954 = vpack.c.b16 %v1935, %v1934
        %v1955 = vpack.c.b16 %v1937, %v1936
        %v1956 = vpack.c.b16 %v1939, %v1938
        %v1957 = vpack.c.b16 %v1941, %v1940
        %1974 = vmatpush.bf16.msra.mxu0 %v1949
        %1975 = vmatpush.bf16.msra.mxu0 %v1948
        %1976 = vmatpush.bf16.msra.mxu0 %v1947
        %1977 = vmatpush.bf16.msra.mxu0 %v1946
        %1978 = vmatpush.bf16.msra.mxu0 %v1945
        %1979 = vmatpush.bf16.msra.mxu0 %v1944
        %1980 = vmatpush.bf16.msra.mxu0 %v1943
        %1981 = vmatpush.bf16.msra.mxu0 %v1942
        %1982 = vmatmul.bf16.gmra.mxu0 %v1455
        %v1983 = vpop.f32.mrf.mxu0
        %v1984 = vadd.f32 %v1876, %v1983
        %v1985 = vpop.f32.mrf.mxu0
        %v1986 = vadd.f32 %v1876, %v1985
        %1987 = vmatmul.bf16.gmra.mxu0 %v1456
        %v1988 = vpop.f32.mrf.mxu0
        %v1989 = vadd.f32 %v1876, %v1988
        %v1990 = vpop.f32.mrf.mxu0
        %v1991 = vadd.f32 %v1876, %v1990
        %1992 = vdwg.mxu0
        %1993 = vmatpush.bf16.msra.mxu0 %v1957
        %1994 = vmatpush.bf16.msra.mxu0 %v1956
        %1995 = vmatpush.bf16.msra.mxu0 %v1955
        %1996 = vmatpush.bf16.msra.mxu0 %v1954
        %1997 = vmatpush.bf16.msra.mxu0 %v1953
        %1998 = vmatpush.bf16.msra.mxu0 %v1952
        %1999 = vmatpush.bf16.msra.mxu0 %v1951
        %2000 = vmatpush.bf16.msra.mxu0 %v1950
        %2001 = vmatmul.bf16.gmra.mxu0 %v1839
        %v2002 = vpop.f32.mrf.mxu0
        %v2003 = vadd.f32 %v1984, %v2002
        %v2004 = vpop.f32.mrf.mxu0
        %v2005 = vadd.f32 %v1986, %v2004
        %2006 = vmatmul.bf16.gmra.mxu0 %v1840
        %v2007 = vpop.f32.mrf.mxu0
        %v2008 = vadd.f32 %v1989, %v2007
        %v2009 = vpop.f32.mrf.mxu0
        %v2010 = vadd.f32 %v1991, %v2009
        %2011 = vdwg.mxu0
        %v2012 = vmax.f32 %v2003, 0.0
        %v2013 = vmax.f32 %v2005, 0.0
        %v2014 = vmax.f32 %v2008, 0.0
        %v2015 = vmax.f32 %v2010, 0.0
        %v2016 = vpack.c.bf16 %v2013, %v2012
        %v2017 = vpack.c.bf16 %v2015, %v2014
        %v2018 = vld [vmem:[%s20] sm:$0xf]
        %v2019 = vld [vmem:[%s20 + $0x4] sm:$0xf]
        %v2020 = vld [vmem:[%s20 + $0x8] sm:$0xf]
        %v2021 = vld [vmem:[%s20 + $0xc] sm:$0xf]
        %v2022 = vld [vmem:[%s20 + $0x10] sm:$0xf]
        %v2023 = vld [vmem:[%s20 + $0x14] sm:$0xf]
        %v2024 = vld [vmem:[%s20 + $0x18] sm:$0xf]
        %v2025 = vld [vmem:[%s20 + $0x1c] sm:$0xf]
        %v2026 = vld [vmem:[%s20 + $0x20] sm:$0xf]
        %v2027 = vld [vmem:[%s20 + $0x24] sm:$0xf]
        %v2028 = vld [vmem:[%s20 + $0x28] sm:$0xf]
        %v2029 = vld [vmem:[%s20 + $0x2c] sm:$0xf]
        %v2030 = vld [vmem:[%s20 + $0x30] sm:$0xf]
        %v2031 = vld [vmem:[%s20 + $0x34] sm:$0xf]
        %v2032 = vld [vmem:[%s20 + $0x38] sm:$0xf]
        %v2033 = vld [vmem:[%s20 + $0x3c] sm:$0xf]
        %v2035 = vperm.slane %v1353, 0
        %v2053 = vunpack.c.l.b16 %v2018
        %v2054 = vunpack.c.l.b16 %v2019
        %v2055 = vunpack.c.l.b16 %v2020
        %v2056 = vunpack.c.l.b16 %v2021
        %v2057 = vunpack.c.l.b16 %v2022
        %v2058 = vunpack.c.l.b16 %v2023
        %v2059 = vunpack.c.l.b16 %v2024
        %v2060 = vunpack.c.l.b16 %v2025
        %v2061 = vunpack.c.l.b16 %v2026
        %v2062 = vunpack.c.l.b16 %v2027
        %v2063 = vunpack.c.l.b16 %v2028
        %v2064 = vunpack.c.l.b16 %v2029
        %v2065 = vunpack.c.l.b16 %v2030
        %v2066 = vunpack.c.l.b16 %v2031
        %v2067 = vunpack.c.l.b16 %v2032
        %v2068 = vunpack.c.l.b16 %v2033
        %v2069 = vpack.c.b16 %v2054, %v2053
        %v2070 = vpack.c.b16 %v2056, %v2055
        %v2071 = vpack.c.b16 %v2058, %v2057
        %v2072 = vpack.c.b16 %v2060, %v2059
        %v2073 = vpack.c.b16 %v2062, %v2061
        %v2074 = vpack.c.b16 %v2064, %v2063
        %v2075 = vpack.c.b16 %v2066, %v2065
        %v2076 = vpack.c.b16 %v2068, %v2067
        %2085 = vmatpush.bf16.msra.mxu0 %v2076
        %2086 = vmatpush.bf16.msra.mxu0 %v2075
        %2087 = vmatpush.bf16.msra.mxu0 %v2074
        %2088 = vmatpush.bf16.msra.mxu0 %v2073
        %2089 = vmatpush.bf16.msra.mxu0 %v2072
        %2090 = vmatpush.bf16.msra.mxu0 %v2071
        %2091 = vmatpush.bf16.msra.mxu0 %v2070
        %2092 = vmatpush.bf16.msra.mxu0 %v2069
        %2093 = vmatmul.bf16.gmra.mxu0 %v2016
        %v2094 = vpop.f32.mrf.mxu0
        %v2095 = vadd.f32 %v2035, %v2094
        %v2096 = vpop.f32.mrf.mxu0
        %v2097 = vadd.f32 %v2035, %v2096
        %2098 = vmatmul.bf16.gmra.mxu0 %v2017
        %v2099 = vpop.f32.mrf.mxu0
        %v2100 = vadd.f32 %v2035, %v2099
        %v2101 = vpop.f32.mrf.mxu0
        %v2102 = vadd.f32 %v2035, %v2101
        %2103 = vdwg.mxu0
        %v2104 = vpack.c.bf16 %v2097, %v2095
        %v2105 = vpack.c.bf16 %v2102, %v2100
        %v2108 = vunpack.c.l.b16 %v1346
        %v2109 = vunpack.c.l.b16 %v1347
        %v2110 = vpack.c.b16 %v2109, %v2108
        %vm2111 = vcmask 261120
        %v2113 = vsel %vm2111, %v2110, 0
        %2115 = vmatpush.bf16.msra.mxu0 0
        %2116 = vmatpush.bf16.msra.mxu0 0
        %2117 = vmatpush.bf16.msra.mxu0 0
        %2118 = vmatpush.bf16.msra.mxu0 0
        %2119 = vmatpush.bf16.msra.mxu0 0
        %2120 = vmatpush.bf16.msra.mxu0 0
        %2121 = vmatpush.bf16.msra.mxu0 %v2105
        %2122 = vmatpush.bf16.msra.mxu0 %v2104
        %2123 = vmatmul.bf16.gmra.mxu0 %v2113
        %v2124 = vpop.f32.mrf.mxu0
        %v2125 = vadd.f32 0.0, %v2124
        %v2126 = vpop.f32.mrf.mxu0
        %v2127 = vadd.f32 0.0, %v2126
        %2128 = vdwg.mxu0
        %2130 = vset.pattern.permute.xlu0 0
        %2131 = vperm.xlu0 %2130, %v1348
        %v2132 = vpop.permute.xlu0 %2131
        %2135 = vset.pattern.permute.xlu0 0
        %2136 = vperm.xlu0 %2135, %v1349
        %v2137 = vpop.permute.xlu0 %2136
        %v2139 = vmul.f32 %v2125, %v2132
        %v2140 = vmul.f32 %v2127, %v2137
        %v2141 = vpack.c.bf16 %v2139, %v2139
        %v2142 = vpack.c.bf16 %v2140, %v2140
        %v2145 = vunpack.c.l.b16 %v2141
        %v2146 = vunpack.c.l.b16 %v2142
        %v2147 = vpack.c.b16 %v2146, %v2145
        %v2149 = vld [vmem:[%s22] sm:$0xf]
        %v2150 = vld [vmem:[%s22 + $0x4] sm:$0xf]
        %v2151 = vld [vmem:[%s22 + $0x8] sm:$0xf]
        %v2152 = vld [vmem:[%s22 + $0xc] sm:$0xf]
        %v2153 = vld [vmem:[%s22 + $0x10] sm:$0xf]
        %v2154 = vld [vmem:[%s22 + $0x14] sm:$0xf]
        %v2155 = vld [vmem:[%s22 + $0x18] sm:$0xf]
        %v2156 = vld [vmem:[%s22 + $0x1c] sm:$0xf]
        %v2157 = vld [vmem:[%s22 + $0x20] sm:$0xf]
        %v2158 = vld [vmem:[%s22 + $0x24] sm:$0xf]
        %v2159 = vld [vmem:[%s22 + $0x28] sm:$0xf]
        %v2160 = vld [vmem:[%s22 + $0x2c] sm:$0xf]
        %v2161 = vld [vmem:[%s22 + $0x30] sm:$0xf]
        %v2162 = vld [vmem:[%s22 + $0x34] sm:$0xf]
        %v2163 = vld [vmem:[%s22 + $0x38] sm:$0xf]
        %v2164 = vld [vmem:[%s22 + $0x3c] sm:$0xf]
        %v2165 = vld [vmem:[%s22 + $0x40] sm:$0xf]
        %v2166 = vld [vmem:[%s22 + $0x44] sm:$0xf]
        %v2167 = vld [vmem:[%s22 + $0x48] sm:$0xf]
        %v2168 = vld [vmem:[%s22 + $0x4c] sm:$0xf]
        %v2169 = vld [vmem:[%s22 + $0x50] sm:$0xf]
        %v2170 = vld [vmem:[%s22 + $0x54] sm:$0xf]
        %v2171 = vld [vmem:[%s22 + $0x58] sm:$0xf]
        %v2172 = vld [vmem:[%s22 + $0x5c] sm:$0xf]
        %v2173 = vld [vmem:[%s22 + $0x60] sm:$0xf]
        %v2174 = vld [vmem:[%s22 + $0x64] sm:$0xf]
        %v2175 = vld [vmem:[%s22 + $0x68] sm:$0xf]
        %v2176 = vld [vmem:[%s22 + $0x6c] sm:$0xf]
        %v2177 = vld [vmem:[%s22 + $0x70] sm:$0xf]
        %v2178 = vld [vmem:[%s22 + $0x74] sm:$0xf]
        %v2179 = vld [vmem:[%s22 + $0x78] sm:$0xf]
        %v2180 = vld [vmem:[%s22 + $0x7c] sm:$0xf]
        %v2182 = vperm.slane %v1354, 0
        %v2216 = vunpack.c.l.b16 %v2149
        %v2217 = vunpack.c.l.b16 %v2150
        %v2218 = vunpack.c.l.b16 %v2151
        %v2219 = vunpack.c.l.b16 %v2152
        %v2220 = vunpack.c.l.b16 %v2153
        %v2221 = vunpack.c.l.b16 %v2154
        %v2222 = vunpack.c.l.b16 %v2155
        %v2223 = vunpack.c.l.b16 %v2156
        %v2224 = vunpack.c.l.b16 %v2157
        %v2225 = vunpack.c.l.b16 %v2158
        %v2226 = vunpack.c.l.b16 %v2159
        %v2227 = vunpack.c.l.b16 %v2160
        %v2228 = vunpack.c.l.b16 %v2161
        %v2229 = vunpack.c.l.b16 %v2162
        %v2230 = vunpack.c.l.b16 %v2163
        %v2231 = vunpack.c.l.b16 %v2164
        %v2232 = vunpack.c.l.b16 %v2165
        %v2233 = vunpack.c.l.b16 %v2166
        %v2234 = vunpack.c.l.b16 %v2167
        %v2235 = vunpack.c.l.b16 %v2168
        %v2236 = vunpack.c.l.b16 %v2169
        %v2237 = vunpack.c.l.b16 %v2170
        %v2238 = vunpack.c.l.b16 %v2171
        %v2239 = vunpack.c.l.b16 %v2172
        %v2240 = vunpack.c.l.b16 %v2173
        %v2241 = vunpack.c.l.b16 %v2174
        %v2242 = vunpack.c.l.b16 %v2175
        %v2243 = vunpack.c.l.b16 %v2176
        %v2244 = vunpack.c.l.b16 %v2177
        %v2245 = vunpack.c.l.b16 %v2178
        %v2246 = vunpack.c.l.b16 %v2179
        %v2247 = vunpack.c.l.b16 %v2180
        %v2248 = vpack.c.b16 %v2217, %v2216
        %v2249 = vpack.c.b16 %v2219, %v2218
        %v2250 = vpack.c.b16 %v2221, %v2220
        %v2251 = vpack.c.b16 %v2223, %v2222
        %v2252 = vpack.c.b16 %v2225, %v2224
        %v2253 = vpack.c.b16 %v2227, %v2226
        %v2254 = vpack.c.b16 %v2229, %v2228
        %v2255 = vpack.c.b16 %v2231, %v2230
        %v2256 = vpack.c.b16 %v2233, %v2232
        %v2257 = vpack.c.b16 %v2235, %v2234
        %v2258 = vpack.c.b16 %v2237, %v2236
        %v2259 = vpack.c.b16 %v2239, %v2238
        %v2260 = vpack.c.b16 %v2241, %v2240
        %v2261 = vpack.c.b16 %v2243, %v2242
        %v2262 = vpack.c.b16 %v2245, %v2244
        %v2263 = vpack.c.b16 %v2247, %v2246
        %2280 = vmatpush.bf16.msra.mxu0 %v2255
        %2281 = vmatpush.bf16.msra.mxu0 %v2254
        %2282 = vmatpush.bf16.msra.mxu0 %v2253
        %2283 = vmatpush.bf16.msra.mxu0 %v2252
        %2284 = vmatpush.bf16.msra.mxu0 %v2251
        %2285 = vmatpush.bf16.msra.mxu0 %v2250
        %2286 = vmatpush.bf16.msra.mxu0 %v2249
        %2287 = vmatpush.bf16.msra.mxu0 %v2248
        %2288 = vmatmul.bf16.gmra.mxu0 %v1376
        %v2289 = vpop.f32.mrf.mxu0
        %v2290 = vadd.f32 %v2182, %v2289
        %v2291 = vpop.f32.mrf.mxu0
        %v2292 = vadd.f32 %v2182, %v2291
        %2293 = vdwg.mxu0
        %2294 = vmatpush.bf16.msra.mxu0 %v2263
        %2295 = vmatpush.bf16.msra.mxu0 %v2262
        %2296 = vmatpush.bf16.msra.mxu0 %v2261
        %2297 = vmatpush.bf16.msra.mxu0 %v2260
        %2298 = vmatpush.bf16.msra.mxu0 %v2259
        %2299 = vmatpush.bf16.msra.mxu0 %v2258
        %2300 = vmatpush.bf16.msra.mxu0 %v2257
        %2301 = vmatpush.bf16.msra.mxu0 %v2256
        %2302 = vmatmul.bf16.gmra.mxu0 %v2147
        %v2303 = vpop.f32.mrf.mxu0
        %v2304 = vadd.f32 %v2290, %v2303
        %v2305 = vpop.f32.mrf.mxu0
        %v2306 = vadd.f32 %v2292, %v2305
        %2307 = vdwg.mxu0
        %v2308 = vmax.f32 %v2304, 0.0
        %v2309 = vmax.f32 %v2306, 0.0
        %v2310 = vpack.c.bf16 %v2309, %v2308
        %v2311 = vld [vmem:[%s24] sm:$0xf]
        %v2312 = vld [vmem:[%s24 + $0x4] sm:$0xf]
        %v2313 = vld [vmem:[%s24 + $0x8] sm:$0xf]
        %v2314 = vld [vmem:[%s24 + $0xc] sm:$0xf]
        %v2315 = vld [vmem:[%s24 + $0x10] sm:$0xf]
        %v2316 = vld [vmem:[%s24 + $0x14] sm:$0xf]
        %v2317 = vld [vmem:[%s24 + $0x18] sm:$0xf]
        %v2318 = vld [vmem:[%s24 + $0x1c] sm:$0xf]
        %v2319 = vld [vmem:[%s24 + $0x20] sm:$0xf]
        %v2320 = vld [vmem:[%s24 + $0x24] sm:$0xf]
        %v2321 = vld [vmem:[%s24 + $0x28] sm:$0xf]
        %v2322 = vld [vmem:[%s24 + $0x2c] sm:$0xf]
        %v2323 = vld [vmem:[%s24 + $0x30] sm:$0xf]
        %v2324 = vld [vmem:[%s24 + $0x34] sm:$0xf]
        %v2325 = vld [vmem:[%s24 + $0x38] sm:$0xf]
        %v2326 = vld [vmem:[%s24 + $0x3c] sm:$0xf]
        %v2328 = vperm.slane %v1355, 0
        %v2346 = vunpack.c.l.b16 %v2311
        %v2347 = vunpack.c.l.b16 %v2312
        %v2348 = vunpack.c.l.b16 %v2313
        %v2349 = vunpack.c.l.b16 %v2314
        %v2350 = vunpack.c.l.b16 %v2315
        %v2351 = vunpack.c.l.b16 %v2316
        %v2352 = vunpack.c.l.b16 %v2317
        %v2353 = vunpack.c.l.b16 %v2318
        %v2354 = vunpack.c.l.b16 %v2319
        %v2355 = vunpack.c.l.b16 %v2320
        %v2356 = vunpack.c.l.b16 %v2321
        %v2357 = vunpack.c.l.b16 %v2322
        %v2358 = vunpack.c.l.b16 %v2323
        %v2359 = vunpack.c.l.b16 %v2324
        %v2360 = vunpack.c.l.b16 %v2325
        %v2361 = vunpack.c.l.b16 %v2326
        %v2362 = vpack.c.b16 %v2347, %v2346
        %v2363 = vpack.c.b16 %v2349, %v2348
        %v2364 = vpack.c.b16 %v2351, %v2350
        %v2365 = vpack.c.b16 %v2353, %v2352
        %v2366 = vpack.c.b16 %v2355, %v2354
        %v2367 = vpack.c.b16 %v2357, %v2356
        %v2368 = vpack.c.b16 %v2359, %v2358
        %v2369 = vpack.c.b16 %v2361, %v2360
        %2378 = vmatpush.bf16.msra.mxu0 %v2369
        %2379 = vmatpush.bf16.msra.mxu0 %v2368
        %2380 = vmatpush.bf16.msra.mxu0 %v2367
        %2381 = vmatpush.bf16.msra.mxu0 %v2366
        %2382 = vmatpush.bf16.msra.mxu0 %v2365
        %2383 = vmatpush.bf16.msra.mxu0 %v2364
        %2384 = vmatpush.bf16.msra.mxu0 %v2363
        %2385 = vmatpush.bf16.msra.mxu0 %v2362
        %2386 = vmatmul.bf16.gmra.mxu0 %v2310
        %v2387 = vpop.f32.mrf.mxu0
        %v2388 = vadd.f32 %v2328, %v2387
        %v2389 = vpop.f32.mrf.mxu0
        %v2390 = vadd.f32 %v2328, %v2389
        %2391 = vdwg.mxu0
        %v2392 = vpack.c.bf16 %v2388, %v2388
        %v2393 = vpack.c.bf16 %v2390, %v2390
        %v2396 = vunpack.c.l.b16 %v2392
        %v2397 = vunpack.c.l.b16 %v2393
        %v2398 = vpack.c.b16 %v2397, %v2396
        %2400 = vmatpush.bf16.msra.mxu0 0
        %2401 = vmatpush.bf16.msra.mxu0 0
        %2402 = vmatpush.bf16.msra.mxu0 0
        %2403 = vmatpush.bf16.msra.mxu0 0
        %2404 = vmatpush.bf16.msra.mxu0 0
        %2405 = vmatpush.bf16.msra.mxu0 0
        %2406 = vmatpush.bf16.msra.mxu0 0
        %2407 = vmatpush.bf16.msra.mxu0 %v2398
        %2408 = vmatmul.bf16.gmra.mxu0 %v1380
        %v2409 = vpop.f32.mrf.mxu0
        %v2410 = vadd.f32 0.0, %v2409
        %v2411 = vpop.f32.mrf.mxu0
        %v2412 = vadd.f32 0.0, %v2411
        %2413 = vmatmul.bf16.gmra.mxu0 %v1383
        %v2414 = vpop.f32.mrf.mxu0
        %v2415 = vadd.f32 0.0, %v2414
        %v2416 = vpop.f32.mrf.mxu0
        %v2417 = vadd.f32 0.0, %v2416
        %2418 = vdwg.mxu0
        %v2419 = vpack.c.bf16 %v2410, %v2410
        %v2420 = vpack.c.bf16 %v2412, %v2412
        %v2421 = vpack.c.bf16 %v2415, %v2415
        %v2422 = vpack.c.bf16 %v2417, %v2417
        %2423 = vmatpush.bf16.msra.mxu0 0
        %2424 = vmatpush.bf16.msra.mxu0 0
        %2425 = vmatpush.bf16.msra.mxu0 0
        %2426 = vmatpush.bf16.msra.mxu0 0
        %2427 = vmatpush.bf16.msra.mxu0 0
        %2428 = vmatpush.bf16.msra.mxu0 0
        %2429 = vmatpush.bf16.msra.mxu0 0
        %2430 = vmatpush.bf16.msra.mxu0 %v2398
        %2431 = vmatmul.bf16.gmra.mxu0 %v1419
        %v2432 = vpop.f32.mrf.mxu0
        %v2433 = vadd.f32 0.0, %v2432
        %v2434 = vpop.f32.mrf.mxu0
        %v2435 = vadd.f32 0.0, %v2434
        %2436 = vmatmul.bf16.gmra.mxu0 %v1422
        %v2437 = vpop.f32.mrf.mxu0
        %v2438 = vadd.f32 0.0, %v2437
        %v2439 = vpop.f32.mrf.mxu0
        %v2440 = vadd.f32 0.0, %v2439
        %2441 = vdwg.mxu0
        %v2442 = vpack.c.bf16 %v2433, %v2433
        %v2443 = vpack.c.bf16 %v2435, %v2435
        %v2444 = vpack.c.bf16 %v2438, %v2438
        %v2445 = vpack.c.bf16 %v2440, %v2440
        %v2450 = vunpack.c.l.b16 %v2419
        %v2451 = vunpack.c.l.b16 %v2420
        %v2452 = vunpack.c.l.b16 %v2421
        %v2453 = vunpack.c.l.b16 %v2422
        %v2454 = vpack.c.b16 %v2451, %v2450
        %v2455 = vpack.c.b16 %v2453, %v2452
        %v2462 = vunpack.c.l.b16 %v2442
        %v2463 = vunpack.c.l.b16 %v2443
        %v2464 = vunpack.c.l.b16 %v2444
        %v2465 = vunpack.c.l.b16 %v2445
        %v2466 = vpack.c.b16 %v2463, %v2462
        %v2467 = vpack.c.b16 %v2465, %v2464
        %2470 = vmatpush.bf16.msra.mxu0 %v1637
        %2471 = vmatpush.bf16.msra.mxu0 %v1636
        %2472 = vmatpush.bf16.msra.mxu0 %v1635
        %2473 = vmatpush.bf16.msra.mxu0 %v1634
        %2474 = vmatpush.bf16.msra.mxu0 %v1633
        %2475 = vmatpush.bf16.msra.mxu0 %v1632
        %2476 = vmatpush.bf16.msra.mxu0 %v1631
        %2477 = vmatpush.bf16.msra.mxu0 %v1630
        %2478 = vmatmul.bf16.gmra.mxu0 %v2454
        %v2479 = vpop.f32.mrf.mxu0
        %v2480 = vadd.f32 %v1532, %v2479
        %v2481 = vpop.f32.mrf.mxu0
        %v2482 = vadd.f32 %v1532, %v2481
        %2483 = vmatmul.bf16.gmra.mxu0 %v2455
        %v2484 = vpop.f32.mrf.mxu0
        %v2485 = vadd.f32 %v1532, %v2484
        %v2486 = vpop.f32.mrf.mxu0
        %v2487 = vadd.f32 %v1532, %v2486
        %2488 = vdwg.mxu0
        %2489 = vmatpush.bf16.msra.mxu0 %v1645
        %2490 = vmatpush.bf16.msra.mxu0 %v1644
        %2491 = vmatpush.bf16.msra.mxu0 %v1643
        %2492 = vmatpush.bf16.msra.mxu0 %v1642
        %2493 = vmatpush.bf16.msra.mxu0 %v1641
        %2494 = vmatpush.bf16.msra.mxu0 %v1640
        %2495 = vmatpush.bf16.msra.mxu0 %v1639
        %2496 = vmatpush.bf16.msra.mxu0 %v1638
        %2497 = vmatmul.bf16.gmra.mxu0 %v2466
        %v2498 = vpop.f32.mrf.mxu0
        %v2499 = vadd.f32 %v2480, %v2498
        %v2500 = vpop.f32.mrf.mxu0
        %v2501 = vadd.f32 %v2482, %v2500
        %2502 = vmatmul.bf16.gmra.mxu0 %v2467
        %v2503 = vpop.f32.mrf.mxu0
        %v2504 = vadd.f32 %v2485, %v2503
        %v2505 = vpop.f32.mrf.mxu0
        %v2506 = vadd.f32 %v2487, %v2505
        %2507 = vdwg.mxu0
        %2508 = vmatpush.bf16.msra.mxu0 %v1653
        %2509 = vmatpush.bf16.msra.mxu0 %v1652
        %2510 = vmatpush.bf16.msra.mxu0 %v1651
        %2511 = vmatpush.bf16.msra.mxu0 %v1650
        %2512 = vmatpush.bf16.msra.mxu0 %v1649
        %2513 = vmatpush.bf16.msra.mxu0 %v1648
        %2514 = vmatpush.bf16.msra.mxu0 %v1647
        %2515 = vmatpush.bf16.msra.mxu0 %v1646
        %2516 = vmatmul.bf16.gmra.mxu0 %v1839
        %v2517 = vpop.f32.mrf.mxu0
        %v2518 = vadd.f32 %v2499, %v2517
        %v2519 = vpop.f32.mrf.mxu0
        %v2520 = vadd.f32 %v2501, %v2519
        %2521 = vmatmul.bf16.gmra.mxu0 %v1840
        %v2522 = vpop.f32.mrf.mxu0
        %v2523 = vadd.f32 %v2504, %v2522
        %v2524 = vpop.f32.mrf.mxu0
        %v2525 = vadd.f32 %v2506, %v2524
        %2526 = vdwg.mxu0
        %v2527 = vmax.f32 %v2518, 0.0
        %v2528 = vmax.f32 %v2520, 0.0
        %v2529 = vmax.f32 %v2523, 0.0
        %v2530 = vmax.f32 %v2525, 0.0
        %v2531 = vpack.c.bf16 %v2528, %v2527
        %v2532 = vpack.c.bf16 %v2530, %v2529
        %2533 = vmatpush.bf16.msra.mxu0 %v1799
        %2534 = vmatpush.bf16.msra.mxu0 %v1798
        %2535 = vmatpush.bf16.msra.mxu0 %v1797
        %2536 = vmatpush.bf16.msra.mxu0 %v1796
        %2537 = vmatpush.bf16.msra.mxu0 %v1795
        %2538 = vmatpush.bf16.msra.mxu0 %v1794
        %2539 = vmatpush.bf16.msra.mxu0 %v1793
        %2540 = vmatpush.bf16.msra.mxu0 %v1792
        %2541 = vmatmul.bf16.gmra.mxu0 %v2531
        %v2542 = vpop.f32.mrf.mxu0
        %v2543 = vadd.f32 %v1758, %v2542
        %v2544 = vpop.f32.mrf.mxu0
        %v2545 = vadd.f32 %v1758, %v2544
        %2546 = vmatmul.bf16.gmra.mxu0 %v2532
        %v2547 = vpop.f32.mrf.mxu0
        %v2548 = vadd.f32 %v1758, %v2547
        %v2549 = vpop.f32.mrf.mxu0
        %v2550 = vadd.f32 %v1758, %v2549
        %2551 = vdwg.mxu0
        %v2552 = vpack.c.bf16 %v2543, %v2543
        %v2553 = vpack.c.bf16 %v2545, %v2545
        %v2554 = vpack.c.bf16 %v2548, %v2548
        %v2555 = vpack.c.bf16 %v2550, %v2550
        %v2560 = vunpack.c.l.b16 %v2552
        %v2561 = vunpack.c.l.b16 %v2553
        %v2562 = vunpack.c.l.b16 %v2554
        %v2563 = vunpack.c.l.b16 %v2555
        %v2564 = vpack.c.b16 %v2561, %v2560
        %v2565 = vpack.c.b16 %v2563, %v2562
        %2568 = vmatpush.bf16.msra.mxu0 %v1949
        %2569 = vmatpush.bf16.msra.mxu0 %v1948
        %2570 = vmatpush.bf16.msra.mxu0 %v1947
        %2571 = vmatpush.bf16.msra.mxu0 %v1946
        %2572 = vmatpush.bf16.msra.mxu0 %v1945
        %2573 = vmatpush.bf16.msra.mxu0 %v1944
        %2574 = vmatpush.bf16.msra.mxu0 %v1943
        %2575 = vmatpush.bf16.msra.mxu0 %v1942
        %2576 = vmatmul.bf16.gmra.mxu0 %v2454
        %v2577 = vpop.f32.mrf.mxu0
        %v2578 = vadd.f32 %v1876, %v2577
        %v2579 = vpop.f32.mrf.mxu0
        %v2580 = vadd.f32 %v1876, %v2579
        %2581 = vmatmul.bf16.gmra.mxu0 %v2455
        %v2582 = vpop.f32.mrf.mxu0
        %v2583 = vadd.f32 %v1876, %v2582
        %v2584 = vpop.f32.mrf.mxu0
        %v2585 = vadd.f32 %v1876, %v2584
        %2586 = vdwg.mxu0
        %2587 = vmatpush.bf16.msra.mxu0 %v1957
        %2588 = vmatpush.bf16.msra.mxu0 %v1956
        %2589 = vmatpush.bf16.msra.mxu0 %v1955
        %2590 = vmatpush.bf16.msra.mxu0 %v1954
        %2591 = vmatpush.bf16.msra.mxu0 %v1953
        %2592 = vmatpush.bf16.msra.mxu0 %v1952
        %2593 = vmatpush.bf16.msra.mxu0 %v1951
        %2594 = vmatpush.bf16.msra.mxu0 %v1950
        %2595 = vmatmul.bf16.gmra.mxu0 %v2564
        %v2596 = vpop.f32.mrf.mxu0
        %v2597 = vadd.f32 %v2578, %v2596
        %v2598 = vpop.f32.mrf.mxu0
        %v2599 = vadd.f32 %v2580, %v2598
        %2600 = vmatmul.bf16.gmra.mxu0 %v2565
        %v2601 = vpop.f32.mrf.mxu0
        %v2602 = vadd.f32 %v2583, %v2601
        %v2603 = vpop.f32.mrf.mxu0
        %v2604 = vadd.f32 %v2585, %v2603
        %2605 = vdwg.mxu0
        %v2606 = vmax.f32 %v2597, 0.0
        %v2607 = vmax.f32 %v2599, 0.0
        %v2608 = vmax.f32 %v2602, 0.0
        %v2609 = vmax.f32 %v2604, 0.0
        %v2610 = vpack.c.bf16 %v2607, %v2606
        %v2611 = vpack.c.bf16 %v2609, %v2608
        %2612 = vmatpush.bf16.msra.mxu0 %v2076
        %2613 = vmatpush.bf16.msra.mxu0 %v2075
        %2614 = vmatpush.bf16.msra.mxu0 %v2074
        %2615 = vmatpush.bf16.msra.mxu0 %v2073
        %2616 = vmatpush.bf16.msra.mxu0 %v2072
        %2617 = vmatpush.bf16.msra.mxu0 %v2071
        %2618 = vmatpush.bf16.msra.mxu0 %v2070
        %2619 = vmatpush.bf16.msra.mxu0 %v2069
        %2620 = vmatmul.bf16.gmra.mxu0 %v2610
        %v2621 = vpop.f32.mrf.mxu0
        %v2622 = vadd.f32 %v2035, %v2621
        %v2623 = vpop.f32.mrf.mxu0
        %v2624 = vadd.f32 %v2035, %v2623
        %2625 = vmatmul.bf16.gmra.mxu0 %v2611
        %v2626 = vpop.f32.mrf.mxu0
        %v2627 = vadd.f32 %v2035, %v2626
        %v2628 = vpop.f32.mrf.mxu0
        %v2629 = vadd.f32 %v2035, %v2628
        %2630 = vdwg.mxu0
        %v2631 = vpack.c.bf16 %v2624, %v2622
        %v2632 = vpack.c.bf16 %v2629, %v2627
        %2633 = vmatpush.bf16.msra.mxu0 0
        %2634 = vmatpush.bf16.msra.mxu0 0
        %2635 = vmatpush.bf16.msra.mxu0 0
        %2636 = vmatpush.bf16.msra.mxu0 0
        %2637 = vmatpush.bf16.msra.mxu0 0
        %2638 = vmatpush.bf16.msra.mxu0 0
        %2639 = vmatpush.bf16.msra.mxu0 %v2632
        %2640 = vmatpush.bf16.msra.mxu0 %v2631
        %2641 = vmatmul.bf16.gmra.mxu0 %v2113
        %v2642 = vpop.f32.mrf.mxu0
        %v2643 = vadd.f32 0.0, %v2642
        %v2644 = vpop.f32.mrf.mxu0
        %v2645 = vadd.f32 0.0, %v2644
        %2646 = vdwg.mxu0
        %v2647 = vmul.f32 %v2643, %v2132
        %v2648 = vmul.f32 %v2645, %v2137
        %v2649 = vpack.c.bf16 %v2647, %v2647
        %v2650 = vpack.c.bf16 %v2648, %v2648
        %v2653 = vunpack.c.l.b16 %v2649
        %v2654 = vunpack.c.l.b16 %v2650
        %v2655 = vpack.c.b16 %v2654, %v2653
        %2657 = vmatpush.bf16.msra.mxu0 %v2255
        %2658 = vmatpush.bf16.msra.mxu0 %v2254
        %2659 = vmatpush.bf16.msra.mxu0 %v2253
        %2660 = vmatpush.bf16.msra.mxu0 %v2252
        %2661 = vmatpush.bf16.msra.mxu0 %v2251
        %2662 = vmatpush.bf16.msra.mxu0 %v2250
        %2663 = vmatpush.bf16.msra.mxu0 %v2249
        %2664 = vmatpush.bf16.msra.mxu0 %v2248
        %2665 = vmatmul.bf16.gmra.mxu0 %v2398
        %v2666 = vpop.f32.mrf.mxu0
        %v2667 = vadd.f32 %v2182, %v2666
        %v2668 = vpop.f32.mrf.mxu0
        %v2669 = vadd.f32 %v2182, %v2668
        %2670 = vdwg.mxu0
        %2671 = vmatpush.bf16.msra.mxu0 %v2263
        %2672 = vmatpush.bf16.msra.mxu0 %v2262
        %2673 = vmatpush.bf16.msra.mxu0 %v2261
        %2674 = vmatpush.bf16.msra.mxu0 %v2260
        %2675 = vmatpush.bf16.msra.mxu0 %v2259
        %2676 = vmatpush.bf16.msra.mxu0 %v2258
        %2677 = vmatpush.bf16.msra.mxu0 %v2257
        %2678 = vmatpush.bf16.msra.mxu0 %v2256
        %2679 = vmatmul.bf16.gmra.mxu0 %v2655
        %v2680 = vpop.f32.mrf.mxu0
        %v2681 = vadd.f32 %v2667, %v2680
        %v2682 = vpop.f32.mrf.mxu0
        %v2683 = vadd.f32 %v2669, %v2682
        %2684 = vdwg.mxu0
        %v2685 = vmax.f32 %v2681, 0.0
        %v2686 = vmax.f32 %v2683, 0.0
        %v2687 = vpack.c.bf16 %v2686, %v2685
        %2688 = vmatpush.bf16.msra.mxu0 %v2369
        %2689 = vmatpush.bf16.msra.mxu0 %v2368
        %2690 = vmatpush.bf16.msra.mxu0 %v2367
        %2691 = vmatpush.bf16.msra.mxu0 %v2366
        %2692 = vmatpush.bf16.msra.mxu0 %v2365
        %2693 = vmatpush.bf16.msra.mxu0 %v2364
        %2694 = vmatpush.bf16.msra.mxu0 %v2363
        %2695 = vmatpush.bf16.msra.mxu0 %v2362
        %2696 = vmatmul.bf16.gmra.mxu0 %v2687
        %v2697 = vpop.f32.mrf.mxu0
        %v2698 = vadd.f32 %v2328, %v2697
        %v2699 = vpop.f32.mrf.mxu0
        %v2700 = vadd.f32 %v2328, %v2699
        %2701 = vdwg.mxu0
        %v2702 = vpack.c.bf16 %v2698, %v2698
        %v2703 = vpack.c.bf16 %v2700, %v2700
        %v2706 = vunpack.c.l.b16 %v2702
        %v2707 = vunpack.c.l.b16 %v2703
        %v2708 = vpack.c.b16 %v2707, %v2706
        %2710 = vmatpush.bf16.msra.mxu0 0
        %2711 = vmatpush.bf16.msra.mxu0 0
        %2712 = vmatpush.bf16.msra.mxu0 0
        %2713 = vmatpush.bf16.msra.mxu0 0
        %2714 = vmatpush.bf16.msra.mxu0 0
        %2715 = vmatpush.bf16.msra.mxu0 0
        %2716 = vmatpush.bf16.msra.mxu0 0
        %2717 = vmatpush.bf16.msra.mxu0 %v2708
        %2718 = vmatmul.bf16.gmra.mxu0 %v1380
        %v2719 = vpop.f32.mrf.mxu0
        %v2720 = vadd.f32 0.0, %v2719
        %v2721 = vpop.f32.mrf.mxu0
        %v2722 = vadd.f32 0.0, %v2721
        %2723 = vmatmul.bf16.gmra.mxu0 %v1383
        %v2724 = vpop.f32.mrf.mxu0
        %v2725 = vadd.f32 0.0, %v2724
        %v2726 = vpop.f32.mrf.mxu0
        %v2727 = vadd.f32 0.0, %v2726
        %2728 = vdwg.mxu0
        %v2729 = vpack.c.bf16 %v2720, %v2720
        %v2730 = vpack.c.bf16 %v2722, %v2722
        %v2731 = vpack.c.bf16 %v2725, %v2725
        %v2732 = vpack.c.bf16 %v2727, %v2727
        %2733 = vmatpush.bf16.msra.mxu0 0
        %2734 = vmatpush.bf16.msra.mxu0 0
        %2735 = vmatpush.bf16.msra.mxu0 0
        %2736 = vmatpush.bf16.msra.mxu0 0
        %2737 = vmatpush.bf16.msra.mxu0 0
        %2738 = vmatpush.bf16.msra.mxu0 0
        %2739 = vmatpush.bf16.msra.mxu0 0
        %2740 = vmatpush.bf16.msra.mxu0 %v2708
        %2741 = vmatmul.bf16.gmra.mxu0 %v1419
        %v2742 = vpop.f32.mrf.mxu0
        %v2743 = vadd.f32 0.0, %v2742
        %v2744 = vpop.f32.mrf.mxu0
        %v2745 = vadd.f32 0.0, %v2744
        %2746 = vmatmul.bf16.gmra.mxu0 %v1422
        %v2747 = vpop.f32.mrf.mxu0
        %v2748 = vadd.f32 0.0, %v2747
        %v2749 = vpop.f32.mrf.mxu0
        %v2750 = vadd.f32 0.0, %v2749
        %2751 = vdwg.mxu0
        %v2752 = vpack.c.bf16 %v2743, %v2743
        %v2753 = vpack.c.bf16 %v2745, %v2745
        %v2754 = vpack.c.bf16 %v2748, %v2748
        %v2755 = vpack.c.bf16 %v2750, %v2750
        %v2760 = vunpack.c.l.b16 %v2729
        %v2761 = vunpack.c.l.b16 %v2730
        %v2762 = vunpack.c.l.b16 %v2731
        %v2763 = vunpack.c.l.b16 %v2732
        %v2764 = vpack.c.b16 %v2761, %v2760
        %v2765 = vpack.c.b16 %v2763, %v2762
        %v2772 = vunpack.c.l.b16 %v2752
        %v2773 = vunpack.c.l.b16 %v2753
        %v2774 = vunpack.c.l.b16 %v2754
        %v2775 = vunpack.c.l.b16 %v2755
        %v2776 = vpack.c.b16 %v2773, %v2772
        %v2777 = vpack.c.b16 %v2775, %v2774
        %2780 = vmatpush.bf16.msra.mxu0 %v1637
        %2781 = vmatpush.bf16.msra.mxu0 %v1636
        %2782 = vmatpush.bf16.msra.mxu0 %v1635
        %2783 = vmatpush.bf16.msra.mxu0 %v1634
        %2784 = vmatpush.bf16.msra.mxu0 %v1633
        %2785 = vmatpush.bf16.msra.mxu0 %v1632
        %2786 = vmatpush.bf16.msra.mxu0 %v1631
        %2787 = vmatpush.bf16.msra.mxu0 %v1630
        %2788 = vmatmul.bf16.gmra.mxu0 %v2764
        %v2789 = vpop.f32.mrf.mxu0
        %v2790 = vadd.f32 %v1532, %v2789
        %v2791 = vpop.f32.mrf.mxu0
        %v2792 = vadd.f32 %v1532, %v2791
        %2793 = vmatmul.bf16.gmra.mxu0 %v2765
        %v2794 = vpop.f32.mrf.mxu0
        %v2795 = vadd.f32 %v1532, %v2794
        %v2796 = vpop.f32.mrf.mxu0
        %v2797 = vadd.f32 %v1532, %v2796
        %2798 = vdwg.mxu0
        %2799 = vmatpush.bf16.msra.mxu0 %v1645
        %2800 = vmatpush.bf16.msra.mxu0 %v1644
        %2801 = vmatpush.bf16.msra.mxu0 %v1643
        %2802 = vmatpush.bf16.msra.mxu0 %v1642
        %2803 = vmatpush.bf16.msra.mxu0 %v1641
        %2804 = vmatpush.bf16.msra.mxu0 %v1640
        %2805 = vmatpush.bf16.msra.mxu0 %v1639
        %2806 = vmatpush.bf16.msra.mxu0 %v1638
        %2807 = vmatmul.bf16.gmra.mxu0 %v2776
        %v2808 = vpop.f32.mrf.mxu0
        %v2809 = vadd.f32 %v2790, %v2808
        %v2810 = vpop.f32.mrf.mxu0
        %v2811 = vadd.f32 %v2792, %v2810
        %2812 = vmatmul.bf16.gmra.mxu0 %v2777
        %v2813 = vpop.f32.mrf.mxu0
        %v2814 = vadd.f32 %v2795, %v2813
        %v2815 = vpop.f32.mrf.mxu0
        %v2816 = vadd.f32 %v2797, %v2815
        %2817 = vdwg.mxu0
        %2818 = vmatpush.bf16.msra.mxu0 %v1653
        %2819 = vmatpush.bf16.msra.mxu0 %v1652
        %2820 = vmatpush.bf16.msra.mxu0 %v1651
        %2821 = vmatpush.bf16.msra.mxu0 %v1650
        %2822 = vmatpush.bf16.msra.mxu0 %v1649
        %2823 = vmatpush.bf16.msra.mxu0 %v1648
        %2824 = vmatpush.bf16.msra.mxu0 %v1647
        %2825 = vmatpush.bf16.msra.mxu0 %v1646
        %2826 = vmatmul.bf16.gmra.mxu0 %v2564
        %v2827 = vpop.f32.mrf.mxu0
        %v2828 = vadd.f32 %v2809, %v2827
        %v2829 = vpop.f32.mrf.mxu0
        %v2830 = vadd.f32 %v2811, %v2829
        %2831 = vmatmul.bf16.gmra.mxu0 %v2565
        %v2832 = vpop.f32.mrf.mxu0
        %v2833 = vadd.f32 %v2814, %v2832
        %v2834 = vpop.f32.mrf.mxu0
        %v2835 = vadd.f32 %v2816, %v2834
        %2836 = vdwg.mxu0
        %v2837 = vmax.f32 %v2828, 0.0
        %v2838 = vmax.f32 %v2830, 0.0
        %v2839 = vmax.f32 %v2833, 0.0
        %v2840 = vmax.f32 %v2835, 0.0
        %v2841 = vpack.c.bf16 %v2838, %v2837
        %v2842 = vpack.c.bf16 %v2840, %v2839
        %2843 = vmatpush.bf16.msra.mxu0 %v1799
        %2844 = vmatpush.bf16.msra.mxu0 %v1798
        %2845 = vmatpush.bf16.msra.mxu0 %v1797
        %2846 = vmatpush.bf16.msra.mxu0 %v1796
        %2847 = vmatpush.bf16.msra.mxu0 %v1795
        %2848 = vmatpush.bf16.msra.mxu0 %v1794
        %2849 = vmatpush.bf16.msra.mxu0 %v1793
        %2850 = vmatpush.bf16.msra.mxu0 %v1792
        %2851 = vmatmul.bf16.gmra.mxu0 %v2841
        %v2852 = vpop.f32.mrf.mxu0
        %v2853 = vadd.f32 %v1758, %v2852
        %v2854 = vpop.f32.mrf.mxu0
        %v2855 = vadd.f32 %v1758, %v2854
        %2856 = vmatmul.bf16.gmra.mxu0 %v2842
        %v2857 = vpop.f32.mrf.mxu0
        %v2858 = vadd.f32 %v1758, %v2857
        %v2859 = vpop.f32.mrf.mxu0
        %v2860 = vadd.f32 %v1758, %v2859
        %2861 = vdwg.mxu0
        %v2862 = vpack.c.bf16 %v2853, %v2853
        %v2863 = vpack.c.bf16 %v2855, %v2855
        %v2864 = vpack.c.bf16 %v2858, %v2858
        %v2865 = vpack.c.bf16 %v2860, %v2860
        %v2870 = vunpack.c.l.b16 %v2862
        %v2871 = vunpack.c.l.b16 %v2863
        %v2872 = vunpack.c.l.b16 %v2864
        %v2873 = vunpack.c.l.b16 %v2865
        %v2874 = vpack.c.b16 %v2871, %v2870
        %v2875 = vpack.c.b16 %v2873, %v2872
        %2878 = vmatpush.bf16.msra.mxu0 %v1949
        %2879 = vmatpush.bf16.msra.mxu0 %v1948
        %2880 = vmatpush.bf16.msra.mxu0 %v1947
        %2881 = vmatpush.bf16.msra.mxu0 %v1946
        %2882 = vmatpush.bf16.msra.mxu0 %v1945
        %2883 = vmatpush.bf16.msra.mxu0 %v1944
        %2884 = vmatpush.bf16.msra.mxu0 %v1943
        %2885 = vmatpush.bf16.msra.mxu0 %v1942
        %2886 = vmatmul.bf16.gmra.mxu0 %v2764
        %v2887 = vpop.f32.mrf.mxu0
        %v2888 = vadd.f32 %v1876, %v2887
        %v2889 = vpop.f32.mrf.mxu0
        %v2890 = vadd.f32 %v1876, %v2889
        %2891 = vmatmul.bf16.gmra.mxu0 %v2765
        %v2892 = vpop.f32.mrf.mxu0
        %v2893 = vadd.f32 %v1876, %v2892
        %v2894 = vpop.f32.mrf.mxu0
        %v2895 = vadd.f32 %v1876, %v2894
        %2896 = vdwg.mxu0
        %2897 = vmatpush.bf16.msra.mxu0 %v1957
        %2898 = vmatpush.bf16.msra.mxu0 %v1956
        %2899 = vmatpush.bf16.msra.mxu0 %v1955
        %2900 = vmatpush.bf16.msra.mxu0 %v1954
        %2901 = vmatpush.bf16.msra.mxu0 %v1953
        %2902 = vmatpush.bf16.msra.mxu0 %v1952
        %2903 = vmatpush.bf16.msra.mxu0 %v1951
        %2904 = vmatpush.bf16.msra.mxu0 %v1950
        %2905 = vmatmul.bf16.gmra.mxu0 %v2874
        %v2906 = vpop.f32.mrf.mxu0
        %v2907 = vadd.f32 %v2888, %v2906
        %v2908 = vpop.f32.mrf.mxu0
        %v2909 = vadd.f32 %v2890, %v2908
        %2910 = vmatmul.bf16.gmra.mxu0 %v2875
        %v2911 = vpop.f32.mrf.mxu0
        %v2912 = vadd.f32 %v2893, %v2911
        %v2913 = vpop.f32.mrf.mxu0
        %v2914 = vadd.f32 %v2895, %v2913
        %2915 = vdwg.mxu0
        %v2916 = vmax.f32 %v2907, 0.0
        %v2917 = vmax.f32 %v2909, 0.0
        %v2918 = vmax.f32 %v2912, 0.0
        %v2919 = vmax.f32 %v2914, 0.0
        %v2920 = vpack.c.bf16 %v2917, %v2916
        %v2921 = vpack.c.bf16 %v2919, %v2918
        %2922 = vmatpush.bf16.msra.mxu0 %v2076
        %2923 = vmatpush.bf16.msra.mxu0 %v2075
        %2924 = vmatpush.bf16.msra.mxu0 %v2074
        %2925 = vmatpush.bf16.msra.mxu0 %v2073
        %2926 = vmatpush.bf16.msra.mxu0 %v2072
        %2927 = vmatpush.bf16.msra.mxu0 %v2071
        %2928 = vmatpush.bf16.msra.mxu0 %v2070
        %2929 = vmatpush.bf16.msra.mxu0 %v2069
        %2930 = vmatmul.bf16.gmra.mxu0 %v2920
        %v2931 = vpop.f32.mrf.mxu0
        %v2932 = vadd.f32 %v2035, %v2931
        %v2933 = vpop.f32.mrf.mxu0
        %v2934 = vadd.f32 %v2035, %v2933
        %2935 = vmatmul.bf16.gmra.mxu0 %v2921
        %v2936 = vpop.f32.mrf.mxu0
        %v2937 = vadd.f32 %v2035, %v2936
        %v2938 = vpop.f32.mrf.mxu0
        %v2939 = vadd.f32 %v2035, %v2938
        %2940 = vdwg.mxu0
        %v2941 = vpack.c.bf16 %v2934, %v2932
        %v2942 = vpack.c.bf16 %v2939, %v2937
        %2943 = vmatpush.bf16.msra.mxu0 0
        %2944 = vmatpush.bf16.msra.mxu0 0
        %2945 = vmatpush.bf16.msra.mxu0 0
        %2946 = vmatpush.bf16.msra.mxu0 0
        %2947 = vmatpush.bf16.msra.mxu0 0
        %2948 = vmatpush.bf16.msra.mxu0 0
        %2949 = vmatpush.bf16.msra.mxu0 %v2942
        %2950 = vmatpush.bf16.msra.mxu0 %v2941
        %2951 = vmatmul.bf16.gmra.mxu0 %v2113
        %v2952 = vpop.f32.mrf.mxu0
        %v2953 = vadd.f32 0.0, %v2952
        %v2954 = vpop.f32.mrf.mxu0
        %v2955 = vadd.f32 0.0, %v2954
        %2956 = vdwg.mxu0
        %v2957 = vmul.f32 %v2953, %v2132
        %v2958 = vmul.f32 %v2955, %v2137
        %v2959 = vpack.c.bf16 %v2957, %v2957
        %v2960 = vpack.c.bf16 %v2958, %v2958
        %v2963 = vunpack.c.l.b16 %v2959
        %v2964 = vunpack.c.l.b16 %v2960
        %v2965 = vpack.c.b16 %v2964, %v2963
        %2967 = vmatpush.bf16.msra.mxu0 %v2255
        %2968 = vmatpush.bf16.msra.mxu0 %v2254
        %2969 = vmatpush.bf16.msra.mxu0 %v2253
        %2970 = vmatpush.bf16.msra.mxu0 %v2252
        %2971 = vmatpush.bf16.msra.mxu0 %v2251
        %2972 = vmatpush.bf16.msra.mxu0 %v2250
        %2973 = vmatpush.bf16.msra.mxu0 %v2249
        %2974 = vmatpush.bf16.msra.mxu0 %v2248
        %2975 = vmatmul.bf16.gmra.mxu0 %v2708
        %v2976 = vpop.f32.mrf.mxu0
        %v2977 = vadd.f32 %v2182, %v2976
        %v2978 = vpop.f32.mrf.mxu0
        %v2979 = vadd.f32 %v2182, %v2978
        %2980 = vdwg.mxu0
        %2981 = vmatpush.bf16.msra.mxu0 %v2263
        %2982 = vmatpush.bf16.msra.mxu0 %v2262
        %2983 = vmatpush.bf16.msra.mxu0 %v2261
        %2984 = vmatpush.bf16.msra.mxu0 %v2260
        %2985 = vmatpush.bf16.msra.mxu0 %v2259
        %2986 = vmatpush.bf16.msra.mxu0 %v2258
        %2987 = vmatpush.bf16.msra.mxu0 %v2257
        %2988 = vmatpush.bf16.msra.mxu0 %v2256
        %2989 = vmatmul.bf16.gmra.mxu0 %v2965
        %v2990 = vpop.f32.mrf.mxu0
        %v2991 = vadd.f32 %v2977, %v2990
        %v2992 = vpop.f32.mrf.mxu0
        %v2993 = vadd.f32 %v2979, %v2992
        %2994 = vdwg.mxu0
        %v2995 = vmax.f32 %v2991, 0.0
        %v2996 = vmax.f32 %v2993, 0.0
        %v2997 = vpack.c.bf16 %v2996, %v2995
        %2998 = vmatpush.bf16.msra.mxu0 %v2369
        %2999 = vmatpush.bf16.msra.mxu0 %v2368
        %3000 = vmatpush.bf16.msra.mxu0 %v2367
        %3001 = vmatpush.bf16.msra.mxu0 %v2366
        %3002 = vmatpush.bf16.msra.mxu0 %v2365
        %3003 = vmatpush.bf16.msra.mxu0 %v2364
        %3004 = vmatpush.bf16.msra.mxu0 %v2363
        %3005 = vmatpush.bf16.msra.mxu0 %v2362
        %3006 = vmatmul.bf16.gmra.mxu0 %v2997
        %v3007 = vpop.f32.mrf.mxu0
        %v3008 = vadd.f32 %v2328, %v3007
        %v3009 = vpop.f32.mrf.mxu0
        %v3010 = vadd.f32 %v2328, %v3009
        %3011 = vdwg.mxu0
        %3012 = vst [vmem:[%s920] sm:$0xff] %v3008
        %3013 = vst [vmem:[%s920 + $0x8] sm:$0xff] %v3010
        %3014 = vst [vmem:[%s927] sm:$0xff] %v2853
        %3015 = vst [vmem:[%s927 + $0x8] sm:$0xff] %v2855
        %3016 = vst [vmem:[%s927 + $0x10] sm:$0xff] %v2858
        %3017 = vst [vmem:[%s927 + $0x18] sm:$0xff] %v2860
        %s3018 = sand.u32 %s639, 1
        %s3019 = scalar_lea.sflag [#allocation3], %s3018
        %s3020 = sand.u32 %s639, 1
        %s3021 = smul.addr %s3020, 16
        %s3022 = scalar_lea.vmem [#allocation2], %s3021
        %s3023 = sand.u32 %s665, 1
        %s3024 = scalar_lea.sflag [#allocation5], %s3023
        %s3025 = sand.u32 %s665, 1
        %s3026 = smul.addr %s3025, 32
        %s3027 = scalar_lea.vmem [#allocation4], %s3026
        // Predicated region
        $region125: #{geomol_forward.1} parent=123 // pred_check
          %p3028 = pneg %p649
        $region126: #{geomol_forward.1} parent=123 // pred_check_branch
          %3030 = sbr.rel (%p3028) target = $region128
        $region127: #{geomol_forward.1} parent=123 // pred_region
          %3032 = vsyncadd %s3019, 0
          %s3033 = smul.addr %s45, 2
          %s3034 = smul.addr %s3033, 8
          %s3035 = scalar_lea.hbm %s26, %s3034
          %s3036 = sshll.u32 %s3022, 4
          %s3037 = int_to_ptr.vmem [resolvable:$true] %s3036
          %s3038 = sshll.u32 %s3035, 4
          %s3039 = int_to_ptr.hbm [resolvable:$true] %s3038
          %3044 = dma.vmem_to_hbm [thread:$0]  %s3037, 256, %s3039, %s3019, 128, 128, 8
        $region128: #{geomol_forward.1} parent=123 // pred_fallthru
          _
        // Predicated region
        $region129: #{geomol_forward.1} parent=123 // pred_check
          %p3045 = pneg %p675
        $region130: #{geomol_forward.1} parent=123 // pred_check_branch
          %3047 = sbr.rel (%p3045) target = $region132
        $region131: #{geomol_forward.1} parent=123 // pred_region
          %3049 = vsyncadd %s3024, 0
          %s3050 = smul.addr %s45, 4
          %s3051 = smul.addr %s3050, 8
          %s3052 = scalar_lea.hbm %s27, %s3051
          %s3053 = sshll.u32 %s3027, 4
          %s3054 = int_to_ptr.vmem [resolvable:$true] %s3053
          %s3055 = sshll.u32 %s3052, 4
          %s3056 = int_to_ptr.hbm [resolvable:$true] %s3055
          %3061 = dma.vmem_to_hbm [thread:$0]  %s3054, 512, %s3056, %s3024, 128, 128, 8
        $region132: #{geomol_forward.1} parent=123 // pred_fallthru
          _
      $region124: #{geomol_forward.1} parent=5 // pred_fallthru
        _
      %p3062 = scmp.le.s32.totalorder 2, %s40
      // Predicated region
      $region133: #{geomol_forward.1} parent=5 // pred_check
        %p3063 = pneg %p3062
      $region134: #{geomol_forward.1} parent=5 // pred_check_branch
        %3065 = sbr.rel (%p3063) target = $region136
      $region135: #{geomol_forward.1} parent=5 // pred_region
        %s3066 = ssub.s32 %s40, 2
        // Predicated region
        $region137: #{geomol_forward.1} parent=135 // pred_check
          %p3067 = pneg %p655
        $region138: #{geomol_forward.1} parent=135 // pred_check_branch
          %3069 = sbr.rel (%p3067) target = $region140
        $region139: #{geomol_forward.1} parent=135 // pred_region
          %s3070 = sand.u32 %s640, 1
          %s3071 = scalar_lea.sflag [#allocation3], %s3070
          %s3072 = sand.u32 %s640, 1
          %s3073 = smul.addr %s3072, 16
          %s3074 = scalar_lea.vmem [#allocation2], %s3073
          %3076 = dma.done %s3071, 256
        $region140: #{geomol_forward.1} parent=135 // pred_fallthru
          _
        // Predicated region
        $region141: #{geomol_forward.1} parent=135 // pred_check
          %p3077 = pneg %p681
        $region142: #{geomol_forward.1} parent=135 // pred_check_branch
          %3079 = sbr.rel (%p3077) target = $region144
        $region143: #{geomol_forward.1} parent=135 // pred_region
          %s3080 = sand.u32 %s666, 1
          %s3081 = scalar_lea.sflag [#allocation5], %s3080
          %s3082 = sand.u32 %s666, 1
          %s3083 = smul.addr %s3082, 32
          %s3084 = scalar_lea.vmem [#allocation4], %s3083
          %3086 = dma.done %s3081, 512
        $region144: #{geomol_forward.1} parent=135 // pred_fallthru
          _
      $region136: #{geomol_forward.1} parent=5 // pred_fallthru
        _
    $region6: #{geomol_forward.1} parent=1 // loop_footer
      %s44 = sadd.s32 1, %s40
    $region7: #{geomol_forward.1} parent=1 // loop_footer_branch
      %39 = sbr.rel target = $region3
    $region8: #{geomol_forward.1} parent=1 // loop_exit
      _
    %3087 = vsyncpa [#allocation3], 1
    %s3088 = scalar_lea.sflag [#allocation3], 1
    %3089 = vsyncpa %s3088, 1
    %3090 = vsyncpa [#allocation5], 1
    %s3091 = scalar_lea.sflag [#allocation5], 1
    %3092 = vsyncpa %s3091, 1

</llo_original>
